<compile_context>
chip_gen: v7x
topology: tpu7x:2x2x1
jax: 0.10.0
libtpu: 0.0.40
codegen_flags: <defaults>
</compile_context>

<pallas_src>
import jax
import jax.numpy as jnp
from jax.experimental import pallas as pl
from jax.experimental.pallas import tpu as pltpu

EDGE_THRESHOLD = 5  # module default


def _round_up(v, m):
    return -(-v // m) * m


def _make_kernel(threshold, raw_input, dm_in_kernel):
    """Builds the kernel body.

    raw_input=True : input block is the raw (1, tc, H, W) tile; the zero halo is
                     built in a VMEM scratch slab inside the kernel.
    raw_input=False: input block is the wrapper-padded (1, tc, H+2, W+2) tile
                     (previously validated fallback path).
    dm_in_kernel   : channel-wise max computed inside the kernel (requires the
                     block to hold all channels); otherwise a (1,1,H,W) dm input.
    """
    thr = float(threshold)

    def kernel(*refs):
        refs = list(refs)
        if raw_input:
            pad_ref = refs.pop()          # VMEM scratch slab (1, tc, H+2, W+2)
        out_ref = refs.pop()
        if not dm_in_kernel:
            dm_ref = refs.pop()
        in_ref = refs.pop()

        H = out_ref.shape[2]
        W = out_ref.shape[3]

        if raw_input:
            x = in_ref[...]                               # (1, tc, H, W)
            pad_ref[...] = jnp.zeros_like(pad_ref)        # zero halo ring
            pad_ref[:, :, 1:1 + H, 1:1 + W] = x           # place tile in interior
            xp = pad_ref[...]                             # (1, tc, H+2, W+2)
        else:
            xp = in_ref[...]                              # wrapper-padded slab
            x = xp[:, :, 1:1 + H, 1:1 + W]

        def sl(di, dj):
            # value at spatial position (i + di, j + dj), zero outside the image
            return xp[:, :, 1 + di:1 + di + H, 1 + dj:1 + dj + W]

        # --- depth-wise (channel) maximum -----------------------------------
        if dm_in_kernel:
            dm = jnp.max(x, axis=1, keepdims=True)
        else:
            dm = dm_ref[...]
        is_depth_wise_max = x == dm

        # --- 8 shifted slabs, computed ONCE, shared by pool and stencils ----
        n_m1_0 = sl(-1, 0)
        n_p1_0 = sl(1, 0)
        n_0_m1 = sl(0, -1)
        n_0_p1 = sl(0, 1)
        n_m1_m1 = sl(-1, -1)
        n_m1_p1 = sl(-1, 1)
        n_p1_m1 = sl(1, -1)
        n_p1_p1 = sl(1, 1)

        # --- border masks (hoisted once) for -inf max-pool padding ----------
        row = jax.lax.broadcasted_iota(jnp.int32, (1, 1, H, W), 2)
        col = jax.lax.broadcasted_iota(jnp.int32, (1, 1, H, W), 3)
        top, bot = row == 0, row == H - 1
        lef, rig = col == 0, col == W - 1
        neg_inf = jnp.float32(-jnp.inf)

        # --- 3x3 max pool, stride 1, -inf padding (F.max_pool2d semantics) --
        nbrs = (
            (n_m1_0, top), (n_p1_0, bot), (n_0_m1, lef), (n_0_p1, rig),
            (n_m1_m1, top | lef), (n_m1_p1, top | rig),
            (n_p1_m1, bot | lef), (n_p1_p1, bot | rig),
        )
        local_max = x
        for v, inv in nbrs:
            # halo values (which are zero) must never win the pool -> -inf them
            local_max = jnp.maximum(local_max, jnp.where(inv, neg_inf, v))
        is_local_max = x == local_max

        # --- 3x3 depthwise second-derivative filters (zero padding) ---------
        # dii: [[0,1,0],[0,-2,0],[0,1,0]]
        dii = n_m1_0 - 2.0 * x + n_p1_0
        # djj: [[0,0,0],[1,-2,1],[0,0,0]]
        djj = n_0_m1 - 2.0 * x + n_0_p1
        # dij: 0.25*[[1,0,-1],[0,0,0],[-1,0,1]]
        dij = 0.25 * (n_m1_m1 - n_m1_p1 - n_p1_m1 + n_p1_p1)

        det = dii * djj - dij * dij
        tr = dii + djj
        # Divide/NaN free; equivalent to (tr*tr/det <= thr) & (det > 0).
        is_not_edge = jnp.logical_and(tr * tr <= thr * det, det > 0)

        detected = jnp.logical_and(
            is_depth_wise_max, jnp.logical_and(is_local_max, is_not_edge))
        out_ref[...] = detected.astype(out_ref.dtype)

    return kernel


def _pick_channel_tile(c, h, w, budget_bytes=40 * 1024 * 1024):
    """Largest divisor of c whose VMEM working set fits the budget.

    Uses the real (8,128)-rounded layout, double buffering of input and output
    blocks, the in-kernel halo scratch slab and (if tc < c) the dm block.
    Budget ~40 MiB keeps headroom on v7x (64 MiB VMEM); v5e/v6e could go larger.
    """
    hr, wr = _round_up(h, 8), _round_up(w, 128)
    hp, wp = _round_up(h + 2, 8), _round_up(w + 2, 128)
    per_in = 2 * hr * wr * 4          # double-buffered f32 input block, per channel
    per_out = 2 * hr * wr * 1         # double-buffered int8/bool output block, per channel
    per_pad = hp * wp * 4             # zero-padded scratch slab, per channel
    dm_bytes = 2 * hr * wr * 4        # double-buffered channel-max block (tc < c only)
    for tc in range(c, 0, -1):
        if c % tc:
            continue
        need = tc * (per_in + per_out + per_pad) + (0 if tc == c else dm_bytes)
        if need <= budget_bytes:
            return tc
    # TODO(synk): spatial row-band tiling when even a single channel is too large.
    return 1


# Variant ladder: (raw_input, out_dtype).  Tried in order; the last rung is the
# previously validated configuration (wrapper pad + int8 output).
_VARIANTS = (
    (True, jnp.bool_),
    (True, jnp.int8),
    (False, jnp.int8),
)
_LADDER_START = 0  # cache of the first variant known to lower+run on this backend


def _variant_call(variant, x, tc, threshold):
    raw_input, out_dtype = variant
    b, c, h, w = x.shape
    dm_in_kernel = raw_input and (tc == c)

    inputs = []
    in_specs = []
    scratch = []
    if raw_input:
        inputs.append(x)
        in_specs.append(pl.BlockSpec((1, tc, h, w), lambda bi, ci: (bi, ci, 0, 0)))
        scratch.append(pltpu.VMEM((1, tc, h + 2, w + 2), jnp.float32))
    else:
        xp = jnp.pad(x, ((0, 0), (0, 0), (1, 1), (1, 1)), constant_values=0.0)
        inputs.append(xp)
        in_specs.append(
            pl.BlockSpec((1, tc, h + 2, w + 2), lambda bi, ci: (bi, ci, 0, 0)))
    if not dm_in_kernel:
        dm = jnp.max(x, axis=1, keepdims=True)  # (b, 1, h, w), shared by all tiles
        inputs.append(dm)
        in_specs.append(pl.BlockSpec((1, 1, h, w), lambda bi, ci: (bi, 0, 0, 0)))

    out = pl.pallas_call(
        _make_kernel(threshold, raw_input, dm_in_kernel),
        out_shape=jax.ShapeDtypeStruct((b, c, h, w), out_dtype),
        grid_spec=pltpu.PrefetchScalarGridSpec(
            num_scalar_prefetch=0,
            grid=(b, c // tc),
            in_specs=in_specs,
            out_specs=pl.BlockSpec((1, tc, h, w), lambda bi, ci: (bi, ci, 0, 0)),
            scratch_shapes=scratch,
        ),
        compiler_params=pltpu.CompilerParams(
            dimension_semantics=("parallel", "parallel"),
            vmem_limit_bytes=48 * 1024 * 1024,
        ),
    )(*inputs)
    if out.dtype != jnp.bool_:
        out = out.astype(jnp.bool_)
    return out


def hard_detection(batch: jax.Array,
                   edge_threshold: int = EDGE_THRESHOLD,
                   channel_tile: int | None = None) -> jax.Array:
    """Pallas equivalent of HardDetectionModule.forward (bool NCHW mask)."""
    global _LADDER_START
    b, c, h, w = batch.shape
    x = batch.astype(jnp.float32)

    if channel_tile is not None:
        tc = channel_tile
    else:
        tc = _pick_channel_tile(c, h, w)
        # v7x megacore: make sure there are >=2 grid points to shard across 2 TCs.
        if b * (c // tc) < 2 and c % 2 == 0 and c > 1:
            tc = c // 2
    assert c % tc == 0, "channel_tile must divide the channel count"
    threshold = (edge_threshold + 1) ** 2 / edge_threshold

    # Try the fastest variant first; fall back if Mosaic rejects it on this
    # backend.  (Resolved eagerly -- under an outer jit only the cached variant
    # would be attempted.)
    err = None
    for i in range(_LADDER_START, len(_VARIANTS)):
        try:
            out = jax.block_until_ready(_variant_call(_VARIANTS[i], x, tc, threshold))
            _LADDER_START = i
            return out
        except Exception as e:  # lowering / compile rejection -> next rung
            err = e
    raise err


def hard_detection_ref(batch: jax.Array,
                       edge_threshold: int = EDGE_THRESHOLD) -> jax.Array:
    """Pure-JAX reference (same stencil semantics as the PyTorch module)."""
    x = batch.astype(jnp.float32)
    b, c, h, w = x.shape
    xz = jnp.pad(x, ((0, 0), (0, 0), (1, 1), (1, 1)), constant_values=0.0)
    xn = jnp.pad(x, ((0, 0), (0, 0), (1, 1), (1, 1)), constant_values=-jnp.inf)

    def sl(a, di, dj):
        return a[:, :, 1 + di:1 + di + h, 1 + dj:1 + dj + w]

    is_dw = x == jnp.max(x, axis=1, keepdims=True)
    lmax = x
    for di in (-1, 0, 1):
        for dj in (-1, 0, 1):
            if di == 0 and dj == 0:
                continue
            lmax = jnp.maximum(lmax, sl(xn, di, dj))
    is_lm = x == lmax
    dii = sl(xz, -1, 0) - 2.0 * x + sl(xz, 1, 0)
    djj = sl(xz, 0, -1) - 2.0 * x + sl(xz, 0, 1)
    dij = 0.25 * (sl(xz, -1, -1) - sl(xz, -1, 1) - sl(xz, 1, -1) + sl(xz, 1, 1))
    det = dii * djj - dij * dij
    tr = dii + djj
    thr = (edge_threshold + 1) ** 2 / edge_threshold
    is_not_edge = (tr * tr / det <= thr) & (det > 0)
    return is_dw & is_lm & is_not_edge


if __name__ == "__main__":
    key0, key1 = jax.random.split(jax.random.PRNGKey(0), 2)

    # Main test: shapes consistent with the module interface.
    b, c, h, w = 2, 4, 16, 16
    x = jax.random.normal(key0, (b, c, h, w), dtype=jnp.float32)
    detected = jax.block_until_ready(hard_detection(x))
    ref = jax.block_until_ready(hard_detection_ref(x))
    assert detected.shape == (b, c, h, w)
    assert detected.dtype == jnp.bool_
    assert bool(jnp.array_equal(detected, ref)), "Pallas result != JAX reference"

    # Second test: channel-tiled path (2 channel tiles -> dm-input code path).
    x2 = jax.random.normal(key1, (1, 8, 32, 32), dtype=jnp.float32)
    det2 = jax.block_until_ready(hard_detection(x2, channel_tile=4))
    ref2 = jax.block_until_ready(hard_detection_ref(x2))
    assert bool(jnp.array_equal(det2, ref2)), "Tiled Pallas result != JAX reference"

    print("KERNEL_OK")
</pallas_src>

<mosaic_0001>
module attributes {stable_mosaic.version = 11 : i64} {
  func.func @kernel(%arg0: i32, %arg1: i32, %arg2: memref<1x4x16x16xf32, #tpu.memory_space<vmem>>, %arg3: memref<1x4x16x16xi32, #tpu.memory_space<vmem>>, %arg4: memref<1x4x18x18xf32, #tpu.memory_space<vmem>>) attributes {dimension_semantics = [#tpu.dimension_semantics<parallel>, #tpu.dimension_semantics<parallel>], iteration_bounds = array<i64: 2, 1>, scalar_prefetch = 0 : i64, scratch_operands = 1 : i64, tpu.core_type = #tpu.core_type<tc>, window_params = [{transform_indices = @transform_0, window_bounds = array<i64: 1, 4, 16, 16>}, {transform_indices = @transform_1, window_bounds = array<i64: 1, 4, 16, 16>}]} {
    %c0 = arith.constant 0 : index
    %c0_0 = arith.constant 0 : index
    %c0_1 = arith.constant 0 : index
    %c0_2 = arith.constant 0 : index
    %0 = vector.load %arg2[%c0, %c0_0, %c0_1, %c0_2] : memref<1x4x16x16xf32, #tpu.memory_space<vmem>>, vector<1x4x16x16xf32>
    %cst = arith.constant 0.000000e+00 : f32
    %1 = vector.broadcast %cst : f32 to vector<1x4x18x18xf32>
    %c0_3 = arith.constant 0 : index
    %c0_4 = arith.constant 0 : index
    %c0_5 = arith.constant 0 : index
    %c0_6 = arith.constant 0 : index
    %2 = vector.load %arg4[%c0_3, %c0_4, %c0_5, %c0_6] : memref<1x4x18x18xf32, #tpu.memory_space<vmem>>, vector<1x4x18x18xf32>
    tpu.vector_store %arg4[%c0_3, %c0_4, %c0_5, %c0_6], %1 {strides = array<i32>} : memref<1x4x18x18xf32, #tpu.memory_space<vmem>>, vector<1x4x18x18xf32>,
    %c0_7 = arith.constant 0 : index
    %c0_8 = arith.constant 0 : index
    %c1 = arith.constant 1 : index
    %c1_9 = arith.constant 1 : index
    %3 = vector.load %arg4[%c0_7, %c0_8, %c1, %c1_9] : memref<1x4x18x18xf32, #tpu.memory_space<vmem>>, vector<1x4x16x16xf32>
    tpu.vector_store %arg4[%c0_7, %c0_8, %c1, %c1_9], %0 {strides = array<i32>} : memref<1x4x18x18xf32, #tpu.memory_space<vmem>>, vector<1x4x16x16xf32>,
    %c0_10 = arith.constant 0 : index
    %c0_11 = arith.constant 0 : index
    %c0_12 = arith.constant 0 : index
    %c0_13 = arith.constant 0 : index
    %4 = vector.load %arg4[%c0_10, %c0_11, %c0_12, %c0_13] : memref<1x4x18x18xf32, #tpu.memory_space<vmem>>, vector<1x4x18x18xf32>
    %cst_14 = arith.constant dense<0xFF800000> : vector<1x16x16xf32>
    %5 = vector.multi_reduction <maximumf>, %0, %cst_14 [1] : vector<1x4x16x16xf32> to vector<1x16x16xf32>
    %6 = vector.shape_cast %5 : vector<1x16x16xf32> to vector<1x1x16x16xf32>
    %7 = vector.broadcast %6 : vector<1x1x16x16xf32> to vector<1x4x16x16xf32>
    %8 = arith.cmpf oeq, %0, %7 : vector<1x4x16x16xf32>
    %9 = vector.extract_strided_slice %4 {offsets = [0, 0, 0, 1], sizes = [1, 4, 16, 16], strides = [1, 1, 1, 1]} : vector<1x4x18x18xf32> to vector<1x4x16x16xf32>
    %10 = vector.extract_strided_slice %4 {offsets = [0, 0, 2, 1], sizes = [1, 4, 16, 16], strides = [1, 1, 1, 1]} : vector<1x4x18x18xf32> to vector<1x4x16x16xf32>
    %11 = vector.extract_strided_slice %4 {offsets = [0, 0, 1, 0], sizes = [1, 4, 16, 16], strides = [1, 1, 1, 1]} : vector<1x4x18x18xf32> to vector<1x4x16x16xf32>
    %12 = vector.extract_strided_slice %4 {offsets = [0, 0, 1, 2], sizes = [1, 4, 16, 16], strides = [1, 1, 1, 1]} : vector<1x4x18x18xf32> to vector<1x4x16x16xf32>
    %13 = vector.extract_strided_slice %4 {offsets = [0, 0, 0, 0], sizes = [1, 4, 16, 16], strides = [1, 1, 1, 1]} : vector<1x4x18x18xf32> to vector<1x4x16x16xf32>
    %14 = vector.extract_strided_slice %4 {offsets = [0, 0, 0, 2], sizes = [1, 4, 16, 16], strides = [1, 1, 1, 1]} : vector<1x4x18x18xf32> to vector<1x4x16x16xf32>
    %15 = vector.extract_strided_slice %4 {offsets = [0, 0, 2, 0], sizes = [1, 4, 16, 16], strides = [1, 1, 1, 1]} : vector<1x4x18x18xf32> to vector<1x4x16x16xf32>
    %16 = vector.extract_strided_slice %4 {offsets = [0, 0, 2, 2], sizes = [1, 4, 16, 16], strides = [1, 1, 1, 1]} : vector<1x4x18x18xf32> to vector<1x4x16x16xf32>
    %17 = tpu.iota {dimensions = array<i32: 2>} : vector<1x1x16x16xi32>
    %18 = tpu.iota {dimensions = array<i32: 3>} : vector<1x1x16x16xi32>
    %c0_i32 = arith.constant 0 : i32
    %19 = vector.broadcast %c0_i32 : i32 to vector<1x1x16x16xi32>
    %20 = arith.cmpi eq, %17, %19 : vector<1x1x16x16xi32>
    %c15_i32 = arith.constant 15 : i32
    %21 = vector.broadcast %c15_i32 : i32 to vector<1x1x16x16xi32>
    %22 = arith.cmpi eq, %17, %21 : vector<1x1x16x16xi32>
    %c0_i32_15 = arith.constant 0 : i32
    %23 = vector.broadcast %c0_i32_15 : i32 to vector<1x1x16x16xi32>
    %24 = arith.cmpi eq, %18, %23 : vector<1x1x16x16xi32>
    %c15_i32_16 = arith.constant 15 : i32
    %25 = vector.broadcast %c15_i32_16 : i32 to vector<1x1x16x16xi32>
    %26 = arith.cmpi eq, %18, %25 : vector<1x1x16x16xi32>
    %27 = arith.ori %20, %24 : vector<1x1x16x16xi1>
    %28 = arith.ori %20, %26 : vector<1x1x16x16xi1>
    %29 = arith.ori %22, %24 : vector<1x1x16x16xi1>
    %30 = arith.ori %22, %26 : vector<1x1x16x16xi1>
    %cst_17 = arith.constant 0xFF800000 : f32
    %31 = vector.shape_cast %20 : vector<1x1x16x16xi1> to vector<1x1x16x16xi1>
    %32 = vector.broadcast %31 : vector<1x1x16x16xi1> to vector<1x4x16x16xi1>
    %33 = vector.broadcast %cst_17 : f32 to vector<1x4x16x16xf32>
    %34 = arith.select %32, %33, %9 : vector<1x4x16x16xi1>, vector<1x4x16x16xf32>
    %35 = arith.maximumf %0, %34 : vector<1x4x16x16xf32>
    %cst_18 = arith.constant 0xFF800000 : f32
    %36 = vector.shape_cast %22 : vector<1x1x16x16xi1> to vector<1x1x16x16xi1>
    %37 = vector.broadcast %36 : vector<1x1x16x16xi1> to vector<1x4x16x16xi1>
    %38 = vector.broadcast %cst_18 : f32 to vector<1x4x16x16xf32>
    %39 = arith.select %37, %38, %10 : vector<1x4x16x16xi1>, vector<1x4x16x16xf32>
    %40 = arith.maximumf %35, %39 : vector<1x4x16x16xf32>
    %cst_19 = arith.constant 0xFF800000 : f32
    %41 = vector.shape_cast %24 : vector<1x1x16x16xi1> to vector<1x1x16x16xi1>
    %42 = vector.broadcast %41 : vector<1x1x16x16xi1> to vector<1x4x16x16xi1>
    %43 = vector.broadcast %cst_19 : f32 to vector<1x4x16x16xf32>
    %44 = arith.select %42, %43, %11 : vector<1x4x16x16xi1>, vector<1x4x16x16xf32>
    %45 = arith.maximumf %40, %44 : vector<1x4x16x16xf32>
    %cst_20 = arith.constant 0xFF800000 : f32
    %46 = vector.shape_cast %26 : vector<1x1x16x16xi1> to vector<1x1x16x16xi1>
    %47 = vector.broadcast %46 : vector<1x1x16x16xi1> to vector<1x4x16x16xi1>
    %48 = vector.broadcast %cst_20 : f32 to vector<1x4x16x16xf32>
    %49 = arith.select %47, %48, %12 : vector<1x4x16x16xi1>, vector<1x4x16x16xf32>
    %50 = arith.maximumf %45, %49 : vector<1x4x16x16xf32>
    %cst_21 = arith.constant 0xFF800000 : f32
    %51 = vector.shape_cast %27 : vector<1x1x16x16xi1> to vector<1x1x16x16xi1>
    %52 = vector.broadcast %51 : vector<1x1x16x16xi1> to vector<1x4x16x16xi1>
    %53 = vector.broadcast %cst_21 : f32 to vector<1x4x16x16xf32>
    %54 = arith.select %52, %53, %13 : vector<1x4x16x16xi1>, vector<1x4x16x16xf32>
    %55 = arith.maximumf %50, %54 : vector<1x4x16x16xf32>
    %cst_22 = arith.constant 0xFF800000 : f32
    %56 = vector.shape_cast %28 : vector<1x1x16x16xi1> to vector<1x1x16x16xi1>
    %57 = vector.broadcast %56 : vector<1x1x16x16xi1> to vector<1x4x16x16xi1>
    %58 = vector.broadcast %cst_22 : f32 to vector<1x4x16x16xf32>
    %59 = arith.select %57, %58, %14 : vector<1x4x16x16xi1>, vector<1x4x16x16xf32>
    %60 = arith.maximumf %55, %59 : vector<1x4x16x16xf32>
    %cst_23 = arith.constant 0xFF800000 : f32
    %61 = vector.shape_cast %29 : vector<1x1x16x16xi1> to vector<1x1x16x16xi1>
    %62 = vector.broadcast %61 : vector<1x1x16x16xi1> to vector<1x4x16x16xi1>
    %63 = vector.broadcast %cst_23 : f32 to vector<1x4x16x16xf32>
    %64 = arith.select %62, %63, %15 : vector<1x4x16x16xi1>, vector<1x4x16x16xf32>
    %65 = arith.maximumf %60, %64 : vector<1x4x16x16xf32>
    %cst_24 = arith.constant 0xFF800000 : f32
    %66 = vector.shape_cast %30 : vector<1x1x16x16xi1> to vector<1x1x16x16xi1>
    %67 = vector.broadcast %66 : vector<1x1x16x16xi1> to vector<1x4x16x16xi1>
    %68 = vector.broadcast %cst_24 : f32 to vector<1x4x16x16xf32>
    %69 = arith.select %67, %68, %16 : vector<1x4x16x16xi1>, vector<1x4x16x16xf32>
    %70 = arith.maximumf %65, %69 : vector<1x4x16x16xf32>
    %71 = arith.cmpf oeq, %0, %70 : vector<1x4x16x16xf32>
    %cst_25 = arith.constant 2.000000e+00 : f32
    %72 = vector.broadcast %cst_25 : f32 to vector<1x4x16x16xf32>
    %73 = arith.mulf %72, %0 : vector<1x4x16x16xf32>
    %74 = arith.subf %9, %73 : vector<1x4x16x16xf32>
    %75 = arith.addf %74, %10 : vector<1x4x16x16xf32>
    %cst_26 = arith.constant 2.000000e+00 : f32
    %76 = vector.broadcast %cst_26 : f32 to vector<1x4x16x16xf32>
    %77 = arith.mulf %76, %0 : vector<1x4x16x16xf32>
    %78 = arith.subf %11, %77 : vector<1x4x16x16xf32>
    %79 = arith.addf %78, %12 : vector<1x4x16x16xf32>
    %80 = arith.subf %13, %14 : vector<1x4x16x16xf32>
    %81 = arith.subf %80, %15 : vector<1x4x16x16xf32>
    %82 = arith.addf %81, %16 : vector<1x4x16x16xf32>
    %cst_27 = arith.constant 2.500000e-01 : f32
    %83 = vector.broadcast %cst_27 : f32 to vector<1x4x16x16xf32>
    %84 = arith.mulf %83, %82 : vector<1x4x16x16xf32>
    %85 = arith.mulf %75, %79 : vector<1x4x16x16xf32>
    %86 = arith.mulf %84, %84 : vector<1x4x16x16xf32>
    %87 = arith.subf %85, %86 : vector<1x4x16x16xf32>
    %88 = arith.addf %75, %79 : vector<1x4x16x16xf32>
    %89 = arith.mulf %88, %88 : vector<1x4x16x16xf32>
    %cst_28 = arith.constant 7.1999998 : f32
    %90 = vector.broadcast %cst_28 : f32 to vector<1x4x16x16xf32>
    %91 = arith.mulf %90, %87 : vector<1x4x16x16xf32>
    %92 = arith.cmpf ole, %89, %91 : vector<1x4x16x16xf32>
    %cst_29 = arith.constant 0.000000e+00 : f32
    %93 = vector.broadcast %cst_29 : f32 to vector<1x4x16x16xf32>
    %94 = arith.cmpf ogt, %87, %93 : vector<1x4x16x16xf32>
    %95 = arith.andi %92, %94 : vector<1x4x16x16xi1>
    %96 = arith.andi %71, %95 : vector<1x4x16x16xi1>
    %97 = arith.andi %8, %96 : vector<1x4x16x16xi1>
    %c0_30 = arith.constant 0 : index
    %c0_31 = arith.constant 0 : index
    %c0_32 = arith.constant 0 : index
    %c0_33 = arith.constant 0 : index
    %98 = vector.load %arg3[%c0_30, %c0_31, %c0_32, %c0_33] : memref<1x4x16x16xi32, #tpu.memory_space<vmem>>, vector<1x4x16x16xi32>
    %99 = arith.extui %97 : vector<1x4x16x16xi1> to vector<1x4x16x16xi32>
    %cst_34 = arith.constant dense<0> : vector<1x4x16x16xi32>
    %100 = arith.cmpi ne, %98, %cst_34 : vector<1x4x16x16xi32>
    tpu.vector_store %arg3[%c0_30, %c0_31, %c0_32, %c0_33], %99 {strides = array<i32>} : memref<1x4x16x16xi32, #tpu.memory_space<vmem>>, vector<1x4x16x16xi32>,
    return
  }
  func.func @transform_0(%arg0: i32, %arg1: i32) -> (i32, i32, i32, i32) {
    %c0_i32 = arith.constant 0 : i32
    %c0_i32_0 = arith.constant 0 : i32
    %c0_i32_1 = arith.constant 0 : i32
    return %arg0, %arg1, %c0_i32, %c0_i32_0 : i32, i32, i32, i32
  }
  func.func @transform_1(%arg0: i32, %arg1: i32) -> (i32, i32, i32, i32) {
    %c0_i32 = arith.constant 0 : i32
    %c0_i32_0 = arith.constant 0 : i32
    %c0_i32_1 = arith.constant 0 : i32
    return %arg0, %arg1, %c0_i32, %c0_i32_0 : i32, i32, i32, i32
  }
}

module attributes {stable_mosaic.version = 11 : i64} {
  func.func @kernel(%arg0: i32, %arg1: i32, %arg2: memref<1x4x16x16xf32, #tpu.memory_space<vmem>>, %arg3: memref<1x4x16x16xi8, #tpu.memory_space<vmem>>, %arg4: memref<1x4x18x18xf32, #tpu.memory_space<vmem>>) attributes {dimension_semantics = [#tpu.dimension_semantics<parallel>, #tpu.dimension_semantics<parallel>], iteration_bounds = array<i64: 2, 1>, scalar_prefetch = 0 : i64, scratch_operands = 1 : i64, tpu.core_type = #tpu.core_type<tc>, window_params = [{transform_indices = @transform_0, window_bounds = array<i64: 1, 4, 16, 16>}, {transform_indices = @transform_1, window_bounds = array<i64: 1, 4, 16, 16>}]} {
    %c0 = arith.constant 0 : index
    %c0_0 = arith.constant 0 : index
    %c0_1 = arith.constant 0 : index
    %c0_2 = arith.constant 0 : index
    %0 = vector.load %arg2[%c0, %c0_0, %c0_1, %c0_2] : memref<1x4x16x16xf32, #tpu.memory_space<vmem>>, vector<1x4x16x16xf32>
    %cst = arith.constant 0.000000e+00 : f32
    %1 = vector.broadcast %cst : f32 to vector<1x4x18x18xf32>
    %c0_3 = arith.constant 0 : index
    %c0_4 = arith.constant 0 : index
    %c0_5 = arith.constant 0 : index
    %c0_6 = arith.constant 0 : index
    %2 = vector.load %arg4[%c0_3, %c0_4, %c0_5, %c0_6] : memref<1x4x18x18xf32, #tpu.memory_space<vmem>>, vector<1x4x18x18xf32>
    tpu.vector_store %arg4[%c0_3, %c0_4, %c0_5, %c0_6], %1 {strides = array<i32>} : memref<1x4x18x18xf32, #tpu.memory_space<vmem>>, vector<1x4x18x18xf32>,
    %c0_7 = arith.constant 0 : index
    %c0_8 = arith.constant 0 : index
    %c1 = arith.constant 1 : index
    %c1_9 = arith.constant 1 : index
    %3 = vector.load %arg4[%c0_7, %c0_8, %c1, %c1_9] : memref<1x4x18x18xf32, #tpu.memory_space<vmem>>, vector<1x4x16x16xf32>
    tpu.vector_store %arg4[%c0_7, %c0_8, %c1, %c1_9], %0 {strides = array<i32>} : memref<1x4x18x18xf32, #tpu.memory_space<vmem>>, vector<1x4x16x16xf32>,
    %c0_10 = arith.constant 0 : index
    %c0_11 = arith.constant 0 : index
    %c0_12 = arith.constant 0 : index
    %c0_13 = arith.constant 0 : index
    %4 = vector.load %arg4[%c0_10, %c0_11, %c0_12, %c0_13] : memref<1x4x18x18xf32, #tpu.memory_space<vmem>>, vector<1x4x18x18xf32>
    %cst_14 = arith.constant dense<0xFF800000> : vector<1x16x16xf32>
    %5 = vector.multi_reduction <maximumf>, %0, %cst_14 [1] : vector<1x4x16x16xf32> to vector<1x16x16xf32>
    %6 = vector.shape_cast %5 : vector<1x16x16xf32> to vector<1x1x16x16xf32>
    %7 = vector.broadcast %6 : vector<1x1x16x16xf32> to vector<1x4x16x16xf32>
    %8 = arith.cmpf oeq, %0, %7 : vector<1x4x16x16xf32>
    %9 = vector.extract_strided_slice %4 {offsets = [0, 0, 0, 1], sizes = [1, 4, 16, 16], strides = [1, 1, 1, 1]} : vector<1x4x18x18xf32> to vector<1x4x16x16xf32>
    %10 = vector.extract_strided_slice %4 {offsets = [0, 0, 2, 1], sizes = [1, 4, 16, 16], strides = [1, 1, 1, 1]} : vector<1x4x18x18xf32> to vector<1x4x16x16xf32>
    %11 = vector.extract_strided_slice %4 {offsets = [0, 0, 1, 0], sizes = [1, 4, 16, 16], strides = [1, 1, 1, 1]} : vector<1x4x18x18xf32> to vector<1x4x16x16xf32>
    %12 = vector.extract_strided_slice %4 {offsets = [0, 0, 1, 2], sizes = [1, 4, 16, 16], strides = [1, 1, 1, 1]} : vector<1x4x18x18xf32> to vector<1x4x16x16xf32>
    %13 = vector.extract_strided_slice %4 {offsets = [0, 0, 0, 0], sizes = [1, 4, 16, 16], strides = [1, 1, 1, 1]} : vector<1x4x18x18xf32> to vector<1x4x16x16xf32>
    %14 = vector.extract_strided_slice %4 {offsets = [0, 0, 0, 2], sizes = [1, 4, 16, 16], strides = [1, 1, 1, 1]} : vector<1x4x18x18xf32> to vector<1x4x16x16xf32>
    %15 = vector.extract_strided_slice %4 {offsets = [0, 0, 2, 0], sizes = [1, 4, 16, 16], strides = [1, 1, 1, 1]} : vector<1x4x18x18xf32> to vector<1x4x16x16xf32>
    %16 = vector.extract_strided_slice %4 {offsets = [0, 0, 2, 2], sizes = [1, 4, 16, 16], strides = [1, 1, 1, 1]} : vector<1x4x18x18xf32> to vector<1x4x16x16xf32>
    %17 = tpu.iota {dimensions = array<i32: 2>} : vector<1x1x16x16xi32>
    %18 = tpu.iota {dimensions = array<i32: 3>} : vector<1x1x16x16xi32>
    %c0_i32 = arith.constant 0 : i32
    %19 = vector.broadcast %c0_i32 : i32 to vector<1x1x16x16xi32>
    %20 = arith.cmpi eq, %17, %19 : vector<1x1x16x16xi32>
    %c15_i32 = arith.constant 15 : i32
    %21 = vector.broadcast %c15_i32 : i32 to vector<1x1x16x16xi32>
    %22 = arith.cmpi eq, %17, %21 : vector<1x1x16x16xi32>
    %c0_i32_15 = arith.constant 0 : i32
    %23 = vector.broadcast %c0_i32_15 : i32 to vector<1x1x16x16xi32>
    %24 = arith.cmpi eq, %18, %23 : vector<1x1x16x16xi32>
    %c15_i32_16 = arith.constant 15 : i32
    %25 = vector.broadcast %c15_i32_16 : i32 to vector<1x1x16x16xi32>
    %26 = arith.cmpi eq, %18, %25 : vector<1x1x16x16xi32>
    %27 = arith.ori %20, %24 : vector<1x1x16x16xi1>
    %28 = arith.ori %20, %26 : vector<1x1x16x16xi1>
    %29 = arith.ori %22, %24 : vector<1x1x16x16xi1>
    %30 = arith.ori %22, %26 : vector<1x1x16x16xi1>
    %cst_17 = arith.constant 0xFF800000 : f32
    %31 = vector.shape_cast %20 : vector<1x1x16x16xi1> to vector<1x1x16x16xi1>
    %32 = vector.broadcast %31 : vector<1x1x16x16xi1> to vector<1x4x16x16xi1>
    %33 = vector.broadcast %cst_17 : f32 to vector<1x4x16x16xf32>
    %34 = arith.select %32, %33, %9 : vector<1x4x16x16xi1>, vector<1x4x16x16xf32>
    %35 = arith.maximumf %0, %34 : vector<1x4x16x16xf32>
    %cst_18 = arith.constant 0xFF800000 : f32
    %36 = vector.shape_cast %22 : vector<1x1x16x16xi1> to vector<1x1x16x16xi1>
    %37 = vector.broadcast %36 : vector<1x1x16x16xi1> to vector<1x4x16x16xi1>
    %38 = vector.broadcast %cst_18 : f32 to vector<1x4x16x16xf32>
    %39 = arith.select %37, %38, %10 : vector<1x4x16x16xi1>, vector<1x4x16x16xf32>
    %40 = arith.maximumf %35, %39 : vector<1x4x16x16xf32>
    %cst_19 = arith.constant 0xFF800000 : f32
    %41 = vector.shape_cast %24 : vector<1x1x16x16xi1> to vector<1x1x16x16xi1>
    %42 = vector.broadcast %41 : vector<1x1x16x16xi1> to vector<1x4x16x16xi1>
    %43 = vector.broadcast %cst_19 : f32 to vector<1x4x16x16xf32>
    %44 = arith.select %42, %43, %11 : vector<1x4x16x16xi1>, vector<1x4x16x16xf32>
    %45 = arith.maximumf %40, %44 : vector<1x4x16x16xf32>
    %cst_20 = arith.constant 0xFF800000 : f32
    %46 = vector.shape_cast %26 : vector<1x1x16x16xi1> to vector<1x1x16x16xi1>
    %47 = vector.broadcast %46 : vector<1x1x16x16xi1> to vector<1x4x16x16xi1>
    %48 = vector.broadcast %cst_20 : f32 to vector<1x4x16x16xf32>
    %49 = arith.select %47, %48, %12 : vector<1x4x16x16xi1>, vector<1x4x16x16xf32>
    %50 = arith.maximumf %45, %49 : vector<1x4x16x16xf32>
    %cst_21 = arith.constant 0xFF800000 : f32
    %51 = vector.shape_cast %27 : vector<1x1x16x16xi1> to vector<1x1x16x16xi1>
    %52 = vector.broadcast %51 : vector<1x1x16x16xi1> to vector<1x4x16x16xi1>
    %53 = vector.broadcast %cst_21 : f32 to vector<1x4x16x16xf32>
    %54 = arith.select %52, %53, %13 : vector<1x4x16x16xi1>, vector<1x4x16x16xf32>
    %55 = arith.maximumf %50, %54 : vector<1x4x16x16xf32>
    %cst_22 = arith.constant 0xFF800000 : f32
    %56 = vector.shape_cast %28 : vector<1x1x16x16xi1> to vector<1x1x16x16xi1>
    %57 = vector.broadcast %56 : vector<1x1x16x16xi1> to vector<1x4x16x16xi1>
    %58 = vector.broadcast %cst_22 : f32 to vector<1x4x16x16xf32>
    %59 = arith.select %57, %58, %14 : vector<1x4x16x16xi1>, vector<1x4x16x16xf32>
    %60 = arith.maximumf %55, %59 : vector<1x4x16x16xf32>
    %cst_23 = arith.constant 0xFF800000 : f32
    %61 = vector.shape_cast %29 : vector<1x1x16x16xi1> to vector<1x1x16x16xi1>
    %62 = vector.broadcast %61 : vector<1x1x16x16xi1> to vector<1x4x16x16xi1>
    %63 = vector.broadcast %cst_23 : f32 to vector<1x4x16x16xf32>
    %64 = arith.select %62, %63, %15 : vector<1x4x16x16xi1>, vector<1x4x16x16xf32>
    %65 = arith.maximumf %60, %64 : vector<1x4x16x16xf32>
    %cst_24 = arith.constant 0xFF800000 : f32
    %66 = vector.shape_cast %30 : vector<1x1x16x16xi1> to vector<1x1x16x16xi1>
    %67 = vector.broadcast %66 : vector<1x1x16x16xi1> to vector<1x4x16x16xi1>
    %68 = vector.broadcast %cst_24 : f32 to vector<1x4x16x16xf32>
    %69 = arith.select %67, %68, %16 : vector<1x4x16x16xi1>, vector<1x4x16x16xf32>
    %70 = arith.maximumf %65, %69 : vector<1x4x16x16xf32>
    %71 = arith.cmpf oeq, %0, %70 : vector<1x4x16x16xf32>
    %cst_25 = arith.constant 2.000000e+00 : f32
    %72 = vector.broadcast %cst_25 : f32 to vector<1x4x16x16xf32>
    %73 = arith.mulf %72, %0 : vector<1x4x16x16xf32>
    %74 = arith.subf %9, %73 : vector<1x4x16x16xf32>
    %75 = arith.addf %74, %10 : vector<1x4x16x16xf32>
    %cst_26 = arith.constant 2.000000e+00 : f32
    %76 = vector.broadcast %cst_26 : f32 to vector<1x4x16x16xf32>
    %77 = arith.mulf %76, %0 : vector<1x4x16x16xf32>
    %78 = arith.subf %11, %77 : vector<1x4x16x16xf32>
    %79 = arith.addf %78, %12 : vector<1x4x16x16xf32>
    %80 = arith.subf %13, %14 : vector<1x4x16x16xf32>
    %81 = arith.subf %80, %15 : vector<1x4x16x16xf32>
    %82 = arith.addf %81, %16 : vector<1x4x16x16xf32>
    %cst_27 = arith.constant 2.500000e-01 : f32
    %83 = vector.broadcast %cst_27 : f32 to vector<1x4x16x16xf32>
    %84 = arith.mulf %83, %82 : vector<1x4x16x16xf32>
    %85 = arith.mulf %75, %79 : vector<1x4x16x16xf32>
    %86 = arith.mulf %84, %84 : vector<1x4x16x16xf32>
    %87 = arith.subf %85, %86 : vector<1x4x16x16xf32>
    %88 = arith.addf %75, %79 : vector<1x4x16x16xf32>
    %89 = arith.mulf %88, %88 : vector<1x4x16x16xf32>
    %cst_28 = arith.constant 7.1999998 : f32
    %90 = vector.broadcast %cst_28 : f32 to vector<1x4x16x16xf32>
    %91 = arith.mulf %90, %87 : vector<1x4x16x16xf32>
    %92 = arith.cmpf ole, %89, %91 : vector<1x4x16x16xf32>
    %cst_29 = arith.constant 0.000000e+00 : f32
    %93 = vector.broadcast %cst_29 : f32 to vector<1x4x16x16xf32>
    %94 = arith.cmpf ogt, %87, %93 : vector<1x4x16x16xf32>
    %95 = arith.andi %92, %94 : vector<1x4x16x16xi1>
    %96 = arith.andi %71, %95 : vector<1x4x16x16xi1>
    %97 = arith.andi %8, %96 : vector<1x4x16x16xi1>
    %98 = arith.extui %97 : vector<1x4x16x16xi1> to vector<1x4x16x16xi8>
    %c0_30 = arith.constant 0 : index
    %c0_31 = arith.constant 0 : index
    %c0_32 = arith.constant 0 : index
    %c0_33 = arith.constant 0 : index
    %99 = vector.load %arg3[%c0_30, %c0_31, %c0_32, %c0_33] : memref<1x4x16x16xi8, #tpu.memory_space<vmem>>, vector<1x4x16x16xi8>
    tpu.vector_store %arg3[%c0_30, %c0_31, %c0_32, %c0_33], %98 {strides = array<i32>} : memref<1x4x16x16xi8, #tpu.memory_space<vmem>>, vector<1x4x16x16xi8>,
    return
  }
  func.func @transform_0(%arg0: i32, %arg1: i32) -> (i32, i32, i32, i32) {
    %c0_i32 = arith.constant 0 : i32
    %c0_i32_0 = arith.constant 0 : i32
    %c0_i32_1 = arith.constant 0 : i32
    return %arg0, %arg1, %c0_i32, %c0_i32_0 : i32, i32, i32, i32
  }
  func.func @transform_1(%arg0: i32, %arg1: i32) -> (i32, i32, i32, i32) {
    %c0_i32 = arith.constant 0 : i32
    %c0_i32_0 = arith.constant 0 : i32
    %c0_i32_1 = arith.constant 0 : i32
    return %arg0, %arg1, %c0_i32, %c0_i32_0 : i32, i32, i32, i32
  }
}

module attributes {stable_mosaic.version = 11 : i64} {
  func.func @kernel(%arg0: i32, %arg1: i32, %arg2: memref<1x4x18x18xf32, #tpu.memory_space<vmem>>, %arg3: memref<1x1x16x16xf32, #tpu.memory_space<vmem>>, %arg4: memref<1x4x16x16xi8, #tpu.memory_space<vmem>>) attributes {dimension_semantics = [#tpu.dimension_semantics<parallel>, #tpu.dimension_semantics<parallel>], iteration_bounds = array<i64: 2, 1>, scalar_prefetch = 0 : i64, scratch_operands = 0 : i64, tpu.core_type = #tpu.core_type<tc>, window_params = [{transform_indices = @transform_0, window_bounds = array<i64: 1, 4, 18, 18>}, {transform_indices = @transform_1, window_bounds = array<i64: 1, 1, 16, 16>}, {transform_indices = @transform_2, window_bounds = array<i64: 1, 4, 16, 16>}]} {
    %c0 = arith.constant 0 : index
    %c0_0 = arith.constant 0 : index
    %c0_1 = arith.constant 0 : index
    %c0_2 = arith.constant 0 : index
    %0 = vector.load %arg2[%c0, %c0_0, %c0_1, %c0_2] : memref<1x4x18x18xf32, #tpu.memory_space<vmem>>, vector<1x4x18x18xf32>
    %1 = vector.extract_strided_slice %0 {offsets = [0, 0, 1, 1], sizes = [1, 4, 16, 16], strides = [1, 1, 1, 1]} : vector<1x4x18x18xf32> to vector<1x4x16x16xf32>
    %c0_3 = arith.constant 0 : index
    %c0_4 = arith.constant 0 : index
    %c0_5 = arith.constant 0 : index
    %c0_6 = arith.constant 0 : index
    %2 = vector.load %arg3[%c0_3, %c0_4, %c0_5, %c0_6] : memref<1x1x16x16xf32, #tpu.memory_space<vmem>>, vector<1x1x16x16xf32>
    %3 = vector.broadcast %2 : vector<1x1x16x16xf32> to vector<1x4x16x16xf32>
    %4 = arith.cmpf oeq, %1, %3 : vector<1x4x16x16xf32>
    %5 = vector.extract_strided_slice %0 {offsets = [0, 0, 0, 1], sizes = [1, 4, 16, 16], strides = [1, 1, 1, 1]} : vector<1x4x18x18xf32> to vector<1x4x16x16xf32>
    %6 = vector.extract_strided_slice %0 {offsets = [0, 0, 2, 1], sizes = [1, 4, 16, 16], strides = [1, 1, 1, 1]} : vector<1x4x18x18xf32> to vector<1x4x16x16xf32>
    %7 = vector.extract_strided_slice %0 {offsets = [0, 0, 1, 0], sizes = [1, 4, 16, 16], strides = [1, 1, 1, 1]} : vector<1x4x18x18xf32> to vector<1x4x16x16xf32>
    %8 = vector.extract_strided_slice %0 {offsets = [0, 0, 1, 2], sizes = [1, 4, 16, 16], strides = [1, 1, 1, 1]} : vector<1x4x18x18xf32> to vector<1x4x16x16xf32>
    %9 = vector.extract_strided_slice %0 {offsets = [0, 0, 0, 0], sizes = [1, 4, 16, 16], strides = [1, 1, 1, 1]} : vector<1x4x18x18xf32> to vector<1x4x16x16xf32>
    %10 = vector.extract_strided_slice %0 {offsets = [0, 0, 0, 2], sizes = [1, 4, 16, 16], strides = [1, 1, 1, 1]} : vector<1x4x18x18xf32> to vector<1x4x16x16xf32>
    %11 = vector.extract_strided_slice %0 {offsets = [0, 0, 2, 0], sizes = [1, 4, 16, 16], strides = [1, 1, 1, 1]} : vector<1x4x18x18xf32> to vector<1x4x16x16xf32>
    %12 = vector.extract_strided_slice %0 {offsets = [0, 0, 2, 2], sizes = [1, 4, 16, 16], strides = [1, 1, 1, 1]} : vector<1x4x18x18xf32> to vector<1x4x16x16xf32>
    %13 = tpu.iota {dimensions = array<i32: 2>} : vector<1x1x16x16xi32>
    %14 = tpu.iota {dimensions = array<i32: 3>} : vector<1x1x16x16xi32>
    %c0_i32 = arith.constant 0 : i32
    %15 = vector.broadcast %c0_i32 : i32 to vector<1x1x16x16xi32>
    %16 = arith.cmpi eq, %13, %15 : vector<1x1x16x16xi32>
    %c15_i32 = arith.constant 15 : i32
    %17 = vector.broadcast %c15_i32 : i32 to vector<1x1x16x16xi32>
    %18 = arith.cmpi eq, %13, %17 : vector<1x1x16x16xi32>
    %c0_i32_7 = arith.constant 0 : i32
    %19 = vector.broadcast %c0_i32_7 : i32 to vector<1x1x16x16xi32>
    %20 = arith.cmpi eq, %14, %19 : vector<1x1x16x16xi32>
    %c15_i32_8 = arith.constant 15 : i32
    %21 = vector.broadcast %c15_i32_8 : i32 to vector<1x1x16x16xi32>
    %22 = arith.cmpi eq, %14, %21 : vector<1x1x16x16xi32>
    %23 = arith.ori %16, %20 : vector<1x1x16x16xi1>
    %24 = arith.ori %16, %22 : vector<1x1x16x16xi1>
    %25 = arith.ori %18, %20 : vector<1x1x16x16xi1>
    %26 = arith.ori %18, %22 : vector<1x1x16x16xi1>
    %cst = arith.constant 0xFF800000 : f32
    %27 = vector.shape_cast %16 : vector<1x1x16x16xi1> to vector<1x1x16x16xi1>
    %28 = vector.broadcast %27 : vector<1x1x16x16xi1> to vector<1x4x16x16xi1>
    %29 = vector.broadcast %cst : f32 to vector<1x4x16x16xf32>
    %30 = arith.select %28, %29, %5 : vector<1x4x16x16xi1>, vector<1x4x16x16xf32>
    %31 = arith.maximumf %1, %30 : vector<1x4x16x16xf32>
    %cst_9 = arith.constant 0xFF800000 : f32
    %32 = vector.shape_cast %18 : vector<1x1x16x16xi1> to vector<1x1x16x16xi1>
    %33 = vector.broadcast %32 : vector<1x1x16x16xi1> to vector<1x4x16x16xi1>
    %34 = vector.broadcast %cst_9 : f32 to vector<1x4x16x16xf32>
    %35 = arith.select %33, %34, %6 : vector<1x4x16x16xi1>, vector<1x4x16x16xf32>
    %36 = arith.maximumf %31, %35 : vector<1x4x16x16xf32>
    %cst_10 = arith.constant 0xFF800000 : f32
    %37 = vector.shape_cast %20 : vector<1x1x16x16xi1> to vector<1x1x16x16xi1>
    %38 = vector.broadcast %37 : vector<1x1x16x16xi1> to vector<1x4x16x16xi1>
    %39 = vector.broadcast %cst_10 : f32 to vector<1x4x16x16xf32>
    %40 = arith.select %38, %39, %7 : vector<1x4x16x16xi1>, vector<1x4x16x16xf32>
    %41 = arith.maximumf %36, %40 : vector<1x4x16x16xf32>
    %cst_11 = arith.constant 0xFF800000 : f32
    %42 = vector.shape_cast %22 : vector<1x1x16x16xi1> to vector<1x1x16x16xi1>
    %43 = vector.broadcast %42 : vector<1x1x16x16xi1> to vector<1x4x16x16xi1>
    %44 = vector.broadcast %cst_11 : f32 to vector<1x4x16x16xf32>
    %45 = arith.select %43, %44, %8 : vector<1x4x16x16xi1>, vector<1x4x16x16xf32>
    %46 = arith.maximumf %41, %45 : vector<1x4x16x16xf32>
    %cst_12 = arith.constant 0xFF800000 : f32
    %47 = vector.shape_cast %23 : vector<1x1x16x16xi1> to vector<1x1x16x16xi1>
    %48 = vector.broadcast %47 : vector<1x1x16x16xi1> to vector<1x4x16x16xi1>
    %49 = vector.broadcast %cst_12 : f32 to vector<1x4x16x16xf32>
    %50 = arith.select %48, %49, %9 : vector<1x4x16x16xi1>, vector<1x4x16x16xf32>
    %51 = arith.maximumf %46, %50 : vector<1x4x16x16xf32>
    %cst_13 = arith.constant 0xFF800000 : f32
    %52 = vector.shape_cast %24 : vector<1x1x16x16xi1> to vector<1x1x16x16xi1>
    %53 = vector.broadcast %52 : vector<1x1x16x16xi1> to vector<1x4x16x16xi1>
    %54 = vector.broadcast %cst_13 : f32 to vector<1x4x16x16xf32>
    %55 = arith.select %53, %54, %10 : vector<1x4x16x16xi1>, vector<1x4x16x16xf32>
    %56 = arith.maximumf %51, %55 : vector<1x4x16x16xf32>
    %cst_14 = arith.constant 0xFF800000 : f32
    %57 = vector.shape_cast %25 : vector<1x1x16x16xi1> to vector<1x1x16x16xi1>
    %58 = vector.broadcast %57 : vector<1x1x16x16xi1> to vector<1x4x16x16xi1>
    %59 = vector.broadcast %cst_14 : f32 to vector<1x4x16x16xf32>
    %60 = arith.select %58, %59, %11 : vector<1x4x16x16xi1>, vector<1x4x16x16xf32>
    %61 = arith.maximumf %56, %60 : vector<1x4x16x16xf32>
    %cst_15 = arith.constant 0xFF800000 : f32
    %62 = vector.shape_cast %26 : vector<1x1x16x16xi1> to vector<1x1x16x16xi1>
    %63 = vector.broadcast %62 : vector<1x1x16x16xi1> to vector<1x4x16x16xi1>
    %64 = vector.broadcast %cst_15 : f32 to vector<1x4x16x16xf32>
    %65 = arith.select %63, %64, %12 : vector<1x4x16x16xi1>, vector<1x4x16x16xf32>
    %66 = arith.maximumf %61, %65 : vector<1x4x16x16xf32>
    %67 = arith.cmpf oeq, %1, %66 : vector<1x4x16x16xf32>
    %cst_16 = arith.constant 2.000000e+00 : f32
    %68 = vector.broadcast %cst_16 : f32 to vector<1x4x16x16xf32>
    %69 = arith.mulf %68, %1 : vector<1x4x16x16xf32>
    %70 = arith.subf %5, %69 : vector<1x4x16x16xf32>
    %71 = arith.addf %70, %6 : vector<1x4x16x16xf32>
    %cst_17 = arith.constant 2.000000e+00 : f32
    %72 = vector.broadcast %cst_17 : f32 to vector<1x4x16x16xf32>
    %73 = arith.mulf %72, %1 : vector<1x4x16x16xf32>
    %74 = arith.subf %7, %73 : vector<1x4x16x16xf32>
    %75 = arith.addf %74, %8 : vector<1x4x16x16xf32>
    %76 = arith.subf %9, %10 : vector<1x4x16x16xf32>
    %77 = arith.subf %76, %11 : vector<1x4x16x16xf32>
    %78 = arith.addf %77, %12 : vector<1x4x16x16xf32>
    %cst_18 = arith.constant 2.500000e-01 : f32
    %79 = vector.broadcast %cst_18 : f32 to vector<1x4x16x16xf32>
    %80 = arith.mulf %79, %78 : vector<1x4x16x16xf32>
    %81 = arith.mulf %71, %75 : vector<1x4x16x16xf32>
    %82 = arith.mulf %80, %80 : vector<1x4x16x16xf32>
    %83 = arith.subf %81, %82 : vector<1x4x16x16xf32>
    %84 = arith.addf %71, %75 : vector<1x4x16x16xf32>
    %85 = arith.mulf %84, %84 : vector<1x4x16x16xf32>
    %cst_19 = arith.constant 7.1999998 : f32
    %86 = vector.broadcast %cst_19 : f32 to vector<1x4x16x16xf32>
    %87 = arith.mulf %86, %83 : vector<1x4x16x16xf32>
    %88 = arith.cmpf ole, %85, %87 : vector<1x4x16x16xf32>
    %cst_20 = arith.constant 0.000000e+00 : f32
    %89 = vector.broadcast %cst_20 : f32 to vector<1x4x16x16xf32>
    %90 = arith.cmpf ogt, %83, %89 : vector<1x4x16x16xf32>
    %91 = arith.andi %88, %90 : vector<1x4x16x16xi1>
    %92 = arith.andi %67, %91 : vector<1x4x16x16xi1>
    %93 = arith.andi %4, %92 : vector<1x4x16x16xi1>
    %94 = arith.extui %93 : vector<1x4x16x16xi1> to vector<1x4x16x16xi8>
    %c0_21 = arith.constant 0 : index
    %c0_22 = arith.constant 0 : index
    %c0_23 = arith.constant 0 : index
    %c0_24 = arith.constant 0 : index
    %95 = vector.load %arg4[%c0_21, %c0_22, %c0_23, %c0_24] : memref<1x4x16x16xi8, #tpu.memory_space<vmem>>, vector<1x4x16x16xi8>
    tpu.vector_store %arg4[%c0_21, %c0_22, %c0_23, %c0_24], %94 {strides = array<i32>} : memref<1x4x16x16xi8, #tpu.memory_space<vmem>>, vector<1x4x16x16xi8>,
    return
  }
  func.func @transform_0(%arg0: i32, %arg1: i32) -> (i32, i32, i32, i32) {
    %c0_i32 = arith.constant 0 : i32
    %c0_i32_0 = arith.constant 0 : i32
    %c0_i32_1 = arith.constant 0 : i32
    return %arg0, %arg1, %c0_i32, %c0_i32_0 : i32, i32, i32, i32
  }
  func.func @transform_1(%arg0: i32, %arg1: i32) -> (i32, i32, i32, i32) {
    %c0_i32 = arith.constant 0 : i32
    %c0_i32_0 = arith.constant 0 : i32
    %c0_i32_1 = arith.constant 0 : i32
    %c0_i32_2 = arith.constant 0 : i32
    return %arg0, %c0_i32, %c0_i32_0, %c0_i32_1 : i32, i32, i32, i32
  }
  func.func @transform_2(%arg0: i32, %arg1: i32) -> (i32, i32, i32, i32) {
    %c0_i32 = arith.constant 0 : i32
    %c0_i32_0 = arith.constant 0 : i32
    %c0_i32_1 = arith.constant 0 : i32
    return %arg0, %arg1, %c0_i32, %c0_i32_0 : i32, i32, i32, i32
  }
}

</mosaic_0001>

<llo_original>
// kernel: tpu_custom_call.1
$region0: #{tpu_custom_call.1}
  #allocation0 [shape = 'u32[]', space=smem, size = 0x4, offset = 0x4, fixed_abs, tag = 'smem constant byte address 0x4 - core index']
  #allocation1 [shape = 'u32[144,128]{1,0:T(1,128)}', space=vmem, size = 0x12000, scoped, tag = 'internal scratch']
  #allocation2 [shape = 'f32[1,4,18,18]{3,2,1,0:T(8,128)}', space=vmem, size = 0xc000, scoped, tag = 'scratch operand']
  %s0 = inlined_call_operand.hbm [shape: f32[2,4,16,16], index: 0, kind: input, shape index: {}]
  %s1 = inlined_call_operand.vmem [shape: s32[2,4,16,16], index: 1, kind: output, shape index: {}]
  %s2 = sld [smem:[#allocation0]]
  $region41: #{tpu_custom_call.1} parent=0
    _
  %s4 = ssub.s32 1, %s2
  %s5 = scalar_select 0, %s4, %s2
  $region1: #{tpu_custom_call.1} parent=0
    #allocation3 [shape = 'u8[65536]{0}', space=vmem, size = 0x10000, scoped, tag = 'input window, operand 0']
    #allocation4 [shape = 's32[2]{0}', space=sflag, size = 0x8, scoped, tag = 'scoped memory for tpu_custom_call.1']
    %6 = vsyncpa [#allocation4], 0
    %s7 = scalar_lea.sflag [#allocation4], 1
    %8 = vsyncpa %s7, 0
    loop: start=0, step=1, limit=4
    $region2: #{tpu_custom_call.1} parent=1 // loop_pre_header
      _
    $region3: #{tpu_custom_call.1} parent=1 // loop_header
      %s10 = sphi 0, %s14
      %p11 = scmp.ge.s32.totalorder %s10, 4
      %s17 = sphi 0, %s29
      %s18 = sphi 0, %s25
      %s19 = sphi 0, %s17
      %s20 = sphi 0, %s18
      %s21 = sphi 0, %s19
      %s22 = sphi 0, %s20
      %s34 = sphi 0, %s36
      %s37 = sphi 0, %s34
      %s38 = sphi 0, %s37
      %s54 = sphi 0, %s38
      %s62 = sphi 0, %s64
      %s65 = sphi 0, %s62
      %s66 = sphi 0, %s65
      %s82 = sphi 0, %s66
    $region4: #{tpu_custom_call.1} parent=1 // loop_header_branch
      %13 = sbr.rel (%p11) target = $region8
    $region5: #{tpu_custom_call.1} parent=1 // loop_body
      %s15 = ssub.s32 %s10, 1
      %s16 = ssub.s32 %s10, 2
      %s23 = sadd.s32 1, %s18
      %p24 = scmp.ge.s32.totalorder %s23, 1
      %s25 = scalar_select %p24, 0, %s23
      %s26 = sadd.s32 1, %s17
      %s27 = scalar_select %p24, %s26, %s17
      %p28 = scmp.ge.s32.totalorder %s27, 2
      %s29 = scalar_select %p28, 0, %s27
      %s30 = ssub.s32 %s17, %s29
      %s31 = ssub.s32 %s18, %s25
      %s32 = sor.u32 %s30, %s31
      %p33 = scmp.eq.s32.totalorder %s32, 0
      %s35 = sadd.s32 %s34, 1
      %s36 = scalar_select %p33, %s34, %s35
      %p39 = pneg %p33
      %p40 = scmp.eq.s32.totalorder %s10, 1
      %p41 = por %p39, %p40
      %p42 = scmp.ne.s32.totalorder %s34, %s37
      %p43 = scmp.eq.s32.totalorder %s10, 0
      %p44 = por %p42, %p43
      %p45 = scmp.ne.s32.totalorder %s34, %s37
      %p46 = scmp.eq.s32.totalorder %s15, 1
      %p47 = por %p45, %p46
      %p48 = scmp.ne.s32.totalorder %s37, %s38
      %p49 = scmp.eq.s32.totalorder %s15, 0
      %p50 = por %p48, %p49
      %p51 = scmp.ne.s32.totalorder %s37, %s38
      %p52 = scmp.eq.s32.totalorder %s16, 1
      %p53 = por %p51, %p52
      %p55 = scmp.ne.s32.totalorder %s38, %s54
      %p56 = scmp.eq.s32.totalorder %s16, 0
      %p57 = por %p55, %p56
      %s58 = ssub.s32 %s17, %s29
      %s59 = ssub.s32 %s18, %s25
      %s60 = sor.u32 %s58, %s59
      %p61 = scmp.eq.s32.totalorder %s60, 0
      %s63 = sadd.s32 %s62, 1
      %s64 = scalar_select %p61, %s62, %s63
      %p67 = pneg %p61
      %p68 = scmp.eq.s32.totalorder %s10, 1
      %p69 = por %p67, %p68
      %p70 = scmp.ne.s32.totalorder %s62, %s65
      %p71 = scmp.eq.s32.totalorder %s10, 0
      %p72 = por %p70, %p71
      %p73 = scmp.ne.s32.totalorder %s62, %s65
      %p74 = scmp.eq.s32.totalorder %s15, 1
      %p75 = por %p73, %p74
      %p76 = scmp.ne.s32.totalorder %s65, %s66
      %p77 = scmp.eq.s32.totalorder %s15, 0
      %p78 = por %p76, %p77
      %p79 = scmp.ne.s32.totalorder %s65, %s66
      %p80 = scmp.eq.s32.totalorder %s16, 1
      %p81 = por %p79, %p80
      %p83 = scmp.ne.s32.totalorder %s66, %s82
      %p84 = scmp.eq.s32.totalorder %s16, 0
      %p85 = por %p83, %p84
      %p86 = scmp.le.s32.totalorder 1, %s10
      %p87 = scmp.lt.s32.totalorder %s10, 3
      %p88 = pnand %p86, %p87
      %p89 = pneg %p88
      // Predicated region
      $region9: #{tpu_custom_call.1} parent=5 // pred_check
        _
      $region10: #{tpu_custom_call.1} parent=5 // pred_check_branch
        %91 = sbr.rel (%p88) target = $region12
      $region11: #{tpu_custom_call.1} parent=5 // pred_region
        %s92 = ssub.s32 %s10, 1
      $region12: #{tpu_custom_call.1} parent=5 // pred_fallthru
        _
      %p93 = scmp.lt.s32.totalorder %s10, 2
      // Predicated region
      $region13: #{tpu_custom_call.1} parent=5 // pred_check
        %p94 = pneg %p93
      $region14: #{tpu_custom_call.1} parent=5 // pred_check_branch
        %96 = sbr.rel (%p94) target = $region16
      $region15: #{tpu_custom_call.1} parent=5 // pred_region
        // Predicated region
        $region17: #{tpu_custom_call.1} parent=15 // pred_check
          %p97 = pneg %p44
        $region18: #{tpu_custom_call.1} parent=15 // pred_check_branch
          %99 = sbr.rel (%p97) target = $region20
        $region19: #{tpu_custom_call.1} parent=15 // pred_region
          %s100 = sand.u32 %s34, 1
          %s101 = scalar_lea.sflag [#allocation4], %s100
          %s102 = sand.u32 %s34, 1
          %s103 = smul.addr %s102, 64
          %s104 = scalar_lea.vmem [#allocation3], %s103
          %s105 = smul.u32 4, %s18
          %s107 = ssub.s32 1024, 1024
          %108 = vsyncadd %s101, %s107
          %s109 = smul.addr %s105, 2
          %s110 = smul.addr %s17, 8
          %s111 = sadd.s32 %s109, %s110
          %s112 = smul.addr %s111, 128
          %s113 = scalar_lea.hbm %s0, %s112
          %s114 = sshll.u32 %s104, 4
          %s115 = int_to_ptr.vmem [resolvable:$true] %s114
          %120 = dma.hbm_to_vmem [thread:$0]  %s113, 1024, %s115, %s101, 128, 128, 8
        $region20: #{tpu_custom_call.1} parent=15 // pred_fallthru
          _
      $region16: #{tpu_custom_call.1} parent=5 // pred_fallthru
        _
      %p121 = scmp.le.s32.totalorder 1, %s10
      %p122 = scmp.lt.s32.totalorder %s10, 3
      %p123 = pnand %p121, %p122
      %p124 = pneg %p123
      // Predicated region
      $region21: #{tpu_custom_call.1} parent=5 // pred_check
        _
      $region22: #{tpu_custom_call.1} parent=5 // pred_check_branch
        %126 = sbr.rel (%p123) target = $region24
      $region23: #{tpu_custom_call.1} parent=5 // pred_region
        %s127 = ssub.s32 %s10, 1
        %s128 = sand.u32 %s37, 1
        %s129 = scalar_lea.sflag [#allocation4], %s128
        %s130 = sand.u32 %s37, 1
        %s131 = smul.addr %s130, 64
        %s132 = scalar_lea.vmem [#allocation3], %s131
        // Predicated region
        $region25: #{tpu_custom_call.1} parent=23 // pred_check
          %p133 = pneg %p50
        $region26: #{tpu_custom_call.1} parent=23 // pred_check_branch
          %135 = sbr.rel (%p133) target = $region28
        $region27: #{tpu_custom_call.1} parent=23 // pred_region
          %136 = dma.done %s129, 1024
        $region28: #{tpu_custom_call.1} parent=23 // pred_fallthru
          _
        %s137 = sand.u32 %s37, 1
        %s138 = scalar_lea.sflag [#allocation4], %s137
        %s139 = sand.u32 %s37, 1
        %s140 = smul.addr %s139, 64
        %s141 = scalar_lea.vmem [#allocation3], %s140
        %p142 = pneg %p50
        %p143 = pneg %p47
        %p144 = pneg %p78
        %p145 = pneg %p75
        %s146 = smul.u32 4, %s20
        %p147 = scmp.lt.s32.totalorder %s19, 1
        %s148 = scalar_select %p147, %s19, 1
        %p149 = scmp.lt.s32.totalorder %s146, 3
        %s150 = scalar_select %p149, %s146, 3
        %s151 = smul.addr %s150, 2
        %s152 = smul.addr %s148, 8
        %s153 = sadd.s32 %s151, %s152
        %s154 = smul.addr %s153, 8
        %s155 = scalar_lea.vmem %s1, %s154
        %s156 = smul.u32 4, %s20
        %s157 = smul.u32 4, %s20
        %p158 = scmp.lt.s32.totalorder %s19, 1
        %s159 = scalar_select %p158, %s19, 1
        %p160 = scmp.lt.s32.totalorder %s157, 3
        %s161 = scalar_select %p160, %s157, 3
        %s162 = smul.addr %s161, 2
        %s163 = smul.addr %s159, 8
        %s164 = sadd.s32 %s162, %s163
        %s165 = smul.addr %s164, 8
        %s166 = scalar_lea.vmem %s1, %s165
        %s167 = smul.u32 4, %s20
        %v168 = vld [vmem:[%s132] sm:$0xff]
        %v169 = vld [vmem:[%s132 + $0x8] sm:$0xff]
        %v170 = vld [vmem:[%s132 + $0x10] sm:$0xff]
        %v171 = vld [vmem:[%s132 + $0x18] sm:$0xff]
        %v172 = vld [vmem:[%s132 + $0x20] sm:$0xff]
        %v173 = vld [vmem:[%s132 + $0x28] sm:$0xff]
        %v174 = vld [vmem:[%s132 + $0x30] sm:$0xff]
        %v175 = vld [vmem:[%s132 + $0x38] sm:$0xff]
        %vm176 = vcmask 146432
        %177 = vst.msk [vmem:[#allocation2] sm:$0xff] %vm176, 0.0
        %178 = vst.msk [vmem:[#allocation2 + $0x8] sm:$0xff] %vm176, 0.0
        %vm179 = vcmask 140288
        %180 = vst.msk [vmem:[#allocation2 + $0x10] sm:$0x3] %vm179, 0.0
        %181 = vst.msk [vmem:[#allocation2 + $0x18] sm:$0xff] %vm176, 0.0
        %182 = vst.msk [vmem:[#allocation2 + $0x20] sm:$0xff] %vm176, 0.0
        %183 = vst.msk [vmem:[#allocation2 + $0x28] sm:$0x3] %vm179, 0.0
        %184 = vst.msk [vmem:[#allocation2 + $0x30] sm:$0xff] %vm176, 0.0
        %185 = vst.msk [vmem:[#allocation2 + $0x38] sm:$0xff] %vm176, 0.0
        %186 = vst.msk [vmem:[#allocation2 + $0x40] sm:$0x3] %vm179, 0.0
        %187 = vst.msk [vmem:[#allocation2 + $0x48] sm:$0xff] %vm176, 0.0
        %188 = vst.msk [vmem:[#allocation2 + $0x50] sm:$0xff] %vm176, 0.0
        %189 = vst.msk [vmem:[#allocation2 + $0x58] sm:$0x3] %vm179, 0.0
        %198 = vrot.lane.b32.xlu0 %v168, 1
        %v199 = vpop.permute.xlu0 %198
        %200 = vrot.lane.b32.xlu0 %v169, 1
        %v201 = vpop.permute.xlu0 %200
        %202 = vrot.lane.b32.xlu0 %v170, 1
        %v203 = vpop.permute.xlu0 %202
        %204 = vrot.lane.b32.xlu0 %v171, 1
        %v205 = vpop.permute.xlu0 %204
        %206 = vrot.lane.b32.xlu0 %v172, 1
        %v207 = vpop.permute.xlu0 %206
        %208 = vrot.lane.b32.xlu0 %v173, 1
        %v209 = vpop.permute.xlu0 %208
        %210 = vrot.lane.b32.xlu0 %v174, 1
        %v211 = vpop.permute.xlu0 %210
        %212 = vrot.lane.b32.xlu0 %v175, 1
        %v213 = vpop.permute.xlu0 %212
        %vm222 = vcmask 138248
        %223 = vst.msk [vmem:[#allocation2 + $0x1] sm:$0xff] %vm222, %v199
        %224 = vst.msk [vmem:[#allocation2 + $0x9] sm:$0xff] %vm222, %v201
        %225 = vst.msk [vmem:[#allocation2 + $0x19] sm:$0xff] %vm222, %v203
        %226 = vst.msk [vmem:[#allocation2 + $0x21] sm:$0xff] %vm222, %v205
        %227 = vst.msk [vmem:[#allocation2 + $0x31] sm:$0xff] %vm222, %v207
        %228 = vst.msk [vmem:[#allocation2 + $0x39] sm:$0xff] %vm222, %v209
        %229 = vst.msk [vmem:[#allocation2 + $0x49] sm:$0xff] %vm222, %v211
        %230 = vst.msk [vmem:[#allocation2 + $0x51] sm:$0xff] %vm222, %v213
        %v231 = vld [vmem:[#allocation2] sm:$0xff]
        %v232 = vld [vmem:[#allocation2 + $0x8] sm:$0xff]
        %v233 = vld [vmem:[#allocation2 + $0x10] sm:$0x3]
        %v234 = vld [vmem:[#allocation2 + $0x18] sm:$0xff]
        %v235 = vld [vmem:[#allocation2 + $0x20] sm:$0xff]
        %v236 = vld [vmem:[#allocation2 + $0x28] sm:$0x3]
        %v237 = vld [vmem:[#allocation2 + $0x30] sm:$0xff]
        %v238 = vld [vmem:[#allocation2 + $0x38] sm:$0xff]
        %v239 = vld [vmem:[#allocation2 + $0x40] sm:$0x3]
        %v240 = vld [vmem:[#allocation2 + $0x48] sm:$0xff]
        %v241 = vld [vmem:[#allocation2 + $0x50] sm:$0xff]
        %v242 = vld [vmem:[#allocation2 + $0x58] sm:$0x3]
        %vm243 = vcmask 130048
        %v244 = vsel %vm243, %v168, -inf
        %v245 = vsel %vm243, %v170, -inf
        %v246 = vsel %vm243, %v172, -inf
        %v247 = vmax.f32 %v244, %v246
        %v248 = vsel %vm243, %v174, -inf
        %v249 = vmax.f32 %v245, %v248
        %v250 = vmax.f32 %v247, %v249
        %v251 = vsel %vm243, %v169, -inf
        %v252 = vsel %vm243, %v171, -inf
        %v253 = vsel %vm243, %v173, -inf
        %v254 = vmax.f32 %v251, %v253
        %v255 = vsel %vm243, %v175, -inf
        %v256 = vmax.f32 %v252, %v255
        %v257 = vmax.f32 %v254, %v256
        %vm258 = vcmp.eq.f32.partialorder %v168, %v250
        %vm259 = vcmp.eq.f32.partialorder %v169, %v257
        %vm260 = vcmp.eq.f32.partialorder %v170, %v250
        %vm261 = vcmp.eq.f32.partialorder %v171, %v257
        %vm262 = vcmp.eq.f32.partialorder %v172, %v250
        %vm263 = vcmp.eq.f32.partialorder %v173, %v257
        %vm264 = vcmp.eq.f32.partialorder %v174, %v250
        %vm265 = vcmp.eq.f32.partialorder %v175, %v257
        %v266 = vlaneseq
        %v267 = vshrl.u32 %v266, 7
        %v268 = vadd.s32 %v267, 8
        %v269 = vlaneseq
        %v270 = vand.u32 %v269, 127
        %vm271 = vcmp.eq.s32.totalorder %v267, 0
        %vm272 = vcmp.eq.s32.totalorder %v268, 0
        %vm273 = vcmp.eq.s32.totalorder %v267, 15
        %vm274 = vcmp.eq.s32.totalorder %v268, 15
        %vm275 = vcmp.eq.s32.totalorder %v270, 0
        %vm276 = vcmp.eq.s32.totalorder %v270, 15
        %vm277 = vmor %vm271, %vm275
        %vm278 = vmor %vm272, %vm275
        %vm279 = vmor %vm271, %vm276
        %vm280 = vmor %vm272, %vm276
        %vm281 = vmor %vm273, %vm275
        %vm282 = vmor %vm274, %vm275
        %vm283 = vmor %vm273, %vm276
        %vm284 = vmor %vm274, %vm276
        %v285 = vsel %vm271, 1, 0
        %v286 = vsel %vm272, 1, 0
        %vm287 = vcmp.eq.s32.totalorder %v285, 1
        %vm288 = vcmp.eq.s32.totalorder %v286, 1
        %v289 = vsel %vm287, -inf, %v231
        %v290 = vsel %vm288, -inf, %v232
        %v291 = vsel %vm287, -inf, %v234
        %v292 = vsel %vm288, -inf, %v235
        %v293 = vsel %vm287, -inf, %v237
        %v294 = vsel %vm288, -inf, %v238
        %v295 = vsel %vm287, -inf, %v240
        %v296 = vsel %vm288, -inf, %v241
        %305 = vrot.lane.b32.xlu0 %v289, 127
        %v306 = vpop.permute.xlu0 %305
        %307 = vrot.lane.b32.xlu0 %v290, 127
        %v308 = vpop.permute.xlu0 %307
        %309 = vrot.lane.b32.xlu0 %v291, 127
        %v310 = vpop.permute.xlu0 %309
        %311 = vrot.lane.b32.xlu0 %v292, 127
        %v312 = vpop.permute.xlu0 %311
        %313 = vrot.lane.b32.xlu0 %v293, 127
        %v314 = vpop.permute.xlu0 %313
        %315 = vrot.lane.b32.xlu0 %v294, 127
        %v316 = vpop.permute.xlu0 %315
        %317 = vrot.lane.b32.xlu0 %v295, 127
        %v318 = vpop.permute.xlu0 %317
        %319 = vrot.lane.b32.xlu0 %v296, 127
        %v320 = vpop.permute.xlu0 %319
        %v329 = vmax.f32 %v168, %v306
        %v330 = vmax.f32 %v169, %v308
        %v331 = vmax.f32 %v170, %v310
        %v332 = vmax.f32 %v171, %v312
        %v333 = vmax.f32 %v172, %v314
        %v334 = vmax.f32 %v173, %v316
        %v335 = vmax.f32 %v174, %v318
        %v336 = vmax.f32 %v175, %v320
        %v337 = vsel %vm273, 1, 0
        %v338 = vsel %vm274, 1, 0
        %vm339 = vcmp.eq.s32.totalorder %v337, 1
        %vm340 = vcmp.eq.s32.totalorder %v338, 1
        %vm353 = vcmask 1045504
        %v354 = vrot.slane %v231, 2
        %v355 = vrot.slane %v232, 2
        %v356 = vsel %vm353, %v354, %v355
        %v357 = vrot.slane %v233, 2
        %v358 = vsel %vm353, %v355, %v357
        %v359 = vrot.slane %v234, 2
        %v360 = vrot.slane %v235, 2
        %v361 = vsel %vm353, %v359, %v360
        %v362 = vrot.slane %v236, 2
        %v363 = vsel %vm353, %v360, %v362
        %v364 = vrot.slane %v237, 2
        %v365 = vrot.slane %v238, 2
        %v366 = vsel %vm353, %v364, %v365
        %v367 = vrot.slane %v239, 2
        %v368 = vsel %vm353, %v365, %v367
        %v369 = vrot.slane %v240, 2
        %v370 = vrot.slane %v241, 2
        %v371 = vsel %vm353, %v369, %v370
        %v372 = vrot.slane %v242, 2
        %v373 = vsel %vm353, %v370, %v372
        %374 = vrot.lane.b32.xlu0 %v356, 127
        %v375 = vpop.permute.xlu0 %374
        %376 = vrot.lane.b32.xlu0 %v358, 127
        %v377 = vpop.permute.xlu0 %376
        %378 = vrot.lane.b32.xlu0 %v361, 127
        %v379 = vpop.permute.xlu0 %378
        %380 = vrot.lane.b32.xlu0 %v363, 127
        %v381 = vpop.permute.xlu0 %380
        %382 = vrot.lane.b32.xlu0 %v366, 127
        %v383 = vpop.permute.xlu0 %382
        %384 = vrot.lane.b32.xlu0 %v368, 127
        %v385 = vpop.permute.xlu0 %384
        %386 = vrot.lane.b32.xlu0 %v371, 127
        %v387 = vpop.permute.xlu0 %386
        %388 = vrot.lane.b32.xlu0 %v373, 127
        %v389 = vpop.permute.xlu0 %388
        %v398 = vsel %vm339, -inf, %v375
        %v399 = vsel %vm340, -inf, %v377
        %v400 = vsel %vm339, -inf, %v379
        %v401 = vsel %vm340, -inf, %v381
        %v402 = vsel %vm339, -inf, %v383
        %v403 = vsel %vm340, -inf, %v385
        %v404 = vsel %vm339, -inf, %v387
        %v405 = vsel %vm340, -inf, %v389
        %v406 = vmax.f32 %v329, %v398
        %v407 = vmax.f32 %v330, %v399
        %v408 = vmax.f32 %v331, %v400
        %v409 = vmax.f32 %v332, %v401
        %v410 = vmax.f32 %v333, %v402
        %v411 = vmax.f32 %v334, %v403
        %v412 = vmax.f32 %v335, %v404
        %v413 = vmax.f32 %v336, %v405
        %v414 = vsel %vm275, 1, 0
        %vm415 = vcmp.eq.s32.totalorder %v414, 1
        %v416 = vsel %vm415, -inf, %v231
        %v417 = vsel %vm415, -inf, %v232
        %v418 = vsel %vm415, -inf, %v233
        %v419 = vsel %vm415, -inf, %v234
        %v420 = vsel %vm415, -inf, %v235
        %v421 = vsel %vm415, -inf, %v236
        %v422 = vsel %vm415, -inf, %v237
        %v423 = vsel %vm415, -inf, %v238
        %v424 = vsel %vm415, -inf, %v239
        %v425 = vsel %vm415, -inf, %v240
        %v426 = vsel %vm415, -inf, %v241
        %v427 = vsel %vm415, -inf, %v242
        %vm440 = vcmask 1046528
        %v441 = vrot.slane %v416, 1
        %v442 = vrot.slane %v417, 1
        %v443 = vsel %vm440, %v441, %v442
        %v444 = vrot.slane %v418, 1
        %v445 = vsel %vm440, %v442, %v444
        %v446 = vrot.slane %v419, 1
        %v447 = vrot.slane %v420, 1
        %v448 = vsel %vm440, %v446, %v447
        %v449 = vrot.slane %v421, 1
        %v450 = vsel %vm440, %v447, %v449
        %v451 = vrot.slane %v422, 1
        %v452 = vrot.slane %v423, 1
        %v453 = vsel %vm440, %v451, %v452
        %v454 = vrot.slane %v424, 1
        %v455 = vsel %vm440, %v452, %v454
        %v456 = vrot.slane %v425, 1
        %v457 = vrot.slane %v426, 1
        %v458 = vsel %vm440, %v456, %v457
        %v459 = vrot.slane %v427, 1
        %v460 = vsel %vm440, %v457, %v459
        %v469 = vmax.f32 %v406, %v443
        %v470 = vmax.f32 %v407, %v445
        %v471 = vmax.f32 %v408, %v448
        %v472 = vmax.f32 %v409, %v450
        %v473 = vmax.f32 %v410, %v453
        %v474 = vmax.f32 %v411, %v455
        %v475 = vmax.f32 %v412, %v458
        %v476 = vmax.f32 %v413, %v460
        %v477 = vsel %vm276, 1, 0
        %vm478 = vcmp.eq.s32.totalorder %v477, 1
        %v479 = vrot.slane %v231, 1
        %v480 = vrot.slane %v232, 1
        %v481 = vsel %vm440, %v479, %v480
        %v482 = vrot.slane %v233, 1
        %v483 = vsel %vm440, %v480, %v482
        %v484 = vrot.slane %v234, 1
        %v485 = vrot.slane %v235, 1
        %v486 = vsel %vm440, %v484, %v485
        %v487 = vrot.slane %v236, 1
        %v488 = vsel %vm440, %v485, %v487
        %v489 = vrot.slane %v237, 1
        %v490 = vrot.slane %v238, 1
        %v491 = vsel %vm440, %v489, %v490
        %v492 = vrot.slane %v239, 1
        %v493 = vsel %vm440, %v490, %v492
        %v494 = vrot.slane %v240, 1
        %v495 = vrot.slane %v241, 1
        %v496 = vsel %vm440, %v494, %v495
        %v497 = vrot.slane %v242, 1
        %v498 = vsel %vm440, %v495, %v497
        %499 = vrot.lane.b32.xlu0 %v481, 126
        %v500 = vpop.permute.xlu0 %499
        %501 = vrot.lane.b32.xlu0 %v483, 126
        %v502 = vpop.permute.xlu0 %501
        %503 = vrot.lane.b32.xlu0 %v486, 126
        %v504 = vpop.permute.xlu0 %503
        %505 = vrot.lane.b32.xlu0 %v488, 126
        %v506 = vpop.permute.xlu0 %505
        %507 = vrot.lane.b32.xlu0 %v491, 126
        %v508 = vpop.permute.xlu0 %507
        %509 = vrot.lane.b32.xlu0 %v493, 126
        %v510 = vpop.permute.xlu0 %509
        %511 = vrot.lane.b32.xlu0 %v496, 126
        %v512 = vpop.permute.xlu0 %511
        %513 = vrot.lane.b32.xlu0 %v498, 126
        %v514 = vpop.permute.xlu0 %513
        %v523 = vsel %vm478, -inf, %v500
        %v524 = vsel %vm478, -inf, %v502
        %v525 = vsel %vm478, -inf, %v504
        %v526 = vsel %vm478, -inf, %v506
        %v527 = vsel %vm478, -inf, %v508
        %v528 = vsel %vm478, -inf, %v510
        %v529 = vsel %vm478, -inf, %v512
        %v530 = vsel %vm478, -inf, %v514
        %v531 = vmax.f32 %v469, %v523
        %v532 = vmax.f32 %v470, %v524
        %v533 = vmax.f32 %v471, %v525
        %v534 = vmax.f32 %v472, %v526
        %v535 = vmax.f32 %v473, %v527
        %v536 = vmax.f32 %v474, %v528
        %v537 = vmax.f32 %v475, %v529
        %v538 = vmax.f32 %v476, %v530
        %v539 = vsel %vm277, 1, 0
        %v540 = vsel %vm278, 1, 0
        %vm541 = vcmp.eq.s32.totalorder %v539, 1
        %vm542 = vcmp.eq.s32.totalorder %v540, 1
        %v543 = vsel %vm541, -inf, %v231
        %v544 = vsel %vm542, -inf, %v232
        %v545 = vsel %vm541, -inf, %v234
        %v546 = vsel %vm542, -inf, %v235
        %v547 = vsel %vm541, -inf, %v237
        %v548 = vsel %vm542, -inf, %v238
        %v549 = vsel %vm541, -inf, %v240
        %v550 = vsel %vm542, -inf, %v241
        %v551 = vmax.f32 %v531, %v543
        %v552 = vmax.f32 %v532, %v544
        %v553 = vmax.f32 %v533, %v545
        %v554 = vmax.f32 %v534, %v546
        %v555 = vmax.f32 %v535, %v547
        %v556 = vmax.f32 %v536, %v548
        %v557 = vmax.f32 %v537, %v549
        %v558 = vmax.f32 %v538, %v550
        %v559 = vsel %vm279, 1, 0
        %v560 = vsel %vm280, 1, 0
        %vm561 = vcmp.eq.s32.totalorder %v559, 1
        %vm562 = vcmp.eq.s32.totalorder %v560, 1
        %563 = vrot.lane.b32.xlu0 %v231, 126
        %v564 = vpop.permute.xlu0 %563
        %565 = vrot.lane.b32.xlu0 %v232, 126
        %v566 = vpop.permute.xlu0 %565
        %567 = vrot.lane.b32.xlu0 %v234, 126
        %v568 = vpop.permute.xlu0 %567
        %569 = vrot.lane.b32.xlu0 %v235, 126
        %v570 = vpop.permute.xlu0 %569
        %571 = vrot.lane.b32.xlu0 %v237, 126
        %v572 = vpop.permute.xlu0 %571
        %573 = vrot.lane.b32.xlu0 %v238, 126
        %v574 = vpop.permute.xlu0 %573
        %575 = vrot.lane.b32.xlu0 %v240, 126
        %v576 = vpop.permute.xlu0 %575
        %577 = vrot.lane.b32.xlu0 %v241, 126
        %v578 = vpop.permute.xlu0 %577
        %v587 = vsel %vm561, -inf, %v564
        %v588 = vsel %vm562, -inf, %v566
        %v589 = vsel %vm561, -inf, %v568
        %v590 = vsel %vm562, -inf, %v570
        %v591 = vsel %vm561, -inf, %v572
        %v592 = vsel %vm562, -inf, %v574
        %v593 = vsel %vm561, -inf, %v576
        %v594 = vsel %vm562, -inf, %v578
        %v595 = vmax.f32 %v551, %v587
        %v596 = vmax.f32 %v552, %v588
        %v597 = vmax.f32 %v553, %v589
        %v598 = vmax.f32 %v554, %v590
        %v599 = vmax.f32 %v555, %v591
        %v600 = vmax.f32 %v556, %v592
        %v601 = vmax.f32 %v557, %v593
        %v602 = vmax.f32 %v558, %v594
        %v603 = vsel %vm281, 1, 0
        %v604 = vsel %vm282, 1, 0
        %vm605 = vcmp.eq.s32.totalorder %v603, 1
        %vm606 = vcmp.eq.s32.totalorder %v604, 1
        %v615 = vsel %vm605, -inf, %v356
        %v616 = vsel %vm606, -inf, %v358
        %v617 = vsel %vm605, -inf, %v361
        %v618 = vsel %vm606, -inf, %v363
        %v619 = vsel %vm605, -inf, %v366
        %v620 = vsel %vm606, -inf, %v368
        %v621 = vsel %vm605, -inf, %v371
        %v622 = vsel %vm606, -inf, %v373
        %v623 = vmax.f32 %v595, %v615
        %v624 = vmax.f32 %v596, %v616
        %v625 = vmax.f32 %v597, %v617
        %v626 = vmax.f32 %v598, %v618
        %v627 = vmax.f32 %v599, %v619
        %v628 = vmax.f32 %v600, %v620
        %v629 = vmax.f32 %v601, %v621
        %v630 = vmax.f32 %v602, %v622
        %v631 = vsel %vm283, 1, 0
        %v632 = vsel %vm284, 1, 0
        %vm633 = vcmp.eq.s32.totalorder %v631, 1
        %vm634 = vcmp.eq.s32.totalorder %v632, 1
        %635 = vrot.lane.b32.xlu0 %v356, 126
        %v636 = vpop.permute.xlu0 %635
        %637 = vrot.lane.b32.xlu0 %v358, 126
        %v638 = vpop.permute.xlu0 %637
        %639 = vrot.lane.b32.xlu0 %v361, 126
        %v640 = vpop.permute.xlu0 %639
        %641 = vrot.lane.b32.xlu0 %v363, 126
        %v642 = vpop.permute.xlu0 %641
        %643 = vrot.lane.b32.xlu0 %v366, 126
        %v644 = vpop.permute.xlu0 %643
        %645 = vrot.lane.b32.xlu0 %v368, 126
        %v646 = vpop.permute.xlu0 %645
        %647 = vrot.lane.b32.xlu0 %v371, 126
        %v648 = vpop.permute.xlu0 %647
        %649 = vrot.lane.b32.xlu0 %v373, 126
        %v650 = vpop.permute.xlu0 %649
        %v659 = vsel %vm633, -inf, %v636
        %v660 = vsel %vm634, -inf, %v638
        %v661 = vsel %vm633, -inf, %v640
        %v662 = vsel %vm634, -inf, %v642
        %v663 = vsel %vm633, -inf, %v644
        %v664 = vsel %vm634, -inf, %v646
        %v665 = vsel %vm633, -inf, %v648
        %v666 = vsel %vm634, -inf, %v650
        %v667 = vmax.f32 %v623, %v659
        %v668 = vmax.f32 %v624, %v660
        %v669 = vmax.f32 %v625, %v661
        %v670 = vmax.f32 %v626, %v662
        %v671 = vmax.f32 %v627, %v663
        %v672 = vmax.f32 %v628, %v664
        %v673 = vmax.f32 %v629, %v665
        %v674 = vmax.f32 %v630, %v666
        %vm675 = vcmp.eq.f32.partialorder %v168, %v667
        %vm676 = vcmp.eq.f32.partialorder %v169, %v668
        %vm677 = vcmp.eq.f32.partialorder %v170, %v669
        %vm678 = vcmp.eq.f32.partialorder %v171, %v670
        %vm679 = vcmp.eq.f32.partialorder %v172, %v671
        %vm680 = vcmp.eq.f32.partialorder %v173, %v672
        %vm681 = vcmp.eq.f32.partialorder %v174, %v673
        %vm682 = vcmp.eq.f32.partialorder %v175, %v674
        %v683 = vmul.f32 %v168, 2.0
        %v684 = vmul.f32 %v169, 2.0
        %v685 = vmul.f32 %v170, 2.0
        %v686 = vmul.f32 %v171, 2.0
        %v687 = vmul.f32 %v172, 2.0
        %v688 = vmul.f32 %v173, 2.0
        %v689 = vmul.f32 %v174, 2.0
        %v690 = vmul.f32 %v175, 2.0
        %699 = vrot.lane.b32.xlu0 %v683, 1
        %v700 = vpop.permute.xlu0 %699
        %701 = vrot.lane.b32.xlu0 %v684, 1
        %v702 = vpop.permute.xlu0 %701
        %703 = vrot.lane.b32.xlu0 %v685, 1
        %v704 = vpop.permute.xlu0 %703
        %705 = vrot.lane.b32.xlu0 %v686, 1
        %v706 = vpop.permute.xlu0 %705
        %707 = vrot.lane.b32.xlu0 %v687, 1
        %v708 = vpop.permute.xlu0 %707
        %709 = vrot.lane.b32.xlu0 %v688, 1
        %v710 = vpop.permute.xlu0 %709
        %711 = vrot.lane.b32.xlu0 %v689, 1
        %v712 = vpop.permute.xlu0 %711
        %713 = vrot.lane.b32.xlu0 %v690, 1
        %v714 = vpop.permute.xlu0 %713
        %v723 = vsub.f32 %v231, %v700
        %v724 = vsub.f32 %v232, %v702
        %v725 = vsub.f32 %v234, %v704
        %v726 = vsub.f32 %v235, %v706
        %v727 = vsub.f32 %v237, %v708
        %v728 = vsub.f32 %v238, %v710
        %v729 = vsub.f32 %v240, %v712
        %v730 = vsub.f32 %v241, %v714
        %v731 = vadd.f32 %v723, %v356
        %v732 = vadd.f32 %v724, %v358
        %v733 = vadd.f32 %v725, %v361
        %v734 = vadd.f32 %v726, %v363
        %v735 = vadd.f32 %v727, %v366
        %v736 = vadd.f32 %v728, %v368
        %v737 = vadd.f32 %v729, %v371
        %v738 = vadd.f32 %v730, %v373
        %vm739 = vcmask 1040384
        %v740 = vrot.slane %v683, 7
        %v741 = vrot.slane %v684, 7
        %v742 = vsel %vm739, %v740, %v741
        %v743 = vrot.slane %v685, 7
        %v744 = vrot.slane %v686, 7
        %v745 = vsel %vm739, %v743, %v744
        %v746 = vrot.slane %v687, 7
        %v747 = vrot.slane %v688, 7
        %v748 = vsel %vm739, %v746, %v747
        %v749 = vrot.slane %v689, 7
        %v750 = vrot.slane %v690, 7
        %v751 = vsel %vm739, %v749, %v750
        %v764 = vsub.f32 %v231, %v740
        %v765 = vsub.f32 %v232, %v742
        %v766 = vsub.f32 %v233, %v741
        %v767 = vsub.f32 %v234, %v743
        %v768 = vsub.f32 %v235, %v745
        %v769 = vsub.f32 %v236, %v744
        %v770 = vsub.f32 %v237, %v746
        %v771 = vsub.f32 %v238, %v748
        %v772 = vsub.f32 %v239, %v747
        %v773 = vsub.f32 %v240, %v749
        %v774 = vsub.f32 %v241, %v751
        %v775 = vsub.f32 %v242, %v750
        %776 = vrot.lane.b32.xlu0 %v233, 126
        %v777 = vpop.permute.xlu0 %776
        %778 = vrot.lane.b32.xlu0 %v236, 126
        %v779 = vpop.permute.xlu0 %778
        %780 = vrot.lane.b32.xlu0 %v239, 126
        %v781 = vpop.permute.xlu0 %780
        %782 = vrot.lane.b32.xlu0 %v242, 126
        %v783 = vpop.permute.xlu0 %782
        %v788 = vadd.f32 %v764, %v564
        %v789 = vadd.f32 %v765, %v566
        %v790 = vadd.f32 %v766, %v777
        %v791 = vadd.f32 %v767, %v568
        %v792 = vadd.f32 %v768, %v570
        %v793 = vadd.f32 %v769, %v779
        %v794 = vadd.f32 %v770, %v572
        %v795 = vadd.f32 %v771, %v574
        %v796 = vadd.f32 %v772, %v781
        %v797 = vadd.f32 %v773, %v576
        %v798 = vadd.f32 %v774, %v578
        %v799 = vadd.f32 %v775, %v783
        %v800 = vsub.f32 %v231, %v564
        %v801 = vsub.f32 %v232, %v566
        %v802 = vsub.f32 %v234, %v568
        %v803 = vsub.f32 %v235, %v570
        %v804 = vsub.f32 %v237, %v572
        %v805 = vsub.f32 %v238, %v574
        %v806 = vsub.f32 %v240, %v576
        %v807 = vsub.f32 %v241, %v578
        %v808 = vsub.f32 %v800, %v356
        %v809 = vsub.f32 %v801, %v358
        %v810 = vsub.f32 %v802, %v361
        %v811 = vsub.f32 %v803, %v363
        %v812 = vsub.f32 %v804, %v366
        %v813 = vsub.f32 %v805, %v368
        %v814 = vsub.f32 %v806, %v371
        %v815 = vsub.f32 %v807, %v373
        %v816 = vadd.f32 %v808, %v636
        %v817 = vadd.f32 %v809, %v638
        %v818 = vadd.f32 %v810, %v640
        %v819 = vadd.f32 %v811, %v642
        %v820 = vadd.f32 %v812, %v644
        %v821 = vadd.f32 %v813, %v646
        %v822 = vadd.f32 %v814, %v648
        %v823 = vadd.f32 %v815, %v650
        %v824 = vmul.f32 %v816, 0.25
        %v825 = vmul.f32 %v817, 0.25
        %v826 = vmul.f32 %v818, 0.25
        %v827 = vmul.f32 %v819, 0.25
        %v828 = vmul.f32 %v820, 0.25
        %v829 = vmul.f32 %v821, 0.25
        %v830 = vmul.f32 %v822, 0.25
        %v831 = vmul.f32 %v823, 0.25
        %v844 = vrot.slane %v788, 1
        %v845 = vrot.slane %v789, 1
        %v846 = vsel %vm440, %v844, %v845
        %v847 = vrot.slane %v790, 1
        %v848 = vsel %vm440, %v845, %v847
        %v849 = vrot.slane %v791, 1
        %v850 = vrot.slane %v792, 1
        %v851 = vsel %vm440, %v849, %v850
        %v852 = vrot.slane %v793, 1
        %v853 = vsel %vm440, %v850, %v852
        %v854 = vrot.slane %v794, 1
        %v855 = vrot.slane %v795, 1
        %v856 = vsel %vm440, %v854, %v855
        %v857 = vrot.slane %v796, 1
        %v858 = vsel %vm440, %v855, %v857
        %v859 = vrot.slane %v797, 1
        %v860 = vrot.slane %v798, 1
        %v861 = vsel %vm440, %v859, %v860
        %v862 = vrot.slane %v799, 1
        %v863 = vsel %vm440, %v860, %v862
        %864 = vrot.lane.b32.xlu0 %v846, 1
        %v865 = vpop.permute.xlu0 %864
        %866 = vrot.lane.b32.xlu0 %v848, 1
        %v867 = vpop.permute.xlu0 %866
        %868 = vrot.lane.b32.xlu0 %v851, 1
        %v869 = vpop.permute.xlu0 %868
        %870 = vrot.lane.b32.xlu0 %v853, 1
        %v871 = vpop.permute.xlu0 %870
        %872 = vrot.lane.b32.xlu0 %v856, 1
        %v873 = vpop.permute.xlu0 %872
        %874 = vrot.lane.b32.xlu0 %v858, 1
        %v875 = vpop.permute.xlu0 %874
        %876 = vrot.lane.b32.xlu0 %v861, 1
        %v877 = vpop.permute.xlu0 %876
        %878 = vrot.lane.b32.xlu0 %v863, 1
        %v879 = vpop.permute.xlu0 %878
        %v888 = vmul.f32 %v731, %v865
        %v889 = vmul.f32 %v732, %v867
        %v890 = vmul.f32 %v733, %v869
        %v891 = vmul.f32 %v734, %v871
        %v892 = vmul.f32 %v735, %v873
        %v893 = vmul.f32 %v736, %v875
        %v894 = vmul.f32 %v737, %v877
        %v895 = vmul.f32 %v738, %v879
        %v896 = vmul.f32 %v824, %v824
        %v897 = vmul.f32 %v825, %v825
        %v898 = vmul.f32 %v826, %v826
        %v899 = vmul.f32 %v827, %v827
        %v900 = vmul.f32 %v828, %v828
        %v901 = vmul.f32 %v829, %v829
        %v902 = vmul.f32 %v830, %v830
        %v903 = vmul.f32 %v831, %v831
        %912 = vrot.lane.b32.xlu0 %v896, 1
        %v913 = vpop.permute.xlu0 %912
        %914 = vrot.lane.b32.xlu0 %v897, 1
        %v915 = vpop.permute.xlu0 %914
        %916 = vrot.lane.b32.xlu0 %v898, 1
        %v917 = vpop.permute.xlu0 %916
        %918 = vrot.lane.b32.xlu0 %v899, 1
        %v919 = vpop.permute.xlu0 %918
        %920 = vrot.lane.b32.xlu0 %v900, 1
        %v921 = vpop.permute.xlu0 %920
        %922 = vrot.lane.b32.xlu0 %v901, 1
        %v923 = vpop.permute.xlu0 %922
        %924 = vrot.lane.b32.xlu0 %v902, 1
        %v925 = vpop.permute.xlu0 %924
        %926 = vrot.lane.b32.xlu0 %v903, 1
        %v927 = vpop.permute.xlu0 %926
        %v936 = vsub.f32 %v888, %v913
        %v937 = vsub.f32 %v889, %v915
        %v938 = vsub.f32 %v890, %v917
        %v939 = vsub.f32 %v891, %v919
        %v940 = vsub.f32 %v892, %v921
        %v941 = vsub.f32 %v893, %v923
        %v942 = vsub.f32 %v894, %v925
        %v943 = vsub.f32 %v895, %v927
        %v944 = vadd.f32 %v731, %v865
        %v945 = vadd.f32 %v732, %v867
        %v946 = vadd.f32 %v733, %v869
        %v947 = vadd.f32 %v734, %v871
        %v948 = vadd.f32 %v735, %v873
        %v949 = vadd.f32 %v736, %v875
        %v950 = vadd.f32 %v737, %v877
        %v951 = vadd.f32 %v738, %v879
        %v952 = vmul.f32 %v944, %v944
        %v953 = vmul.f32 %v945, %v945
        %v954 = vmul.f32 %v946, %v946
        %v955 = vmul.f32 %v947, %v947
        %v956 = vmul.f32 %v948, %v948
        %v957 = vmul.f32 %v949, %v949
        %v958 = vmul.f32 %v950, %v950
        %v959 = vmul.f32 %v951, %v951
        %v960 = vmul.f32 %v936, 7.2
        %v961 = vmul.f32 %v937, 7.2
        %v962 = vmul.f32 %v938, 7.2
        %v963 = vmul.f32 %v939, 7.2
        %v964 = vmul.f32 %v940, 7.2
        %v965 = vmul.f32 %v941, 7.2
        %v966 = vmul.f32 %v942, 7.2
        %v967 = vmul.f32 %v943, 7.2
        %vm968 = vcmp.le.f32.partialorder %v952, %v960
        %vm969 = vcmp.le.f32.partialorder %v953, %v961
        %vm970 = vcmp.le.f32.partialorder %v954, %v962
        %vm971 = vcmp.le.f32.partialorder %v955, %v963
        %vm972 = vcmp.le.f32.partialorder %v956, %v964
        %vm973 = vcmp.le.f32.partialorder %v957, %v965
        %vm974 = vcmp.le.f32.partialorder %v958, %v966
        %vm975 = vcmp.le.f32.partialorder %v959, %v967
        %vm976 = vcmp.gt.f32.partialorder %v936, 0.0
        %vm977 = vcmp.gt.f32.partialorder %v937, 0.0
        %vm978 = vcmp.gt.f32.partialorder %v938, 0.0
        %vm979 = vcmp.gt.f32.partialorder %v939, 0.0
        %vm980 = vcmp.gt.f32.partialorder %v940, 0.0
        %vm981 = vcmp.gt.f32.partialorder %v941, 0.0
        %vm982 = vcmp.gt.f32.partialorder %v942, 0.0
        %vm983 = vcmp.gt.f32.partialorder %v943, 0.0
        %vm984 = vmand %vm968, %vm976
        %vm985 = vmand %vm969, %vm977
        %vm986 = vmand %vm970, %vm978
        %vm987 = vmand %vm971, %vm979
        %vm988 = vmand %vm972, %vm980
        %vm989 = vmand %vm973, %vm981
        %vm990 = vmand %vm974, %vm982
        %vm991 = vmand %vm975, %vm983
        %v992 = vsel %vm984, 1, 0
        %v993 = vsel %vm985, 1, 0
        %v994 = vsel %vm986, 1, 0
        %v995 = vsel %vm987, 1, 0
        %v996 = vsel %vm988, 1, 0
        %v997 = vsel %vm989, 1, 0
        %v998 = vsel %vm990, 1, 0
        %v999 = vsel %vm991, 1, 0
        %1000 = vrot.lane.b32.xlu0 %v992, 127
        %v1001 = vpop.permute.xlu0 %1000
        %1002 = vrot.lane.b32.xlu0 %v993, 127
        %v1003 = vpop.permute.xlu0 %1002
        %1004 = vrot.lane.b32.xlu0 %v994, 127
        %v1005 = vpop.permute.xlu0 %1004
        %1006 = vrot.lane.b32.xlu0 %v995, 127
        %v1007 = vpop.permute.xlu0 %1006
        %1008 = vrot.lane.b32.xlu0 %v996, 127
        %v1009 = vpop.permute.xlu0 %1008
        %1010 = vrot.lane.b32.xlu0 %v997, 127
        %v1011 = vpop.permute.xlu0 %1010
        %1012 = vrot.lane.b32.xlu0 %v998, 127
        %v1013 = vpop.permute.xlu0 %1012
        %1014 = vrot.lane.b32.xlu0 %v999, 127
        %v1015 = vpop.permute.xlu0 %1014
        %vm1016 = vcmp.ne.s32.totalorder %v1001, 0
        %vm1017 = vcmp.ne.s32.totalorder %v1003, 0
        %vm1018 = vcmp.ne.s32.totalorder %v1005, 0
        %vm1019 = vcmp.ne.s32.totalorder %v1007, 0
        %vm1020 = vcmp.ne.s32.totalorder %v1009, 0
        %vm1021 = vcmp.ne.s32.totalorder %v1011, 0
        %vm1022 = vcmp.ne.s32.totalorder %v1013, 0
        %vm1023 = vcmp.ne.s32.totalorder %v1015, 0
        %vm1024 = vmand %vm675, %vm1016
        %vm1025 = vmand %vm676, %vm1017
        %vm1026 = vmand %vm677, %vm1018
        %vm1027 = vmand %vm678, %vm1019
        %vm1028 = vmand %vm679, %vm1020
        %vm1029 = vmand %vm680, %vm1021
        %vm1030 = vmand %vm681, %vm1022
        %vm1031 = vmand %vm682, %vm1023
        %vm1032 = vmand %vm258, %vm1024
        %vm1033 = vmand %vm259, %vm1025
        %vm1034 = vmand %vm260, %vm1026
        %vm1035 = vmand %vm261, %vm1027
        %vm1036 = vmand %vm262, %vm1028
        %vm1037 = vmand %vm263, %vm1029
        %vm1038 = vmand %vm264, %vm1030
        %vm1039 = vmand %vm265, %vm1031
        %v1040 = vsel %vm1032, 1, 0
        %v1041 = vsel %vm1033, 1, 0
        %v1042 = vsel %vm1034, 1, 0
        %v1043 = vsel %vm1035, 1, 0
        %v1044 = vsel %vm1036, 1, 0
        %v1045 = vsel %vm1037, 1, 0
        %v1046 = vsel %vm1038, 1, 0
        %v1047 = vsel %vm1039, 1, 0
        %1048 = vst.msk [vmem:[%s166] sm:$0xff] %vm243, %v1040
        %1049 = vst.msk [vmem:[%s166 + $0x8] sm:$0xff] %vm243, %v1041
        %1050 = vst.msk [vmem:[%s166 + $0x10] sm:$0xff] %vm243, %v1042
        %1051 = vst.msk [vmem:[%s166 + $0x18] sm:$0xff] %vm243, %v1043
        %1052 = vst.msk [vmem:[%s166 + $0x20] sm:$0xff] %vm243, %v1044
        %1053 = vst.msk [vmem:[%s166 + $0x28] sm:$0xff] %vm243, %v1045
        %1054 = vst.msk [vmem:[%s166 + $0x30] sm:$0xff] %vm243, %v1046
        %1055 = vst.msk [vmem:[%s166 + $0x38] sm:$0xff] %vm243, %v1047
        %s1056 = smul.u32 4, %s20
        %p1057 = scmp.lt.s32.totalorder %s19, 1
        %s1058 = scalar_select %p1057, %s19, 1
        %p1059 = scmp.lt.s32.totalorder %s1056, 3
        %s1060 = scalar_select %p1059, %s1056, 3
        %s1061 = smul.addr %s1060, 2
        %s1062 = smul.addr %s1058, 8
        %s1063 = sadd.s32 %s1061, %s1062
        %s1064 = smul.addr %s1063, 8
        %s1065 = scalar_lea.vmem %s1, %s1064
        // Predicated region
        $region29: #{tpu_custom_call.1} parent=23 // pred_check
          %p1066 = pneg %p75
        $region30: #{tpu_custom_call.1} parent=23 // pred_check_branch
          %1068 = sbr.rel (%p1066) target = $region32
        $region31: #{tpu_custom_call.1} parent=23 // pred_region
          %s1069 = smul.u32 4, %s20
        $region32: #{tpu_custom_call.1} parent=23 // pred_fallthru
          _
      $region24: #{tpu_custom_call.1} parent=5 // pred_fallthru
        _
      %p1070 = scmp.le.s32.totalorder 2, %s10
      // Predicated region
      $region33: #{tpu_custom_call.1} parent=5 // pred_check
        %p1071 = pneg %p1070
      $region34: #{tpu_custom_call.1} parent=5 // pred_check_branch
        %1073 = sbr.rel (%p1071) target = $region36
      $region35: #{tpu_custom_call.1} parent=5 // pred_region
        %s1074 = ssub.s32 %s10, 2
        // Predicated region
        $region37: #{tpu_custom_call.1} parent=35 // pred_check
          %p1075 = pneg %p81
        $region38: #{tpu_custom_call.1} parent=35 // pred_check_branch
          %1077 = sbr.rel (%p1075) target = $region40
        $region39: #{tpu_custom_call.1} parent=35 // pred_region
          %s1078 = smul.u32 4, %s22
          %p1079 = scmp.lt.s32.totalorder %s21, 1
          %s1080 = scalar_select %p1079, %s21, 1
          %p1081 = scmp.lt.s32.totalorder %s1078, 3
          %s1082 = scalar_select %p1081, %s1078, 3
          %s1083 = smul.addr %s1082, 2
          %s1084 = smul.addr %s1080, 8
          %s1085 = sadd.s32 %s1083, %s1084
          %s1086 = smul.addr %s1085, 8
          %s1087 = scalar_lea.vmem %s1, %s1086
        $region40: #{tpu_custom_call.1} parent=35 // pred_fallthru
          _
      $region36: #{tpu_custom_call.1} parent=5 // pred_fallthru
        _
    $region6: #{tpu_custom_call.1} parent=1 // loop_footer
      %s14 = sadd.s32 1, %s10
    $region7: #{tpu_custom_call.1} parent=1 // loop_footer_branch
      %9 = sbr.rel target = $region3
    $region8: #{tpu_custom_call.1} parent=1 // loop_exit
      _
    %1088 = vsyncpa [#allocation4], 1
    %s1089 = scalar_lea.sflag [#allocation4], 1
    %1090 = vsyncpa %s1089, 1

// kernel: tpu_custom_call.1
$region0: #{tpu_custom_call.1}
  #allocation0 [shape = 'u32[]', space=smem, size = 0x4, offset = 0x4, fixed_abs, tag = 'smem constant byte address 0x4 - core index']
  #allocation1 [shape = 'u32[144,128]{1,0:T(1,128)}', space=vmem, size = 0x12000, scoped, tag = 'internal scratch']
  #allocation2 [shape = 'f32[1,4,18,18]{3,2,1,0:T(8,128)}', space=vmem, size = 0xc000, scoped, tag = 'scratch operand']
  %s0 = inlined_call_operand.hbm [shape: f32[2,4,16,16], index: 0, kind: input, shape index: {}]
  %s1 = inlined_call_operand.hbm [shape: s8[2,4,16,16], index: 1, kind: output, shape index: {}]
  %s2 = sld [smem:[#allocation0]]
  $region41: #{tpu_custom_call.1} parent=0
    _
  %s4 = ssub.s32 1, %s2
  %s5 = scalar_select 0, %s4, %s2
  $region1: #{tpu_custom_call.1} parent=0
    #allocation3 [shape = 'u8[65536]{0}', space=vmem, size = 0x10000, scoped, tag = 'input window, operand 0']
    #allocation4 [shape = 's32[2]{0}', space=sflag, size = 0x8, scoped, tag = 'scoped memory for tpu_custom_call.1']
    #allocation5 [shape = 's32[2]{0}', space=sflag, size = 0x8, scoped, tag = 'scoped memory for tpu_custom_call.1']
    #allocation6 [shape = 'u8[16384]{0}', space=vmem, size = 0x4000, scoped, tag = 'output window, operand 0']
    %6 = vsyncpa [#allocation4], 0
    %s7 = scalar_lea.sflag [#allocation4], 1
    %8 = vsyncpa %s7, 0
    %9 = vsyncpa [#allocation5], 0
    %s10 = scalar_lea.sflag [#allocation5], 1
    %11 = vsyncpa %s10, 0
    loop: start=0, step=1, limit=4
    $region2: #{tpu_custom_call.1} parent=1 // loop_pre_header
      _
    $region3: #{tpu_custom_call.1} parent=1 // loop_header
      %s13 = sphi 0, %s17
      %p14 = scmp.ge.s32.totalorder %s13, 4
      %s20 = sphi 0, %s32
      %s21 = sphi 0, %s28
      %s22 = sphi 0, %s20
      %s23 = sphi 0, %s21
      %s24 = sphi 0, %s22
      %s25 = sphi 0, %s23
      %s37 = sphi 0, %s39
      %s40 = sphi 0, %s37
      %s41 = sphi 0, %s40
      %s57 = sphi 0, %s41
      %s65 = sphi 0, %s67
      %s68 = sphi 0, %s65
      %s69 = sphi 0, %s68
      %s85 = sphi 0, %s69
    $region4: #{tpu_custom_call.1} parent=1 // loop_header_branch
      %16 = sbr.rel (%p14) target = $region8
    $region5: #{tpu_custom_call.1} parent=1 // loop_body
      %s18 = ssub.s32 %s13, 1
      %s19 = ssub.s32 %s13, 2
      %s26 = sadd.s32 1, %s21
      %p27 = scmp.ge.s32.totalorder %s26, 1
      %s28 = scalar_select %p27, 0, %s26
      %s29 = sadd.s32 1, %s20
      %s30 = scalar_select %p27, %s29, %s20
      %p31 = scmp.ge.s32.totalorder %s30, 2
      %s32 = scalar_select %p31, 0, %s30
      %s33 = ssub.s32 %s20, %s32
      %s34 = ssub.s32 %s21, %s28
      %s35 = sor.u32 %s33, %s34
      %p36 = scmp.eq.s32.totalorder %s35, 0
      %s38 = sadd.s32 %s37, 1
      %s39 = scalar_select %p36, %s37, %s38
      %p42 = pneg %p36
      %p43 = scmp.eq.s32.totalorder %s13, 1
      %p44 = por %p42, %p43
      %p45 = scmp.ne.s32.totalorder %s37, %s40
      %p46 = scmp.eq.s32.totalorder %s13, 0
      %p47 = por %p45, %p46
      %p48 = scmp.ne.s32.totalorder %s37, %s40
      %p49 = scmp.eq.s32.totalorder %s18, 1
      %p50 = por %p48, %p49
      %p51 = scmp.ne.s32.totalorder %s40, %s41
      %p52 = scmp.eq.s32.totalorder %s18, 0
      %p53 = por %p51, %p52
      %p54 = scmp.ne.s32.totalorder %s40, %s41
      %p55 = scmp.eq.s32.totalorder %s19, 1
      %p56 = por %p54, %p55
      %p58 = scmp.ne.s32.totalorder %s41, %s57
      %p59 = scmp.eq.s32.totalorder %s19, 0
      %p60 = por %p58, %p59
      %s61 = ssub.s32 %s20, %s32
      %s62 = ssub.s32 %s21, %s28
      %s63 = sor.u32 %s61, %s62
      %p64 = scmp.eq.s32.totalorder %s63, 0
      %s66 = sadd.s32 %s65, 1
      %s67 = scalar_select %p64, %s65, %s66
      %p70 = pneg %p64
      %p71 = scmp.eq.s32.totalorder %s13, 1
      %p72 = por %p70, %p71
      %p73 = scmp.ne.s32.totalorder %s65, %s68
      %p74 = scmp.eq.s32.totalorder %s13, 0
      %p75 = por %p73, %p74
      %p76 = scmp.ne.s32.totalorder %s65, %s68
      %p77 = scmp.eq.s32.totalorder %s18, 1
      %p78 = por %p76, %p77
      %p79 = scmp.ne.s32.totalorder %s68, %s69
      %p80 = scmp.eq.s32.totalorder %s18, 0
      %p81 = por %p79, %p80
      %p82 = scmp.ne.s32.totalorder %s68, %s69
      %p83 = scmp.eq.s32.totalorder %s19, 1
      %p84 = por %p82, %p83
      %p86 = scmp.ne.s32.totalorder %s69, %s85
      %p87 = scmp.eq.s32.totalorder %s19, 0
      %p88 = por %p86, %p87
      %p89 = scmp.le.s32.totalorder 1, %s13
      %p90 = scmp.lt.s32.totalorder %s13, 3
      %p91 = pnand %p89, %p90
      %p92 = pneg %p91
      // Predicated region
      $region9: #{tpu_custom_call.1} parent=5 // pred_check
        _
      $region10: #{tpu_custom_call.1} parent=5 // pred_check_branch
        %94 = sbr.rel (%p91) target = $region12
      $region11: #{tpu_custom_call.1} parent=5 // pred_region
        %s95 = ssub.s32 %s13, 1
      $region12: #{tpu_custom_call.1} parent=5 // pred_fallthru
        _
      %p96 = scmp.lt.s32.totalorder %s13, 2
      // Predicated region
      $region13: #{tpu_custom_call.1} parent=5 // pred_check
        %p97 = pneg %p96
      $region14: #{tpu_custom_call.1} parent=5 // pred_check_branch
        %99 = sbr.rel (%p97) target = $region16
      $region15: #{tpu_custom_call.1} parent=5 // pred_region
        // Predicated region
        $region17: #{tpu_custom_call.1} parent=15 // pred_check
          %p100 = pneg %p47
        $region18: #{tpu_custom_call.1} parent=15 // pred_check_branch
          %102 = sbr.rel (%p100) target = $region20
        $region19: #{tpu_custom_call.1} parent=15 // pred_region
          %s103 = sand.u32 %s37, 1
          %s104 = scalar_lea.sflag [#allocation4], %s103
          %s105 = sand.u32 %s37, 1
          %s106 = smul.addr %s105, 64
          %s107 = scalar_lea.vmem [#allocation3], %s106
          %s108 = smul.u32 4, %s21
          %s110 = ssub.s32 1024, 1024
          %111 = vsyncadd %s104, %s110
          %s112 = smul.addr %s108, 2
          %s113 = smul.addr %s20, 8
          %s114 = sadd.s32 %s112, %s113
          %s115 = smul.addr %s114, 128
          %s116 = scalar_lea.hbm %s0, %s115
          %s117 = sshll.u32 %s107, 4
          %s118 = int_to_ptr.vmem [resolvable:$true] %s117
          %123 = dma.hbm_to_vmem [thread:$0]  %s116, 1024, %s118, %s104, 128, 128, 8
        $region20: #{tpu_custom_call.1} parent=15 // pred_fallthru
          _
      $region16: #{tpu_custom_call.1} parent=5 // pred_fallthru
        _
      %p124 = scmp.le.s32.totalorder 1, %s13
      %p125 = scmp.lt.s32.totalorder %s13, 3
      %p126 = pnand %p124, %p125
      %p127 = pneg %p126
      // Predicated region
      $region21: #{tpu_custom_call.1} parent=5 // pred_check
        _
      $region22: #{tpu_custom_call.1} parent=5 // pred_check_branch
        %129 = sbr.rel (%p126) target = $region24
      $region23: #{tpu_custom_call.1} parent=5 // pred_region
        %s130 = ssub.s32 %s13, 1
        %s131 = sand.u32 %s40, 1
        %s132 = scalar_lea.sflag [#allocation4], %s131
        %s133 = sand.u32 %s40, 1
        %s134 = smul.addr %s133, 64
        %s135 = scalar_lea.vmem [#allocation3], %s134
        // Predicated region
        $region25: #{tpu_custom_call.1} parent=23 // pred_check
          %p136 = pneg %p53
        $region26: #{tpu_custom_call.1} parent=23 // pred_check_branch
          %138 = sbr.rel (%p136) target = $region28
        $region27: #{tpu_custom_call.1} parent=23 // pred_region
          %139 = dma.done %s132, 1024
        $region28: #{tpu_custom_call.1} parent=23 // pred_fallthru
          _
        %s140 = sand.u32 %s40, 1
        %s141 = scalar_lea.sflag [#allocation4], %s140
        %s142 = sand.u32 %s40, 1
        %s143 = smul.addr %s142, 64
        %s144 = scalar_lea.vmem [#allocation3], %s143
        %p145 = pneg %p53
        %p146 = pneg %p50
        %p147 = pneg %p81
        %p148 = pneg %p78
        %s149 = sand.u32 %s68, 1
        %s150 = scalar_lea.sflag [#allocation5], %s149
        %s151 = sand.u32 %s68, 1
        %s152 = smul.addr %s151, 16
        %s153 = scalar_lea.vmem [#allocation6], %s152
        %s154 = smul.u32 4, %s23
        %s155 = smul.u32 4, %s23
        %v158 = vld [vmem:[%s135] sm:$0xff]
        %v159 = vld [vmem:[%s135 + $0x8] sm:$0xff]
        %v160 = vld [vmem:[%s135 + $0x10] sm:$0xff]
        %v161 = vld [vmem:[%s135 + $0x18] sm:$0xff]
        %v162 = vld [vmem:[%s135 + $0x20] sm:$0xff]
        %v163 = vld [vmem:[%s135 + $0x28] sm:$0xff]
        %v164 = vld [vmem:[%s135 + $0x30] sm:$0xff]
        %v165 = vld [vmem:[%s135 + $0x38] sm:$0xff]
        %vm166 = vcmask 146432
        %167 = vst.msk [vmem:[#allocation2] sm:$0xff] %vm166, 0.0
        %168 = vst.msk [vmem:[#allocation2 + $0x8] sm:$0xff] %vm166, 0.0
        %vm169 = vcmask 140288
        %170 = vst.msk [vmem:[#allocation2 + $0x10] sm:$0x3] %vm169, 0.0
        %171 = vst.msk [vmem:[#allocation2 + $0x18] sm:$0xff] %vm166, 0.0
        %172 = vst.msk [vmem:[#allocation2 + $0x20] sm:$0xff] %vm166, 0.0
        %173 = vst.msk [vmem:[#allocation2 + $0x28] sm:$0x3] %vm169, 0.0
        %174 = vst.msk [vmem:[#allocation2 + $0x30] sm:$0xff] %vm166, 0.0
        %175 = vst.msk [vmem:[#allocation2 + $0x38] sm:$0xff] %vm166, 0.0
        %176 = vst.msk [vmem:[#allocation2 + $0x40] sm:$0x3] %vm169, 0.0
        %177 = vst.msk [vmem:[#allocation2 + $0x48] sm:$0xff] %vm166, 0.0
        %178 = vst.msk [vmem:[#allocation2 + $0x50] sm:$0xff] %vm166, 0.0
        %179 = vst.msk [vmem:[#allocation2 + $0x58] sm:$0x3] %vm169, 0.0
        %188 = vrot.lane.b32.xlu0 %v158, 1
        %v189 = vpop.permute.xlu0 %188
        %190 = vrot.lane.b32.xlu0 %v159, 1
        %v191 = vpop.permute.xlu0 %190
        %192 = vrot.lane.b32.xlu0 %v160, 1
        %v193 = vpop.permute.xlu0 %192
        %194 = vrot.lane.b32.xlu0 %v161, 1
        %v195 = vpop.permute.xlu0 %194
        %196 = vrot.lane.b32.xlu0 %v162, 1
        %v197 = vpop.permute.xlu0 %196
        %198 = vrot.lane.b32.xlu0 %v163, 1
        %v199 = vpop.permute.xlu0 %198
        %200 = vrot.lane.b32.xlu0 %v164, 1
        %v201 = vpop.permute.xlu0 %200
        %202 = vrot.lane.b32.xlu0 %v165, 1
        %v203 = vpop.permute.xlu0 %202
        %vm212 = vcmask 138248
        %213 = vst.msk [vmem:[#allocation2 + $0x1] sm:$0xff] %vm212, %v189
        %214 = vst.msk [vmem:[#allocation2 + $0x9] sm:$0xff] %vm212, %v191
        %215 = vst.msk [vmem:[#allocation2 + $0x19] sm:$0xff] %vm212, %v193
        %216 = vst.msk [vmem:[#allocation2 + $0x21] sm:$0xff] %vm212, %v195
        %217 = vst.msk [vmem:[#allocation2 + $0x31] sm:$0xff] %vm212, %v197
        %218 = vst.msk [vmem:[#allocation2 + $0x39] sm:$0xff] %vm212, %v199
        %219 = vst.msk [vmem:[#allocation2 + $0x49] sm:$0xff] %vm212, %v201
        %220 = vst.msk [vmem:[#allocation2 + $0x51] sm:$0xff] %vm212, %v203
        %v221 = vld [vmem:[#allocation2] sm:$0xff]
        %v222 = vld [vmem:[#allocation2 + $0x8] sm:$0xff]
        %v223 = vld [vmem:[#allocation2 + $0x10] sm:$0x3]
        %v224 = vld [vmem:[#allocation2 + $0x18] sm:$0xff]
        %v225 = vld [vmem:[#allocation2 + $0x20] sm:$0xff]
        %v226 = vld [vmem:[#allocation2 + $0x28] sm:$0x3]
        %v227 = vld [vmem:[#allocation2 + $0x30] sm:$0xff]
        %v228 = vld [vmem:[#allocation2 + $0x38] sm:$0xff]
        %v229 = vld [vmem:[#allocation2 + $0x40] sm:$0x3]
        %v230 = vld [vmem:[#allocation2 + $0x48] sm:$0xff]
        %v231 = vld [vmem:[#allocation2 + $0x50] sm:$0xff]
        %v232 = vld [vmem:[#allocation2 + $0x58] sm:$0x3]
        %vm233 = vcmask 130048
        %v234 = vsel %vm233, %v158, -inf
        %v235 = vsel %vm233, %v160, -inf
        %v236 = vsel %vm233, %v162, -inf
        %v237 = vmax.f32 %v234, %v236
        %v238 = vsel %vm233, %v164, -inf
        %v239 = vmax.f32 %v235, %v238
        %v240 = vmax.f32 %v237, %v239
        %v241 = vsel %vm233, %v159, -inf
        %v242 = vsel %vm233, %v161, -inf
        %v243 = vsel %vm233, %v163, -inf
        %v244 = vmax.f32 %v241, %v243
        %v245 = vsel %vm233, %v165, -inf
        %v246 = vmax.f32 %v242, %v245
        %v247 = vmax.f32 %v244, %v246
        %vm248 = vcmp.eq.f32.partialorder %v158, %v240
        %vm249 = vcmp.eq.f32.partialorder %v159, %v247
        %vm250 = vcmp.eq.f32.partialorder %v160, %v240
        %vm251 = vcmp.eq.f32.partialorder %v161, %v247
        %vm252 = vcmp.eq.f32.partialorder %v162, %v240
        %vm253 = vcmp.eq.f32.partialorder %v163, %v247
        %vm254 = vcmp.eq.f32.partialorder %v164, %v240
        %vm255 = vcmp.eq.f32.partialorder %v165, %v247
        %v256 = vlaneseq
        %v257 = vshrl.u32 %v256, 7
        %v258 = vadd.s32 %v257, 8
        %v259 = vlaneseq
        %v260 = vand.u32 %v259, 127
        %vm261 = vcmp.eq.s32.totalorder %v257, 0
        %vm262 = vcmp.eq.s32.totalorder %v258, 0
        %vm263 = vcmp.eq.s32.totalorder %v257, 15
        %vm264 = vcmp.eq.s32.totalorder %v258, 15
        %vm265 = vcmp.eq.s32.totalorder %v260, 0
        %vm266 = vcmp.eq.s32.totalorder %v260, 15
        %vm267 = vmor %vm261, %vm265
        %vm268 = vmor %vm262, %vm265
        %vm269 = vmor %vm261, %vm266
        %vm270 = vmor %vm262, %vm266
        %vm271 = vmor %vm263, %vm265
        %vm272 = vmor %vm264, %vm265
        %vm273 = vmor %vm263, %vm266
        %vm274 = vmor %vm264, %vm266
        %v275 = vsel %vm261, 1, 0
        %v276 = vsel %vm262, 1, 0
        %vm277 = vcmp.eq.s32.totalorder %v275, 1
        %vm278 = vcmp.eq.s32.totalorder %v276, 1
        %v279 = vsel %vm277, -inf, %v221
        %v280 = vsel %vm278, -inf, %v222
        %v281 = vsel %vm277, -inf, %v224
        %v282 = vsel %vm278, -inf, %v225
        %v283 = vsel %vm277, -inf, %v227
        %v284 = vsel %vm278, -inf, %v228
        %v285 = vsel %vm277, -inf, %v230
        %v286 = vsel %vm278, -inf, %v231
        %295 = vrot.lane.b32.xlu0 %v279, 127
        %v296 = vpop.permute.xlu0 %295
        %297 = vrot.lane.b32.xlu0 %v280, 127
        %v298 = vpop.permute.xlu0 %297
        %299 = vrot.lane.b32.xlu0 %v281, 127
        %v300 = vpop.permute.xlu0 %299
        %301 = vrot.lane.b32.xlu0 %v282, 127
        %v302 = vpop.permute.xlu0 %301
        %303 = vrot.lane.b32.xlu0 %v283, 127
        %v304 = vpop.permute.xlu0 %303
        %305 = vrot.lane.b32.xlu0 %v284, 127
        %v306 = vpop.permute.xlu0 %305
        %307 = vrot.lane.b32.xlu0 %v285, 127
        %v308 = vpop.permute.xlu0 %307
        %309 = vrot.lane.b32.xlu0 %v286, 127
        %v310 = vpop.permute.xlu0 %309
        %v319 = vmax.f32 %v158, %v296
        %v320 = vmax.f32 %v159, %v298
        %v321 = vmax.f32 %v160, %v300
        %v322 = vmax.f32 %v161, %v302
        %v323 = vmax.f32 %v162, %v304
        %v324 = vmax.f32 %v163, %v306
        %v325 = vmax.f32 %v164, %v308
        %v326 = vmax.f32 %v165, %v310
        %v327 = vsel %vm263, 1, 0
        %v328 = vsel %vm264, 1, 0
        %vm329 = vcmp.eq.s32.totalorder %v327, 1
        %vm330 = vcmp.eq.s32.totalorder %v328, 1
        %vm343 = vcmask 1045504
        %v344 = vrot.slane %v221, 2
        %v345 = vrot.slane %v222, 2
        %v346 = vsel %vm343, %v344, %v345
        %v347 = vrot.slane %v223, 2
        %v348 = vsel %vm343, %v345, %v347
        %v349 = vrot.slane %v224, 2
        %v350 = vrot.slane %v225, 2
        %v351 = vsel %vm343, %v349, %v350
        %v352 = vrot.slane %v226, 2
        %v353 = vsel %vm343, %v350, %v352
        %v354 = vrot.slane %v227, 2
        %v355 = vrot.slane %v228, 2
        %v356 = vsel %vm343, %v354, %v355
        %v357 = vrot.slane %v229, 2
        %v358 = vsel %vm343, %v355, %v357
        %v359 = vrot.slane %v230, 2
        %v360 = vrot.slane %v231, 2
        %v361 = vsel %vm343, %v359, %v360
        %v362 = vrot.slane %v232, 2
        %v363 = vsel %vm343, %v360, %v362
        %364 = vrot.lane.b32.xlu0 %v346, 127
        %v365 = vpop.permute.xlu0 %364
        %366 = vrot.lane.b32.xlu0 %v348, 127
        %v367 = vpop.permute.xlu0 %366
        %368 = vrot.lane.b32.xlu0 %v351, 127
        %v369 = vpop.permute.xlu0 %368
        %370 = vrot.lane.b32.xlu0 %v353, 127
        %v371 = vpop.permute.xlu0 %370
        %372 = vrot.lane.b32.xlu0 %v356, 127
        %v373 = vpop.permute.xlu0 %372
        %374 = vrot.lane.b32.xlu0 %v358, 127
        %v375 = vpop.permute.xlu0 %374
        %376 = vrot.lane.b32.xlu0 %v361, 127
        %v377 = vpop.permute.xlu0 %376
        %378 = vrot.lane.b32.xlu0 %v363, 127
        %v379 = vpop.permute.xlu0 %378
        %v388 = vsel %vm329, -inf, %v365
        %v389 = vsel %vm330, -inf, %v367
        %v390 = vsel %vm329, -inf, %v369
        %v391 = vsel %vm330, -inf, %v371
        %v392 = vsel %vm329, -inf, %v373
        %v393 = vsel %vm330, -inf, %v375
        %v394 = vsel %vm329, -inf, %v377
        %v395 = vsel %vm330, -inf, %v379
        %v396 = vmax.f32 %v319, %v388
        %v397 = vmax.f32 %v320, %v389
        %v398 = vmax.f32 %v321, %v390
        %v399 = vmax.f32 %v322, %v391
        %v400 = vmax.f32 %v323, %v392
        %v401 = vmax.f32 %v324, %v393
        %v402 = vmax.f32 %v325, %v394
        %v403 = vmax.f32 %v326, %v395
        %v404 = vsel %vm265, 1, 0
        %vm405 = vcmp.eq.s32.totalorder %v404, 1
        %v406 = vsel %vm405, -inf, %v221
        %v407 = vsel %vm405, -inf, %v222
        %v408 = vsel %vm405, -inf, %v223
        %v409 = vsel %vm405, -inf, %v224
        %v410 = vsel %vm405, -inf, %v225
        %v411 = vsel %vm405, -inf, %v226
        %v412 = vsel %vm405, -inf, %v227
        %v413 = vsel %vm405, -inf, %v228
        %v414 = vsel %vm405, -inf, %v229
        %v415 = vsel %vm405, -inf, %v230
        %v416 = vsel %vm405, -inf, %v231
        %v417 = vsel %vm405, -inf, %v232
        %vm430 = vcmask 1046528
        %v431 = vrot.slane %v406, 1
        %v432 = vrot.slane %v407, 1
        %v433 = vsel %vm430, %v431, %v432
        %v434 = vrot.slane %v408, 1
        %v435 = vsel %vm430, %v432, %v434
        %v436 = vrot.slane %v409, 1
        %v437 = vrot.slane %v410, 1
        %v438 = vsel %vm430, %v436, %v437
        %v439 = vrot.slane %v411, 1
        %v440 = vsel %vm430, %v437, %v439
        %v441 = vrot.slane %v412, 1
        %v442 = vrot.slane %v413, 1
        %v443 = vsel %vm430, %v441, %v442
        %v444 = vrot.slane %v414, 1
        %v445 = vsel %vm430, %v442, %v444
        %v446 = vrot.slane %v415, 1
        %v447 = vrot.slane %v416, 1
        %v448 = vsel %vm430, %v446, %v447
        %v449 = vrot.slane %v417, 1
        %v450 = vsel %vm430, %v447, %v449
        %v459 = vmax.f32 %v396, %v433
        %v460 = vmax.f32 %v397, %v435
        %v461 = vmax.f32 %v398, %v438
        %v462 = vmax.f32 %v399, %v440
        %v463 = vmax.f32 %v400, %v443
        %v464 = vmax.f32 %v401, %v445
        %v465 = vmax.f32 %v402, %v448
        %v466 = vmax.f32 %v403, %v450
        %v467 = vsel %vm266, 1, 0
        %vm468 = vcmp.eq.s32.totalorder %v467, 1
        %v469 = vrot.slane %v221, 1
        %v470 = vrot.slane %v222, 1
        %v471 = vsel %vm430, %v469, %v470
        %v472 = vrot.slane %v223, 1
        %v473 = vsel %vm430, %v470, %v472
        %v474 = vrot.slane %v224, 1
        %v475 = vrot.slane %v225, 1
        %v476 = vsel %vm430, %v474, %v475
        %v477 = vrot.slane %v226, 1
        %v478 = vsel %vm430, %v475, %v477
        %v479 = vrot.slane %v227, 1
        %v480 = vrot.slane %v228, 1
        %v481 = vsel %vm430, %v479, %v480
        %v482 = vrot.slane %v229, 1
        %v483 = vsel %vm430, %v480, %v482
        %v484 = vrot.slane %v230, 1
        %v485 = vrot.slane %v231, 1
        %v486 = vsel %vm430, %v484, %v485
        %v487 = vrot.slane %v232, 1
        %v488 = vsel %vm430, %v485, %v487
        %489 = vrot.lane.b32.xlu0 %v471, 126
        %v490 = vpop.permute.xlu0 %489
        %491 = vrot.lane.b32.xlu0 %v473, 126
        %v492 = vpop.permute.xlu0 %491
        %493 = vrot.lane.b32.xlu0 %v476, 126
        %v494 = vpop.permute.xlu0 %493
        %495 = vrot.lane.b32.xlu0 %v478, 126
        %v496 = vpop.permute.xlu0 %495
        %497 = vrot.lane.b32.xlu0 %v481, 126
        %v498 = vpop.permute.xlu0 %497
        %499 = vrot.lane.b32.xlu0 %v483, 126
        %v500 = vpop.permute.xlu0 %499
        %501 = vrot.lane.b32.xlu0 %v486, 126
        %v502 = vpop.permute.xlu0 %501
        %503 = vrot.lane.b32.xlu0 %v488, 126
        %v504 = vpop.permute.xlu0 %503
        %v513 = vsel %vm468, -inf, %v490
        %v514 = vsel %vm468, -inf, %v492
        %v515 = vsel %vm468, -inf, %v494
        %v516 = vsel %vm468, -inf, %v496
        %v517 = vsel %vm468, -inf, %v498
        %v518 = vsel %vm468, -inf, %v500
        %v519 = vsel %vm468, -inf, %v502
        %v520 = vsel %vm468, -inf, %v504
        %v521 = vmax.f32 %v459, %v513
        %v522 = vmax.f32 %v460, %v514
        %v523 = vmax.f32 %v461, %v515
        %v524 = vmax.f32 %v462, %v516
        %v525 = vmax.f32 %v463, %v517
        %v526 = vmax.f32 %v464, %v518
        %v527 = vmax.f32 %v465, %v519
        %v528 = vmax.f32 %v466, %v520
        %v529 = vsel %vm267, 1, 0
        %v530 = vsel %vm268, 1, 0
        %vm531 = vcmp.eq.s32.totalorder %v529, 1
        %vm532 = vcmp.eq.s32.totalorder %v530, 1
        %v533 = vsel %vm531, -inf, %v221
        %v534 = vsel %vm532, -inf, %v222
        %v535 = vsel %vm531, -inf, %v224
        %v536 = vsel %vm532, -inf, %v225
        %v537 = vsel %vm531, -inf, %v227
        %v538 = vsel %vm532, -inf, %v228
        %v539 = vsel %vm531, -inf, %v230
        %v540 = vsel %vm532, -inf, %v231
        %v541 = vmax.f32 %v521, %v533
        %v542 = vmax.f32 %v522, %v534
        %v543 = vmax.f32 %v523, %v535
        %v544 = vmax.f32 %v524, %v536
        %v545 = vmax.f32 %v525, %v537
        %v546 = vmax.f32 %v526, %v538
        %v547 = vmax.f32 %v527, %v539
        %v548 = vmax.f32 %v528, %v540
        %v549 = vsel %vm269, 1, 0
        %v550 = vsel %vm270, 1, 0
        %vm551 = vcmp.eq.s32.totalorder %v549, 1
        %vm552 = vcmp.eq.s32.totalorder %v550, 1
        %553 = vrot.lane.b32.xlu0 %v221, 126
        %v554 = vpop.permute.xlu0 %553
        %555 = vrot.lane.b32.xlu0 %v222, 126
        %v556 = vpop.permute.xlu0 %555
        %557 = vrot.lane.b32.xlu0 %v224, 126
        %v558 = vpop.permute.xlu0 %557
        %559 = vrot.lane.b32.xlu0 %v225, 126
        %v560 = vpop.permute.xlu0 %559
        %561 = vrot.lane.b32.xlu0 %v227, 126
        %v562 = vpop.permute.xlu0 %561
        %563 = vrot.lane.b32.xlu0 %v228, 126
        %v564 = vpop.permute.xlu0 %563
        %565 = vrot.lane.b32.xlu0 %v230, 126
        %v566 = vpop.permute.xlu0 %565
        %567 = vrot.lane.b32.xlu0 %v231, 126
        %v568 = vpop.permute.xlu0 %567
        %v577 = vsel %vm551, -inf, %v554
        %v578 = vsel %vm552, -inf, %v556
        %v579 = vsel %vm551, -inf, %v558
        %v580 = vsel %vm552, -inf, %v560
        %v581 = vsel %vm551, -inf, %v562
        %v582 = vsel %vm552, -inf, %v564
        %v583 = vsel %vm551, -inf, %v566
        %v584 = vsel %vm552, -inf, %v568
        %v585 = vmax.f32 %v541, %v577
        %v586 = vmax.f32 %v542, %v578
        %v587 = vmax.f32 %v543, %v579
        %v588 = vmax.f32 %v544, %v580
        %v589 = vmax.f32 %v545, %v581
        %v590 = vmax.f32 %v546, %v582
        %v591 = vmax.f32 %v547, %v583
        %v592 = vmax.f32 %v548, %v584
        %v593 = vsel %vm271, 1, 0
        %v594 = vsel %vm272, 1, 0
        %vm595 = vcmp.eq.s32.totalorder %v593, 1
        %vm596 = vcmp.eq.s32.totalorder %v594, 1
        %v605 = vsel %vm595, -inf, %v346
        %v606 = vsel %vm596, -inf, %v348
        %v607 = vsel %vm595, -inf, %v351
        %v608 = vsel %vm596, -inf, %v353
        %v609 = vsel %vm595, -inf, %v356
        %v610 = vsel %vm596, -inf, %v358
        %v611 = vsel %vm595, -inf, %v361
        %v612 = vsel %vm596, -inf, %v363
        %v613 = vmax.f32 %v585, %v605
        %v614 = vmax.f32 %v586, %v606
        %v615 = vmax.f32 %v587, %v607
        %v616 = vmax.f32 %v588, %v608
        %v617 = vmax.f32 %v589, %v609
        %v618 = vmax.f32 %v590, %v610
        %v619 = vmax.f32 %v591, %v611
        %v620 = vmax.f32 %v592, %v612
        %v621 = vsel %vm273, 1, 0
        %v622 = vsel %vm274, 1, 0
        %vm623 = vcmp.eq.s32.totalorder %v621, 1
        %vm624 = vcmp.eq.s32.totalorder %v622, 1
        %625 = vrot.lane.b32.xlu0 %v346, 126
        %v626 = vpop.permute.xlu0 %625
        %627 = vrot.lane.b32.xlu0 %v348, 126
        %v628 = vpop.permute.xlu0 %627
        %629 = vrot.lane.b32.xlu0 %v351, 126
        %v630 = vpop.permute.xlu0 %629
        %631 = vrot.lane.b32.xlu0 %v353, 126
        %v632 = vpop.permute.xlu0 %631
        %633 = vrot.lane.b32.xlu0 %v356, 126
        %v634 = vpop.permute.xlu0 %633
        %635 = vrot.lane.b32.xlu0 %v358, 126
        %v636 = vpop.permute.xlu0 %635
        %637 = vrot.lane.b32.xlu0 %v361, 126
        %v638 = vpop.permute.xlu0 %637
        %639 = vrot.lane.b32.xlu0 %v363, 126
        %v640 = vpop.permute.xlu0 %639
        %v649 = vsel %vm623, -inf, %v626
        %v650 = vsel %vm624, -inf, %v628
        %v651 = vsel %vm623, -inf, %v630
        %v652 = vsel %vm624, -inf, %v632
        %v653 = vsel %vm623, -inf, %v634
        %v654 = vsel %vm624, -inf, %v636
        %v655 = vsel %vm623, -inf, %v638
        %v656 = vsel %vm624, -inf, %v640
        %v657 = vmax.f32 %v613, %v649
        %v658 = vmax.f32 %v614, %v650
        %v659 = vmax.f32 %v615, %v651
        %v660 = vmax.f32 %v616, %v652
        %v661 = vmax.f32 %v617, %v653
        %v662 = vmax.f32 %v618, %v654
        %v663 = vmax.f32 %v619, %v655
        %v664 = vmax.f32 %v620, %v656
        %vm665 = vcmp.eq.f32.partialorder %v158, %v657
        %vm666 = vcmp.eq.f32.partialorder %v159, %v658
        %vm667 = vcmp.eq.f32.partialorder %v160, %v659
        %vm668 = vcmp.eq.f32.partialorder %v161, %v660
        %vm669 = vcmp.eq.f32.partialorder %v162, %v661
        %vm670 = vcmp.eq.f32.partialorder %v163, %v662
        %vm671 = vcmp.eq.f32.partialorder %v164, %v663
        %vm672 = vcmp.eq.f32.partialorder %v165, %v664
        %v673 = vmul.f32 %v158, 2.0
        %v674 = vmul.f32 %v159, 2.0
        %v675 = vmul.f32 %v160, 2.0
        %v676 = vmul.f32 %v161, 2.0
        %v677 = vmul.f32 %v162, 2.0
        %v678 = vmul.f32 %v163, 2.0
        %v679 = vmul.f32 %v164, 2.0
        %v680 = vmul.f32 %v165, 2.0
        %689 = vrot.lane.b32.xlu0 %v673, 1
        %v690 = vpop.permute.xlu0 %689
        %691 = vrot.lane.b32.xlu0 %v674, 1
        %v692 = vpop.permute.xlu0 %691
        %693 = vrot.lane.b32.xlu0 %v675, 1
        %v694 = vpop.permute.xlu0 %693
        %695 = vrot.lane.b32.xlu0 %v676, 1
        %v696 = vpop.permute.xlu0 %695
        %697 = vrot.lane.b32.xlu0 %v677, 1
        %v698 = vpop.permute.xlu0 %697
        %699 = vrot.lane.b32.xlu0 %v678, 1
        %v700 = vpop.permute.xlu0 %699
        %701 = vrot.lane.b32.xlu0 %v679, 1
        %v702 = vpop.permute.xlu0 %701
        %703 = vrot.lane.b32.xlu0 %v680, 1
        %v704 = vpop.permute.xlu0 %703
        %v713 = vsub.f32 %v221, %v690
        %v714 = vsub.f32 %v222, %v692
        %v715 = vsub.f32 %v224, %v694
        %v716 = vsub.f32 %v225, %v696
        %v717 = vsub.f32 %v227, %v698
        %v718 = vsub.f32 %v228, %v700
        %v719 = vsub.f32 %v230, %v702
        %v720 = vsub.f32 %v231, %v704
        %v721 = vadd.f32 %v713, %v346
        %v722 = vadd.f32 %v714, %v348
        %v723 = vadd.f32 %v715, %v351
        %v724 = vadd.f32 %v716, %v353
        %v725 = vadd.f32 %v717, %v356
        %v726 = vadd.f32 %v718, %v358
        %v727 = vadd.f32 %v719, %v361
        %v728 = vadd.f32 %v720, %v363
        %vm729 = vcmask 1040384
        %v730 = vrot.slane %v673, 7
        %v731 = vrot.slane %v674, 7
        %v732 = vsel %vm729, %v730, %v731
        %v733 = vrot.slane %v675, 7
        %v734 = vrot.slane %v676, 7
        %v735 = vsel %vm729, %v733, %v734
        %v736 = vrot.slane %v677, 7
        %v737 = vrot.slane %v678, 7
        %v738 = vsel %vm729, %v736, %v737
        %v739 = vrot.slane %v679, 7
        %v740 = vrot.slane %v680, 7
        %v741 = vsel %vm729, %v739, %v740
        %v754 = vsub.f32 %v221, %v730
        %v755 = vsub.f32 %v222, %v732
        %v756 = vsub.f32 %v223, %v731
        %v757 = vsub.f32 %v224, %v733
        %v758 = vsub.f32 %v225, %v735
        %v759 = vsub.f32 %v226, %v734
        %v760 = vsub.f32 %v227, %v736
        %v761 = vsub.f32 %v228, %v738
        %v762 = vsub.f32 %v229, %v737
        %v763 = vsub.f32 %v230, %v739
        %v764 = vsub.f32 %v231, %v741
        %v765 = vsub.f32 %v232, %v740
        %766 = vrot.lane.b32.xlu0 %v223, 126
        %v767 = vpop.permute.xlu0 %766
        %768 = vrot.lane.b32.xlu0 %v226, 126
        %v769 = vpop.permute.xlu0 %768
        %770 = vrot.lane.b32.xlu0 %v229, 126
        %v771 = vpop.permute.xlu0 %770
        %772 = vrot.lane.b32.xlu0 %v232, 126
        %v773 = vpop.permute.xlu0 %772
        %v778 = vadd.f32 %v754, %v554
        %v779 = vadd.f32 %v755, %v556
        %v780 = vadd.f32 %v756, %v767
        %v781 = vadd.f32 %v757, %v558
        %v782 = vadd.f32 %v758, %v560
        %v783 = vadd.f32 %v759, %v769
        %v784 = vadd.f32 %v760, %v562
        %v785 = vadd.f32 %v761, %v564
        %v786 = vadd.f32 %v762, %v771
        %v787 = vadd.f32 %v763, %v566
        %v788 = vadd.f32 %v764, %v568
        %v789 = vadd.f32 %v765, %v773
        %v790 = vsub.f32 %v221, %v554
        %v791 = vsub.f32 %v222, %v556
        %v792 = vsub.f32 %v224, %v558
        %v793 = vsub.f32 %v225, %v560
        %v794 = vsub.f32 %v227, %v562
        %v795 = vsub.f32 %v228, %v564
        %v796 = vsub.f32 %v230, %v566
        %v797 = vsub.f32 %v231, %v568
        %v798 = vsub.f32 %v790, %v346
        %v799 = vsub.f32 %v791, %v348
        %v800 = vsub.f32 %v792, %v351
        %v801 = vsub.f32 %v793, %v353
        %v802 = vsub.f32 %v794, %v356
        %v803 = vsub.f32 %v795, %v358
        %v804 = vsub.f32 %v796, %v361
        %v805 = vsub.f32 %v797, %v363
        %v806 = vadd.f32 %v798, %v626
        %v807 = vadd.f32 %v799, %v628
        %v808 = vadd.f32 %v800, %v630
        %v809 = vadd.f32 %v801, %v632
        %v810 = vadd.f32 %v802, %v634
        %v811 = vadd.f32 %v803, %v636
        %v812 = vadd.f32 %v804, %v638
        %v813 = vadd.f32 %v805, %v640
        %v814 = vmul.f32 %v806, 0.25
        %v815 = vmul.f32 %v807, 0.25
        %v816 = vmul.f32 %v808, 0.25
        %v817 = vmul.f32 %v809, 0.25
        %v818 = vmul.f32 %v810, 0.25
        %v819 = vmul.f32 %v811, 0.25
        %v820 = vmul.f32 %v812, 0.25
        %v821 = vmul.f32 %v813, 0.25
        %v834 = vrot.slane %v778, 1
        %v835 = vrot.slane %v779, 1
        %v836 = vsel %vm430, %v834, %v835
        %v837 = vrot.slane %v780, 1
        %v838 = vsel %vm430, %v835, %v837
        %v839 = vrot.slane %v781, 1
        %v840 = vrot.slane %v782, 1
        %v841 = vsel %vm430, %v839, %v840
        %v842 = vrot.slane %v783, 1
        %v843 = vsel %vm430, %v840, %v842
        %v844 = vrot.slane %v784, 1
        %v845 = vrot.slane %v785, 1
        %v846 = vsel %vm430, %v844, %v845
        %v847 = vrot.slane %v786, 1
        %v848 = vsel %vm430, %v845, %v847
        %v849 = vrot.slane %v787, 1
        %v850 = vrot.slane %v788, 1
        %v851 = vsel %vm430, %v849, %v850
        %v852 = vrot.slane %v789, 1
        %v853 = vsel %vm430, %v850, %v852
        %854 = vrot.lane.b32.xlu0 %v836, 1
        %v855 = vpop.permute.xlu0 %854
        %856 = vrot.lane.b32.xlu0 %v838, 1
        %v857 = vpop.permute.xlu0 %856
        %858 = vrot.lane.b32.xlu0 %v841, 1
        %v859 = vpop.permute.xlu0 %858
        %860 = vrot.lane.b32.xlu0 %v843, 1
        %v861 = vpop.permute.xlu0 %860
        %862 = vrot.lane.b32.xlu0 %v846, 1
        %v863 = vpop.permute.xlu0 %862
        %864 = vrot.lane.b32.xlu0 %v848, 1
        %v865 = vpop.permute.xlu0 %864
        %866 = vrot.lane.b32.xlu0 %v851, 1
        %v867 = vpop.permute.xlu0 %866
        %868 = vrot.lane.b32.xlu0 %v853, 1
        %v869 = vpop.permute.xlu0 %868
        %v878 = vmul.f32 %v721, %v855
        %v879 = vmul.f32 %v722, %v857
        %v880 = vmul.f32 %v723, %v859
        %v881 = vmul.f32 %v724, %v861
        %v882 = vmul.f32 %v725, %v863
        %v883 = vmul.f32 %v726, %v865
        %v884 = vmul.f32 %v727, %v867
        %v885 = vmul.f32 %v728, %v869
        %v886 = vmul.f32 %v814, %v814
        %v887 = vmul.f32 %v815, %v815
        %v888 = vmul.f32 %v816, %v816
        %v889 = vmul.f32 %v817, %v817
        %v890 = vmul.f32 %v818, %v818
        %v891 = vmul.f32 %v819, %v819
        %v892 = vmul.f32 %v820, %v820
        %v893 = vmul.f32 %v821, %v821
        %902 = vrot.lane.b32.xlu0 %v886, 1
        %v903 = vpop.permute.xlu0 %902
        %904 = vrot.lane.b32.xlu0 %v887, 1
        %v905 = vpop.permute.xlu0 %904
        %906 = vrot.lane.b32.xlu0 %v888, 1
        %v907 = vpop.permute.xlu0 %906
        %908 = vrot.lane.b32.xlu0 %v889, 1
        %v909 = vpop.permute.xlu0 %908
        %910 = vrot.lane.b32.xlu0 %v890, 1
        %v911 = vpop.permute.xlu0 %910
        %912 = vrot.lane.b32.xlu0 %v891, 1
        %v913 = vpop.permute.xlu0 %912
        %914 = vrot.lane.b32.xlu0 %v892, 1
        %v915 = vpop.permute.xlu0 %914
        %916 = vrot.lane.b32.xlu0 %v893, 1
        %v917 = vpop.permute.xlu0 %916
        %v926 = vsub.f32 %v878, %v903
        %v927 = vsub.f32 %v879, %v905
        %v928 = vsub.f32 %v880, %v907
        %v929 = vsub.f32 %v881, %v909
        %v930 = vsub.f32 %v882, %v911
        %v931 = vsub.f32 %v883, %v913
        %v932 = vsub.f32 %v884, %v915
        %v933 = vsub.f32 %v885, %v917
        %v934 = vadd.f32 %v721, %v855
        %v935 = vadd.f32 %v722, %v857
        %v936 = vadd.f32 %v723, %v859
        %v937 = vadd.f32 %v724, %v861
        %v938 = vadd.f32 %v725, %v863
        %v939 = vadd.f32 %v726, %v865
        %v940 = vadd.f32 %v727, %v867
        %v941 = vadd.f32 %v728, %v869
        %v942 = vmul.f32 %v934, %v934
        %v943 = vmul.f32 %v935, %v935
        %v944 = vmul.f32 %v936, %v936
        %v945 = vmul.f32 %v937, %v937
        %v946 = vmul.f32 %v938, %v938
        %v947 = vmul.f32 %v939, %v939
        %v948 = vmul.f32 %v940, %v940
        %v949 = vmul.f32 %v941, %v941
        %v950 = vmul.f32 %v926, 7.2
        %v951 = vmul.f32 %v927, 7.2
        %v952 = vmul.f32 %v928, 7.2
        %v953 = vmul.f32 %v929, 7.2
        %v954 = vmul.f32 %v930, 7.2
        %v955 = vmul.f32 %v931, 7.2
        %v956 = vmul.f32 %v932, 7.2
        %v957 = vmul.f32 %v933, 7.2
        %vm958 = vcmp.le.f32.partialorder %v942, %v950
        %vm959 = vcmp.le.f32.partialorder %v943, %v951
        %vm960 = vcmp.le.f32.partialorder %v944, %v952
        %vm961 = vcmp.le.f32.partialorder %v945, %v953
        %vm962 = vcmp.le.f32.partialorder %v946, %v954
        %vm963 = vcmp.le.f32.partialorder %v947, %v955
        %vm964 = vcmp.le.f32.partialorder %v948, %v956
        %vm965 = vcmp.le.f32.partialorder %v949, %v957
        %vm966 = vcmp.gt.f32.partialorder %v926, 0.0
        %vm967 = vcmp.gt.f32.partialorder %v927, 0.0
        %vm968 = vcmp.gt.f32.partialorder %v928, 0.0
        %vm969 = vcmp.gt.f32.partialorder %v929, 0.0
        %vm970 = vcmp.gt.f32.partialorder %v930, 0.0
        %vm971 = vcmp.gt.f32.partialorder %v931, 0.0
        %vm972 = vcmp.gt.f32.partialorder %v932, 0.0
        %vm973 = vcmp.gt.f32.partialorder %v933, 0.0
        %vm974 = vmand %vm958, %vm966
        %vm975 = vmand %vm959, %vm967
        %vm976 = vmand %vm960, %vm968
        %vm977 = vmand %vm961, %vm969
        %vm978 = vmand %vm962, %vm970
        %vm979 = vmand %vm963, %vm971
        %vm980 = vmand %vm964, %vm972
        %vm981 = vmand %vm965, %vm973
        %v982 = vsel %vm974, 1, 0
        %v983 = vsel %vm975, 1, 0
        %v984 = vsel %vm976, 1, 0
        %v985 = vsel %vm977, 1, 0
        %v986 = vsel %vm978, 1, 0
        %v987 = vsel %vm979, 1, 0
        %v988 = vsel %vm980, 1, 0
        %v989 = vsel %vm981, 1, 0
        %990 = vrot.lane.b32.xlu0 %v982, 127
        %v991 = vpop.permute.xlu0 %990
        %992 = vrot.lane.b32.xlu0 %v983, 127
        %v993 = vpop.permute.xlu0 %992
        %994 = vrot.lane.b32.xlu0 %v984, 127
        %v995 = vpop.permute.xlu0 %994
        %996 = vrot.lane.b32.xlu0 %v985, 127
        %v997 = vpop.permute.xlu0 %996
        %998 = vrot.lane.b32.xlu0 %v986, 127
        %v999 = vpop.permute.xlu0 %998
        %1000 = vrot.lane.b32.xlu0 %v987, 127
        %v1001 = vpop.permute.xlu0 %1000
        %1002 = vrot.lane.b32.xlu0 %v988, 127
        %v1003 = vpop.permute.xlu0 %1002
        %1004 = vrot.lane.b32.xlu0 %v989, 127
        %v1005 = vpop.permute.xlu0 %1004
        %vm1006 = vcmp.ne.s32.totalorder %v991, 0
        %vm1007 = vcmp.ne.s32.totalorder %v993, 0
        %vm1008 = vcmp.ne.s32.totalorder %v995, 0
        %vm1009 = vcmp.ne.s32.totalorder %v997, 0
        %vm1010 = vcmp.ne.s32.totalorder %v999, 0
        %vm1011 = vcmp.ne.s32.totalorder %v1001, 0
        %vm1012 = vcmp.ne.s32.totalorder %v1003, 0
        %vm1013 = vcmp.ne.s32.totalorder %v1005, 0
        %vm1014 = vmand %vm665, %vm1006
        %vm1015 = vmand %vm666, %vm1007
        %vm1016 = vmand %vm667, %vm1008
        %vm1017 = vmand %vm668, %vm1009
        %vm1018 = vmand %vm669, %vm1010
        %vm1019 = vmand %vm670, %vm1011
        %vm1020 = vmand %vm671, %vm1012
        %vm1021 = vmand %vm672, %vm1013
        %vm1022 = vmand %vm248, %vm1014
        %vm1023 = vmand %vm249, %vm1015
        %vm1024 = vmand %vm250, %vm1016
        %vm1025 = vmand %vm251, %vm1017
        %vm1026 = vmand %vm252, %vm1018
        %vm1027 = vmand %vm253, %vm1019
        %vm1028 = vmand %vm254, %vm1020
        %vm1029 = vmand %vm255, %vm1021
        %vm1030 = vmpackc.low %vm1023, %vm1022
        %vm1031 = vmpackc.even %vm1030, %vm1030
        %vm1032 = vmpackc.low %vm1025, %vm1024
        %vm1033 = vmpackc.even %vm1032, %vm1032
        %vm1034 = vmpackc.low %vm1027, %vm1026
        %vm1035 = vmpackc.even %vm1034, %vm1034
        %vm1036 = vmpackc.low %vm1029, %vm1028
        %vm1037 = vmpackc.even %vm1036, %vm1036
        %v1038 = vsel %vm1031, 16843009, 0
        %v1039 = vsel %vm1033, 16843009, 0
        %v1040 = vsel %vm1035, 16843009, 0
        %v1041 = vsel %vm1037, 16843009, 0
        %v1042 = vunpack.c.0.s8 %v1038
        %v1043 = vunpack.c.1.s8 %v1038
        %v1044 = vunpack.c.0.s8 %v1039
        %v1045 = vunpack.c.1.s8 %v1039
        %v1046 = vunpack.c.0.s8 %v1040
        %v1047 = vunpack.c.1.s8 %v1040
        %v1048 = vunpack.c.0.s8 %v1041
        %v1049 = vunpack.c.1.s8 %v1041
        %v1050 = vpack.c.b16 %v1042, %v1042
        %v1051 = vpack.c.b8 %v1050, %v1050
        %v1052 = vpack.c.b16 %v1043, %v1043
        %v1053 = vpack.c.b8 %v1052, %v1052
        %v1054 = vpack.c.b16 %v1044, %v1044
        %v1055 = vpack.c.b8 %v1054, %v1054
        %v1056 = vpack.c.b16 %v1045, %v1045
        %v1057 = vpack.c.b8 %v1056, %v1056
        %v1058 = vpack.c.b16 %v1046, %v1046
        %v1059 = vpack.c.b8 %v1058, %v1058
        %v1060 = vpack.c.b16 %v1047, %v1047
        %v1061 = vpack.c.b8 %v1060, %v1060
        %v1062 = vpack.c.b16 %v1048, %v1048
        %v1063 = vpack.c.b8 %v1062, %v1062
        %v1064 = vpack.c.b16 %v1049, %v1049
        %v1065 = vpack.c.b8 %v1064, %v1064
        %vm1066 = vcmask 123904
        %1067 = vst.msk [vmem:[%s153] sm:$0x3] %vm1066, %v1051
        %1068 = vst.msk [vmem:[%s153 + $0x2] sm:$0x3] %vm1066, %v1053
        %1069 = vst.msk [vmem:[%s153 + $0x4] sm:$0x3] %vm1066, %v1055
        %1070 = vst.msk [vmem:[%s153 + $0x6] sm:$0x3] %vm1066, %v1057
        %1071 = vst.msk [vmem:[%s153 + $0x8] sm:$0x3] %vm1066, %v1059
        %1072 = vst.msk [vmem:[%s153 + $0xa] sm:$0x3] %vm1066, %v1061
        %1073 = vst.msk [vmem:[%s153 + $0xc] sm:$0x3] %vm1066, %v1063
        %1074 = vst.msk [vmem:[%s153 + $0xe] sm:$0x3] %vm1066, %v1065
        %s1075 = sand.u32 %s68, 1
        %s1076 = scalar_lea.sflag [#allocation5], %s1075
        %s1077 = sand.u32 %s68, 1
        %s1078 = smul.addr %s1077, 16
        %s1079 = scalar_lea.vmem [#allocation6], %s1078
        // Predicated region
        $region29: #{tpu_custom_call.1} parent=23 // pred_check
          %p1080 = pneg %p78
        $region30: #{tpu_custom_call.1} parent=23 // pred_check_branch
          %1082 = sbr.rel (%p1080) target = $region32
        $region31: #{tpu_custom_call.1} parent=23 // pred_region
          %s1083 = smul.u32 4, %s23
          %s1085 = ssub.s32 256, 256
          %1086 = vsyncadd %s1076, %s1085
          %s1087 = smul.addr %s1083, 2
          %s1088 = smul.addr %s22, 8
          %s1089 = sadd.s32 %s1087, %s1088
          %s1090 = smul.addr %s1089, 32
          %s1091 = scalar_lea.hbm %s1, %s1090
          %s1092 = sshll.u32 %s1079, 4
          %s1093 = int_to_ptr.vmem [resolvable:$true] %s1092
          %1098 = dma.vmem_to_hbm [thread:$0]  %s1093, 256, %s1091, %s1076, 32, 32, 2
        $region32: #{tpu_custom_call.1} parent=23 // pred_fallthru
          _
      $region24: #{tpu_custom_call.1} parent=5 // pred_fallthru
        _
      %p1099 = scmp.le.s32.totalorder 2, %s13
      // Predicated region
      $region33: #{tpu_custom_call.1} parent=5 // pred_check
        %p1100 = pneg %p1099
      $region34: #{tpu_custom_call.1} parent=5 // pred_check_branch
        %1102 = sbr.rel (%p1100) target = $region36
      $region35: #{tpu_custom_call.1} parent=5 // pred_region
        %s1103 = ssub.s32 %s13, 2
        // Predicated region
        $region37: #{tpu_custom_call.1} parent=35 // pred_check
          %p1104 = pneg %p84
        $region38: #{tpu_custom_call.1} parent=35 // pred_check_branch
          %1106 = sbr.rel (%p1104) target = $region40
        $region39: #{tpu_custom_call.1} parent=35 // pred_region
          %s1107 = sand.u32 %s69, 1
          %s1108 = scalar_lea.sflag [#allocation5], %s1107
          %s1109 = sand.u32 %s69, 1
          %s1110 = smul.addr %s1109, 16
          %s1111 = scalar_lea.vmem [#allocation6], %s1110
          %1112 = dma.done %s1108, 256
        $region40: #{tpu_custom_call.1} parent=35 // pred_fallthru
          _
      $region36: #{tpu_custom_call.1} parent=5 // pred_fallthru
        _
    $region6: #{tpu_custom_call.1} parent=1 // loop_footer
      %s17 = sadd.s32 1, %s13
    $region7: #{tpu_custom_call.1} parent=1 // loop_footer_branch
      %12 = sbr.rel target = $region3
    $region8: #{tpu_custom_call.1} parent=1 // loop_exit
      _
    %1113 = vsyncpa [#allocation4], 1
    %s1114 = scalar_lea.sflag [#allocation4], 1
    %1115 = vsyncpa %s1114, 1
    %1116 = vsyncpa [#allocation5], 1
    %s1117 = scalar_lea.sflag [#allocation5], 1
    %1118 = vsyncpa %s1117, 1

// kernel: tpu_custom_call.1
$region0: #{tpu_custom_call.1}
  #allocation0 [shape = 'u32[]', space=smem, size = 0x4, offset = 0x4, fixed_abs, tag = 'smem constant byte address 0x4 - core index']
  #allocation1 [shape = 'u32[144,128]{1,0:T(1,128)}', space=vmem, size = 0x12000, scoped, tag = 'internal scratch']
  %s0 = inlined_call_operand.vmem [shape: f32[2,4,18,18], index: 0, kind: input, shape index: {}]
  %s1 = inlined_call_operand.vmem [shape: f32[2,1,16,16], index: 1, kind: input, shape index: {}]
  %s2 = inlined_call_operand.hbm [shape: s8[2,4,16,16], index: 2, kind: output, shape index: {}]
  %s3 = sld [smem:[#allocation0]]
  $region41: #{tpu_custom_call.1} parent=0
    _
  %s5 = ssub.s32 1, %s3
  %s6 = scalar_select 0, %s5, %s3
  $region1: #{tpu_custom_call.1} parent=0
    #allocation2 [shape = 'u8[16384]{0}', space=vmem, size = 0x4000, scoped, tag = 'output window, operand 0']
    #allocation3 [shape = 's32[2]{0}', space=sflag, size = 0x8, scoped, tag = 'scoped memory for tpu_custom_call.1']
    %7 = vsyncpa [#allocation3], 0
    %s8 = scalar_lea.sflag [#allocation3], 1
    %9 = vsyncpa %s8, 0
    loop: start=0, step=1, limit=4
    $region2: #{tpu_custom_call.1} parent=1 // loop_pre_header
      _
    $region3: #{tpu_custom_call.1} parent=1 // loop_header
      %s11 = sphi 0, %s15
      %p12 = scmp.ge.s32.totalorder %s11, 4
      %s18 = sphi 0, %s30
      %s19 = sphi 0, %s26
      %s20 = sphi 0, %s18
      %s21 = sphi 0, %s19
      %s22 = sphi 0, %s20
      %s23 = sphi 0, %s21
      %s35 = sphi 0, %s37
      %s38 = sphi 0, %s35
      %s39 = sphi 0, %s38
      %s55 = sphi 0, %s39
      %s61 = sphi 0, %s63
      %s64 = sphi 0, %s61
      %s65 = sphi 0, %s64
      %s81 = sphi 0, %s65
      %s89 = sphi 0, %s91
      %s92 = sphi 0, %s89
      %s93 = sphi 0, %s92
      %s109 = sphi 0, %s93
    $region4: #{tpu_custom_call.1} parent=1 // loop_header_branch
      %14 = sbr.rel (%p12) target = $region8
    $region5: #{tpu_custom_call.1} parent=1 // loop_body
      %s16 = ssub.s32 %s11, 1
      %s17 = ssub.s32 %s11, 2
      %s24 = sadd.s32 1, %s19
      %p25 = scmp.ge.s32.totalorder %s24, 1
      %s26 = scalar_select %p25, 0, %s24
      %s27 = sadd.s32 1, %s18
      %s28 = scalar_select %p25, %s27, %s18
      %p29 = scmp.ge.s32.totalorder %s28, 2
      %s30 = scalar_select %p29, 0, %s28
      %s31 = ssub.s32 %s18, %s30
      %s32 = ssub.s32 %s19, %s26
      %s33 = sor.u32 %s31, %s32
      %p34 = scmp.eq.s32.totalorder %s33, 0
      %s36 = sadd.s32 %s35, 1
      %s37 = scalar_select %p34, %s35, %s36
      %p40 = pneg %p34
      %p41 = scmp.eq.s32.totalorder %s11, 1
      %p42 = por %p40, %p41
      %p43 = scmp.ne.s32.totalorder %s35, %s38
      %p44 = scmp.eq.s32.totalorder %s11, 0
      %p45 = por %p43, %p44
      %p46 = scmp.ne.s32.totalorder %s35, %s38
      %p47 = scmp.eq.s32.totalorder %s16, 1
      %p48 = por %p46, %p47
      %p49 = scmp.ne.s32.totalorder %s38, %s39
      %p50 = scmp.eq.s32.totalorder %s16, 0
      %p51 = por %p49, %p50
      %p52 = scmp.ne.s32.totalorder %s38, %s39
      %p53 = scmp.eq.s32.totalorder %s17, 1
      %p54 = por %p52, %p53
      %p56 = scmp.ne.s32.totalorder %s39, %s55
      %p57 = scmp.eq.s32.totalorder %s17, 0
      %p58 = por %p56, %p57
      %s59 = ssub.s32 %s18, %s30
      %p60 = scmp.eq.s32.totalorder %s59, 0
      %s62 = sadd.s32 %s61, 1
      %s63 = scalar_select %p60, %s61, %s62
      %p66 = pneg %p60
      %p67 = scmp.eq.s32.totalorder %s11, 1
      %p68 = por %p66, %p67
      %p69 = scmp.ne.s32.totalorder %s61, %s64
      %p70 = scmp.eq.s32.totalorder %s11, 0
      %p71 = por %p69, %p70
      %p72 = scmp.ne.s32.totalorder %s61, %s64
      %p73 = scmp.eq.s32.totalorder %s16, 1
      %p74 = por %p72, %p73
      %p75 = scmp.ne.s32.totalorder %s64, %s65
      %p76 = scmp.eq.s32.totalorder %s16, 0
      %p77 = por %p75, %p76
      %p78 = scmp.ne.s32.totalorder %s64, %s65
      %p79 = scmp.eq.s32.totalorder %s17, 1
      %p80 = por %p78, %p79
      %p82 = scmp.ne.s32.totalorder %s65, %s81
      %p83 = scmp.eq.s32.totalorder %s17, 0
      %p84 = por %p82, %p83
      %s85 = ssub.s32 %s18, %s30
      %s86 = ssub.s32 %s19, %s26
      %s87 = sor.u32 %s85, %s86
      %p88 = scmp.eq.s32.totalorder %s87, 0
      %s90 = sadd.s32 %s89, 1
      %s91 = scalar_select %p88, %s89, %s90
      %p94 = pneg %p88
      %p95 = scmp.eq.s32.totalorder %s11, 1
      %p96 = por %p94, %p95
      %p97 = scmp.ne.s32.totalorder %s89, %s92
      %p98 = scmp.eq.s32.totalorder %s11, 0
      %p99 = por %p97, %p98
      %p100 = scmp.ne.s32.totalorder %s89, %s92
      %p101 = scmp.eq.s32.totalorder %s16, 1
      %p102 = por %p100, %p101
      %p103 = scmp.ne.s32.totalorder %s92, %s93
      %p104 = scmp.eq.s32.totalorder %s16, 0
      %p105 = por %p103, %p104
      %p106 = scmp.ne.s32.totalorder %s92, %s93
      %p107 = scmp.eq.s32.totalorder %s17, 1
      %p108 = por %p106, %p107
      %p110 = scmp.ne.s32.totalorder %s93, %s109
      %p111 = scmp.eq.s32.totalorder %s17, 0
      %p112 = por %p110, %p111
      %p113 = scmp.le.s32.totalorder 1, %s11
      %p114 = scmp.lt.s32.totalorder %s11, 3
      %p115 = pnand %p113, %p114
      %p116 = pneg %p115
      // Predicated region
      $region9: #{tpu_custom_call.1} parent=5 // pred_check
        _
      $region10: #{tpu_custom_call.1} parent=5 // pred_check_branch
        %118 = sbr.rel (%p115) target = $region12
      $region11: #{tpu_custom_call.1} parent=5 // pred_region
        %s119 = ssub.s32 %s11, 1
      $region12: #{tpu_custom_call.1} parent=5 // pred_fallthru
        _
      %p120 = scmp.lt.s32.totalorder %s11, 2
      // Predicated region
      $region13: #{tpu_custom_call.1} parent=5 // pred_check
        %p121 = pneg %p120
      $region14: #{tpu_custom_call.1} parent=5 // pred_check_branch
        %123 = sbr.rel (%p121) target = $region16
      $region15: #{tpu_custom_call.1} parent=5 // pred_region
        // Predicated region
        $region17: #{tpu_custom_call.1} parent=15 // pred_check
          %p124 = pneg %p45
        $region18: #{tpu_custom_call.1} parent=15 // pred_check_branch
          %126 = sbr.rel (%p124) target = $region20
        $region19: #{tpu_custom_call.1} parent=15 // pred_region
          %s127 = smul.u32 4, %s19
          %p128 = scmp.lt.s32.totalorder %s18, 1
          %s129 = scalar_select %p128, %s18, 1
          %p130 = scmp.lt.s32.totalorder %s127, 3
          %s131 = scalar_select %p130, %s127, 3
          %s132 = smul.addr %s131, 3
          %s133 = smul.addr %s129, 12
          %s134 = sadd.s32 %s132, %s133
          %s135 = smul.addr %s134, 8
          %s136 = scalar_lea.vmem %s0, %s135
          %s137 = smul.u32 4, %s19
        $region20: #{tpu_custom_call.1} parent=15 // pred_fallthru
          _
        // Predicated region
        $region21: #{tpu_custom_call.1} parent=15 // pred_check
          %p138 = pneg %p71
        $region22: #{tpu_custom_call.1} parent=15 // pred_check_branch
          %140 = sbr.rel (%p138) target = $region24
        $region23: #{tpu_custom_call.1} parent=15 // pred_region
          %p141 = scmp.lt.s32.totalorder %s18, 1
          %s142 = scalar_select %p141, %s18, 1
          %s143 = smul.addr %s142, 2
          %s144 = smul.addr %s143, 8
          %s145 = scalar_lea.vmem %s1, %s144
        $region24: #{tpu_custom_call.1} parent=15 // pred_fallthru
          _
      $region16: #{tpu_custom_call.1} parent=5 // pred_fallthru
        _
      %p146 = scmp.le.s32.totalorder 1, %s11
      %p147 = scmp.lt.s32.totalorder %s11, 3
      %p148 = pnand %p146, %p147
      %p149 = pneg %p148
      // Predicated region
      $region25: #{tpu_custom_call.1} parent=5 // pred_check
        _
      $region26: #{tpu_custom_call.1} parent=5 // pred_check_branch
        %151 = sbr.rel (%p148) target = $region28
      $region27: #{tpu_custom_call.1} parent=5 // pred_region
        %s152 = ssub.s32 %s11, 1
        %s153 = smul.u32 4, %s21
        %p154 = scmp.lt.s32.totalorder %s20, 1
        %s155 = scalar_select %p154, %s20, 1
        %p156 = scmp.lt.s32.totalorder %s153, 3
        %s157 = scalar_select %p156, %s153, 3
        %s158 = smul.addr %s157, 3
        %s159 = smul.addr %s155, 12
        %s160 = sadd.s32 %s158, %s159
        %s161 = smul.addr %s160, 8
        %s162 = scalar_lea.vmem %s0, %s161
        %p163 = pneg %p51
        %p164 = pneg %p48
        %p165 = scmp.lt.s32.totalorder %s20, 1
        %s166 = scalar_select %p165, %s20, 1
        %s167 = smul.addr %s166, 2
        %s168 = smul.addr %s167, 8
        %s169 = scalar_lea.vmem %s1, %s168
        %p170 = pneg %p77
        %p171 = pneg %p74
        %p172 = pneg %p105
        %p173 = pneg %p102
        %s174 = sand.u32 %s92, 1
        %s175 = scalar_lea.sflag [#allocation3], %s174
        %s176 = sand.u32 %s92, 1
        %s177 = smul.addr %s176, 16
        %s178 = scalar_lea.vmem [#allocation2], %s177
        %s179 = smul.u32 4, %s21
        %p180 = scmp.lt.s32.totalorder %s20, 1
        %s181 = scalar_select %p180, %s20, 1
        %p182 = scmp.lt.s32.totalorder %s179, 3
        %s183 = scalar_select %p182, %s179, 3
        %s184 = smul.addr %s183, 3
        %s185 = smul.addr %s181, 12
        %s186 = sadd.s32 %s184, %s185
        %s187 = smul.addr %s186, 8
        %s188 = scalar_lea.vmem %s0, %s187
        %s189 = smul.u32 4, %s21
        %p190 = scmp.lt.s32.totalorder %s20, 1
        %s191 = scalar_select %p190, %s20, 1
        %s192 = smul.addr %s191, 2
        %s193 = smul.addr %s192, 8
        %s194 = scalar_lea.vmem %s1, %s193
        %s195 = smul.u32 4, %s21
        %v198 = vld [vmem:[%s188] sm:$0xff]
        %v199 = vld [vmem:[%s188 + $0x8] sm:$0xff]
        %v200 = vld [vmem:[%s188 + $0x10] sm:$0x3]
        %v201 = vld [vmem:[%s188 + $0x18] sm:$0xff]
        %v202 = vld [vmem:[%s188 + $0x20] sm:$0xff]
        %v203 = vld [vmem:[%s188 + $0x28] sm:$0x3]
        %v204 = vld [vmem:[%s188 + $0x30] sm:$0xff]
        %v205 = vld [vmem:[%s188 + $0x38] sm:$0xff]
        %v206 = vld [vmem:[%s188 + $0x40] sm:$0x3]
        %v207 = vld [vmem:[%s188 + $0x48] sm:$0xff]
        %v208 = vld [vmem:[%s188 + $0x50] sm:$0xff]
        %v209 = vld [vmem:[%s188 + $0x58] sm:$0x3]
        %v210 = vld [vmem:[%s194] sm:$0xff]
        %v211 = vld [vmem:[%s194 + $0x8] sm:$0xff]
        %vm214 = vcmask 1040384
        %v215 = vrot.slane %v210, 7
        %v216 = vrot.slane %v211, 7
        %v217 = vsel %vm214, %v215, %v216
        %218 = vrot.lane.b32.xlu0 %v215, 1
        %v219 = vpop.permute.xlu0 %218
        %220 = vrot.lane.b32.xlu0 %v217, 1
        %v221 = vpop.permute.xlu0 %220
        %222 = vrot.lane.b32.xlu0 %v216, 1
        %v223 = vpop.permute.xlu0 %222
        %vm227 = vcmp.eq.f32.partialorder %v198, %v219
        %vm228 = vcmp.eq.f32.partialorder %v199, %v221
        %vm229 = vcmp.eq.f32.partialorder %v200, %v223
        %vm230 = vcmp.eq.f32.partialorder %v201, %v219
        %vm231 = vcmp.eq.f32.partialorder %v202, %v221
        %vm232 = vcmp.eq.f32.partialorder %v203, %v223
        %vm233 = vcmp.eq.f32.partialorder %v204, %v219
        %vm234 = vcmp.eq.f32.partialorder %v205, %v221
        %vm235 = vcmp.eq.f32.partialorder %v206, %v223
        %vm236 = vcmp.eq.f32.partialorder %v207, %v219
        %vm237 = vcmp.eq.f32.partialorder %v208, %v221
        %vm238 = vcmp.eq.f32.partialorder %v209, %v223
        %v239 = vlaneseq
        %v240 = vshrl.u32 %v239, 7
        %v241 = vadd.s32 %v240, 8
        %v242 = vlaneseq
        %v243 = vand.u32 %v242, 127
        %vm244 = vcmp.eq.s32.totalorder %v240, 0
        %vm245 = vcmp.eq.s32.totalorder %v241, 0
        %vm246 = vcmp.eq.s32.totalorder %v240, 15
        %vm247 = vcmp.eq.s32.totalorder %v241, 15
        %vm248 = vcmp.eq.s32.totalorder %v243, 0
        %vm249 = vcmp.eq.s32.totalorder %v243, 15
        %vm250 = vmor %vm244, %vm248
        %vm251 = vmor %vm245, %vm248
        %vm252 = vmor %vm244, %vm249
        %vm253 = vmor %vm245, %vm249
        %vm254 = vmor %vm246, %vm248
        %vm255 = vmor %vm247, %vm248
        %vm256 = vmor %vm246, %vm249
        %vm257 = vmor %vm247, %vm249
        %v258 = vsel %vm244, 1, 0
        %v259 = vsel %vm245, 1, 0
        %vm260 = vcmp.eq.s32.totalorder %v258, 1
        %vm261 = vcmp.eq.s32.totalorder %v259, 1
        %v262 = vsel %vm260, -inf, %v198
        %v263 = vsel %vm261, -inf, %v199
        %v264 = vsel %vm260, -inf, %v201
        %v265 = vsel %vm261, -inf, %v202
        %v266 = vsel %vm260, -inf, %v204
        %v267 = vsel %vm261, -inf, %v205
        %v268 = vsel %vm260, -inf, %v207
        %v269 = vsel %vm261, -inf, %v208
        %v278 = vrot.slane %v262, 7
        %v279 = vrot.slane %v263, 7
        %v280 = vsel %vm214, %v278, %v279
        %v281 = vrot.slane %v264, 7
        %v282 = vrot.slane %v265, 7
        %v283 = vsel %vm214, %v281, %v282
        %v284 = vrot.slane %v266, 7
        %v285 = vrot.slane %v267, 7
        %v286 = vsel %vm214, %v284, %v285
        %v287 = vrot.slane %v268, 7
        %v288 = vrot.slane %v269, 7
        %v289 = vsel %vm214, %v287, %v288
        %v302 = vmax.f32 %v198, %v278
        %v303 = vmax.f32 %v199, %v280
        %v304 = vmax.f32 %v200, %v279
        %v305 = vmax.f32 %v201, %v281
        %v306 = vmax.f32 %v202, %v283
        %v307 = vmax.f32 %v203, %v282
        %v308 = vmax.f32 %v204, %v284
        %v309 = vmax.f32 %v205, %v286
        %v310 = vmax.f32 %v206, %v285
        %v311 = vmax.f32 %v207, %v287
        %v312 = vmax.f32 %v208, %v289
        %v313 = vmax.f32 %v209, %v288
        %v314 = vsel %vm246, 1, 0
        %v315 = vsel %vm247, 1, 0
        %vm316 = vcmp.eq.s32.totalorder %v314, 1
        %vm317 = vcmp.eq.s32.totalorder %v315, 1
        %vm330 = vcmask 1045504
        %v331 = vrot.slane %v198, 2
        %v332 = vrot.slane %v199, 2
        %v333 = vsel %vm330, %v331, %v332
        %v334 = vrot.slane %v200, 2
        %v335 = vsel %vm330, %v332, %v334
        %v336 = vrot.slane %v201, 2
        %v337 = vrot.slane %v202, 2
        %v338 = vsel %vm330, %v336, %v337
        %v339 = vrot.slane %v203, 2
        %v340 = vsel %vm330, %v337, %v339
        %v341 = vrot.slane %v204, 2
        %v342 = vrot.slane %v205, 2
        %v343 = vsel %vm330, %v341, %v342
        %v344 = vrot.slane %v206, 2
        %v345 = vsel %vm330, %v342, %v344
        %v346 = vrot.slane %v207, 2
        %v347 = vrot.slane %v208, 2
        %v348 = vsel %vm330, %v346, %v347
        %v349 = vrot.slane %v209, 2
        %v350 = vsel %vm330, %v347, %v349
        %351 = vrot.lane.b32.xlu0 %v333, 127
        %v352 = vpop.permute.xlu0 %351
        %353 = vrot.lane.b32.xlu0 %v335, 127
        %v354 = vpop.permute.xlu0 %353
        %355 = vrot.lane.b32.xlu0 %v338, 127
        %v356 = vpop.permute.xlu0 %355
        %357 = vrot.lane.b32.xlu0 %v340, 127
        %v358 = vpop.permute.xlu0 %357
        %359 = vrot.lane.b32.xlu0 %v343, 127
        %v360 = vpop.permute.xlu0 %359
        %361 = vrot.lane.b32.xlu0 %v345, 127
        %v362 = vpop.permute.xlu0 %361
        %363 = vrot.lane.b32.xlu0 %v348, 127
        %v364 = vpop.permute.xlu0 %363
        %365 = vrot.lane.b32.xlu0 %v350, 127
        %v366 = vpop.permute.xlu0 %365
        %v375 = vsel %vm316, -inf, %v352
        %v376 = vsel %vm317, -inf, %v354
        %v377 = vsel %vm316, -inf, %v356
        %v378 = vsel %vm317, -inf, %v358
        %v379 = vsel %vm316, -inf, %v360
        %v380 = vsel %vm317, -inf, %v362
        %v381 = vsel %vm316, -inf, %v364
        %v382 = vsel %vm317, -inf, %v366
        %v391 = vrot.slane %v375, 7
        %v392 = vrot.slane %v376, 7
        %v393 = vsel %vm214, %v391, %v392
        %v394 = vrot.slane %v377, 7
        %v395 = vrot.slane %v378, 7
        %v396 = vsel %vm214, %v394, %v395
        %v397 = vrot.slane %v379, 7
        %v398 = vrot.slane %v380, 7
        %v399 = vsel %vm214, %v397, %v398
        %v400 = vrot.slane %v381, 7
        %v401 = vrot.slane %v382, 7
        %v402 = vsel %vm214, %v400, %v401
        %403 = vrot.lane.b32.xlu0 %v391, 1
        %v404 = vpop.permute.xlu0 %403
        %405 = vrot.lane.b32.xlu0 %v393, 1
        %v406 = vpop.permute.xlu0 %405
        %407 = vrot.lane.b32.xlu0 %v392, 1
        %v408 = vpop.permute.xlu0 %407
        %409 = vrot.lane.b32.xlu0 %v394, 1
        %v410 = vpop.permute.xlu0 %409
        %411 = vrot.lane.b32.xlu0 %v396, 1
        %v412 = vpop.permute.xlu0 %411
        %413 = vrot.lane.b32.xlu0 %v395, 1
        %v414 = vpop.permute.xlu0 %413
        %415 = vrot.lane.b32.xlu0 %v397, 1
        %v416 = vpop.permute.xlu0 %415
        %417 = vrot.lane.b32.xlu0 %v399, 1
        %v418 = vpop.permute.xlu0 %417
        %419 = vrot.lane.b32.xlu0 %v398, 1
        %v420 = vpop.permute.xlu0 %419
        %421 = vrot.lane.b32.xlu0 %v400, 1
        %v422 = vpop.permute.xlu0 %421
        %423 = vrot.lane.b32.xlu0 %v402, 1
        %v424 = vpop.permute.xlu0 %423
        %425 = vrot.lane.b32.xlu0 %v401, 1
        %v426 = vpop.permute.xlu0 %425
        %v439 = vmax.f32 %v302, %v404
        %v440 = vmax.f32 %v303, %v406
        %v441 = vmax.f32 %v304, %v408
        %v442 = vmax.f32 %v305, %v410
        %v443 = vmax.f32 %v306, %v412
        %v444 = vmax.f32 %v307, %v414
        %v445 = vmax.f32 %v308, %v416
        %v446 = vmax.f32 %v309, %v418
        %v447 = vmax.f32 %v310, %v420
        %v448 = vmax.f32 %v311, %v422
        %v449 = vmax.f32 %v312, %v424
        %v450 = vmax.f32 %v313, %v426
        %v451 = vsel %vm248, 1, 0
        %vm452 = vcmp.eq.s32.totalorder %v451, 1
        %v453 = vsel %vm452, -inf, %v198
        %v454 = vsel %vm452, -inf, %v199
        %v455 = vsel %vm452, -inf, %v200
        %v456 = vsel %vm452, -inf, %v201
        %v457 = vsel %vm452, -inf, %v202
        %v458 = vsel %vm452, -inf, %v203
        %v459 = vsel %vm452, -inf, %v204
        %v460 = vsel %vm452, -inf, %v205
        %v461 = vsel %vm452, -inf, %v206
        %v462 = vsel %vm452, -inf, %v207
        %v463 = vsel %vm452, -inf, %v208
        %v464 = vsel %vm452, -inf, %v209
        %477 = vrot.lane.b32.xlu0 %v453, 1
        %v478 = vpop.permute.xlu0 %477
        %479 = vrot.lane.b32.xlu0 %v454, 1
        %v480 = vpop.permute.xlu0 %479
        %481 = vrot.lane.b32.xlu0 %v455, 1
        %v482 = vpop.permute.xlu0 %481
        %483 = vrot.lane.b32.xlu0 %v456, 1
        %v484 = vpop.permute.xlu0 %483
        %485 = vrot.lane.b32.xlu0 %v457, 1
        %v486 = vpop.permute.xlu0 %485
        %487 = vrot.lane.b32.xlu0 %v458, 1
        %v488 = vpop.permute.xlu0 %487
        %489 = vrot.lane.b32.xlu0 %v459, 1
        %v490 = vpop.permute.xlu0 %489
        %491 = vrot.lane.b32.xlu0 %v460, 1
        %v492 = vpop.permute.xlu0 %491
        %493 = vrot.lane.b32.xlu0 %v461, 1
        %v494 = vpop.permute.xlu0 %493
        %495 = vrot.lane.b32.xlu0 %v462, 1
        %v496 = vpop.permute.xlu0 %495
        %497 = vrot.lane.b32.xlu0 %v463, 1
        %v498 = vpop.permute.xlu0 %497
        %499 = vrot.lane.b32.xlu0 %v464, 1
        %v500 = vpop.permute.xlu0 %499
        %v513 = vmax.f32 %v439, %v478
        %v514 = vmax.f32 %v440, %v480
        %v515 = vmax.f32 %v441, %v482
        %v516 = vmax.f32 %v442, %v484
        %v517 = vmax.f32 %v443, %v486
        %v518 = vmax.f32 %v444, %v488
        %v519 = vmax.f32 %v445, %v490
        %v520 = vmax.f32 %v446, %v492
        %v521 = vmax.f32 %v447, %v494
        %v522 = vmax.f32 %v448, %v496
        %v523 = vmax.f32 %v449, %v498
        %v524 = vmax.f32 %v450, %v500
        %v525 = vsel %vm249, 1, 0
        %vm526 = vcmp.eq.s32.totalorder %v525, 1
        %vm527 = vcmask 1046528
        %v528 = vrot.slane %v198, 1
        %v529 = vrot.slane %v199, 1
        %v530 = vsel %vm527, %v528, %v529
        %v531 = vrot.slane %v200, 1
        %v532 = vsel %vm527, %v529, %v531
        %v533 = vrot.slane %v201, 1
        %v534 = vrot.slane %v202, 1
        %v535 = vsel %vm527, %v533, %v534
        %v536 = vrot.slane %v203, 1
        %v537 = vsel %vm527, %v534, %v536
        %v538 = vrot.slane %v204, 1
        %v539 = vrot.slane %v205, 1
        %v540 = vsel %vm527, %v538, %v539
        %v541 = vrot.slane %v206, 1
        %v542 = vsel %vm527, %v539, %v541
        %v543 = vrot.slane %v207, 1
        %v544 = vrot.slane %v208, 1
        %v545 = vsel %vm527, %v543, %v544
        %v546 = vrot.slane %v209, 1
        %v547 = vsel %vm527, %v544, %v546
        %548 = vrot.lane.b32.xlu0 %v530, 126
        %v549 = vpop.permute.xlu0 %548
        %550 = vrot.lane.b32.xlu0 %v532, 126
        %v551 = vpop.permute.xlu0 %550
        %552 = vrot.lane.b32.xlu0 %v535, 126
        %v553 = vpop.permute.xlu0 %552
        %554 = vrot.lane.b32.xlu0 %v537, 126
        %v555 = vpop.permute.xlu0 %554
        %556 = vrot.lane.b32.xlu0 %v540, 126
        %v557 = vpop.permute.xlu0 %556
        %558 = vrot.lane.b32.xlu0 %v542, 126
        %v559 = vpop.permute.xlu0 %558
        %560 = vrot.lane.b32.xlu0 %v545, 126
        %v561 = vpop.permute.xlu0 %560
        %562 = vrot.lane.b32.xlu0 %v547, 126
        %v563 = vpop.permute.xlu0 %562
        %v572 = vsel %vm526, -inf, %v549
        %v573 = vsel %vm526, -inf, %v551
        %v574 = vsel %vm526, -inf, %v553
        %v575 = vsel %vm526, -inf, %v555
        %v576 = vsel %vm526, -inf, %v557
        %v577 = vsel %vm526, -inf, %v559
        %v578 = vsel %vm526, -inf, %v561
        %v579 = vsel %vm526, -inf, %v563
        %v588 = vrot.slane %v572, 7
        %v589 = vrot.slane %v573, 7
        %v590 = vsel %vm214, %v588, %v589
        %v591 = vrot.slane %v574, 7
        %v592 = vrot.slane %v575, 7
        %v593 = vsel %vm214, %v591, %v592
        %v594 = vrot.slane %v576, 7
        %v595 = vrot.slane %v577, 7
        %v596 = vsel %vm214, %v594, %v595
        %v597 = vrot.slane %v578, 7
        %v598 = vrot.slane %v579, 7
        %v599 = vsel %vm214, %v597, %v598
        %600 = vrot.lane.b32.xlu0 %v588, 1
        %v601 = vpop.permute.xlu0 %600
        %602 = vrot.lane.b32.xlu0 %v590, 1
        %v603 = vpop.permute.xlu0 %602
        %604 = vrot.lane.b32.xlu0 %v589, 1
        %v605 = vpop.permute.xlu0 %604
        %606 = vrot.lane.b32.xlu0 %v591, 1
        %v607 = vpop.permute.xlu0 %606
        %608 = vrot.lane.b32.xlu0 %v593, 1
        %v609 = vpop.permute.xlu0 %608
        %610 = vrot.lane.b32.xlu0 %v592, 1
        %v611 = vpop.permute.xlu0 %610
        %612 = vrot.lane.b32.xlu0 %v594, 1
        %v613 = vpop.permute.xlu0 %612
        %614 = vrot.lane.b32.xlu0 %v596, 1
        %v615 = vpop.permute.xlu0 %614
        %616 = vrot.lane.b32.xlu0 %v595, 1
        %v617 = vpop.permute.xlu0 %616
        %618 = vrot.lane.b32.xlu0 %v597, 1
        %v619 = vpop.permute.xlu0 %618
        %620 = vrot.lane.b32.xlu0 %v599, 1
        %v621 = vpop.permute.xlu0 %620
        %622 = vrot.lane.b32.xlu0 %v598, 1
        %v623 = vpop.permute.xlu0 %622
        %v636 = vmax.f32 %v513, %v601
        %v637 = vmax.f32 %v514, %v603
        %v638 = vmax.f32 %v515, %v605
        %v639 = vmax.f32 %v516, %v607
        %v640 = vmax.f32 %v517, %v609
        %v641 = vmax.f32 %v518, %v611
        %v642 = vmax.f32 %v519, %v613
        %v643 = vmax.f32 %v520, %v615
        %v644 = vmax.f32 %v521, %v617
        %v645 = vmax.f32 %v522, %v619
        %v646 = vmax.f32 %v523, %v621
        %v647 = vmax.f32 %v524, %v623
        %v648 = vsel %vm250, 1, 0
        %v649 = vsel %vm251, 1, 0
        %vm650 = vcmp.eq.s32.totalorder %v648, 1
        %vm651 = vcmp.eq.s32.totalorder %v649, 1
        %v652 = vsel %vm650, -inf, %v198
        %v653 = vsel %vm651, -inf, %v199
        %v654 = vsel %vm650, -inf, %v201
        %v655 = vsel %vm651, -inf, %v202
        %v656 = vsel %vm650, -inf, %v204
        %v657 = vsel %vm651, -inf, %v205
        %v658 = vsel %vm650, -inf, %v207
        %v659 = vsel %vm651, -inf, %v208
        %v668 = vrot.slane %v652, 7
        %v669 = vrot.slane %v653, 7
        %v670 = vsel %vm214, %v668, %v669
        %v671 = vrot.slane %v654, 7
        %v672 = vrot.slane %v655, 7
        %v673 = vsel %vm214, %v671, %v672
        %v674 = vrot.slane %v656, 7
        %v675 = vrot.slane %v657, 7
        %v676 = vsel %vm214, %v674, %v675
        %v677 = vrot.slane %v658, 7
        %v678 = vrot.slane %v659, 7
        %v679 = vsel %vm214, %v677, %v678
        %680 = vrot.lane.b32.xlu0 %v668, 1
        %v681 = vpop.permute.xlu0 %680
        %682 = vrot.lane.b32.xlu0 %v670, 1
        %v683 = vpop.permute.xlu0 %682
        %684 = vrot.lane.b32.xlu0 %v669, 1
        %v685 = vpop.permute.xlu0 %684
        %686 = vrot.lane.b32.xlu0 %v671, 1
        %v687 = vpop.permute.xlu0 %686
        %688 = vrot.lane.b32.xlu0 %v673, 1
        %v689 = vpop.permute.xlu0 %688
        %690 = vrot.lane.b32.xlu0 %v672, 1
        %v691 = vpop.permute.xlu0 %690
        %692 = vrot.lane.b32.xlu0 %v674, 1
        %v693 = vpop.permute.xlu0 %692
        %694 = vrot.lane.b32.xlu0 %v676, 1
        %v695 = vpop.permute.xlu0 %694
        %696 = vrot.lane.b32.xlu0 %v675, 1
        %v697 = vpop.permute.xlu0 %696
        %698 = vrot.lane.b32.xlu0 %v677, 1
        %v699 = vpop.permute.xlu0 %698
        %700 = vrot.lane.b32.xlu0 %v679, 1
        %v701 = vpop.permute.xlu0 %700
        %702 = vrot.lane.b32.xlu0 %v678, 1
        %v703 = vpop.permute.xlu0 %702
        %v716 = vmax.f32 %v636, %v681
        %v717 = vmax.f32 %v637, %v683
        %v718 = vmax.f32 %v638, %v685
        %v719 = vmax.f32 %v639, %v687
        %v720 = vmax.f32 %v640, %v689
        %v721 = vmax.f32 %v641, %v691
        %v722 = vmax.f32 %v642, %v693
        %v723 = vmax.f32 %v643, %v695
        %v724 = vmax.f32 %v644, %v697
        %v725 = vmax.f32 %v645, %v699
        %v726 = vmax.f32 %v646, %v701
        %v727 = vmax.f32 %v647, %v703
        %v728 = vsel %vm252, 1, 0
        %v729 = vsel %vm253, 1, 0
        %vm730 = vcmp.eq.s32.totalorder %v728, 1
        %vm731 = vcmp.eq.s32.totalorder %v729, 1
        %732 = vrot.lane.b32.xlu0 %v198, 126
        %v733 = vpop.permute.xlu0 %732
        %734 = vrot.lane.b32.xlu0 %v199, 126
        %v735 = vpop.permute.xlu0 %734
        %736 = vrot.lane.b32.xlu0 %v201, 126
        %v737 = vpop.permute.xlu0 %736
        %738 = vrot.lane.b32.xlu0 %v202, 126
        %v739 = vpop.permute.xlu0 %738
        %740 = vrot.lane.b32.xlu0 %v204, 126
        %v741 = vpop.permute.xlu0 %740
        %742 = vrot.lane.b32.xlu0 %v205, 126
        %v743 = vpop.permute.xlu0 %742
        %744 = vrot.lane.b32.xlu0 %v207, 126
        %v745 = vpop.permute.xlu0 %744
        %746 = vrot.lane.b32.xlu0 %v208, 126
        %v747 = vpop.permute.xlu0 %746
        %v756 = vsel %vm730, -inf, %v733
        %v757 = vsel %vm731, -inf, %v735
        %v758 = vsel %vm730, -inf, %v737
        %v759 = vsel %vm731, -inf, %v739
        %v760 = vsel %vm730, -inf, %v741
        %v761 = vsel %vm731, -inf, %v743
        %v762 = vsel %vm730, -inf, %v745
        %v763 = vsel %vm731, -inf, %v747
        %v772 = vrot.slane %v756, 7
        %v773 = vrot.slane %v757, 7
        %v774 = vsel %vm214, %v772, %v773
        %v775 = vrot.slane %v758, 7
        %v776 = vrot.slane %v759, 7
        %v777 = vsel %vm214, %v775, %v776
        %v778 = vrot.slane %v760, 7
        %v779 = vrot.slane %v761, 7
        %v780 = vsel %vm214, %v778, %v779
        %v781 = vrot.slane %v762, 7
        %v782 = vrot.slane %v763, 7
        %v783 = vsel %vm214, %v781, %v782
        %784 = vrot.lane.b32.xlu0 %v772, 1
        %v785 = vpop.permute.xlu0 %784
        %786 = vrot.lane.b32.xlu0 %v774, 1
        %v787 = vpop.permute.xlu0 %786
        %788 = vrot.lane.b32.xlu0 %v773, 1
        %v789 = vpop.permute.xlu0 %788
        %790 = vrot.lane.b32.xlu0 %v775, 1
        %v791 = vpop.permute.xlu0 %790
        %792 = vrot.lane.b32.xlu0 %v777, 1
        %v793 = vpop.permute.xlu0 %792
        %794 = vrot.lane.b32.xlu0 %v776, 1
        %v795 = vpop.permute.xlu0 %794
        %796 = vrot.lane.b32.xlu0 %v778, 1
        %v797 = vpop.permute.xlu0 %796
        %798 = vrot.lane.b32.xlu0 %v780, 1
        %v799 = vpop.permute.xlu0 %798
        %800 = vrot.lane.b32.xlu0 %v779, 1
        %v801 = vpop.permute.xlu0 %800
        %802 = vrot.lane.b32.xlu0 %v781, 1
        %v803 = vpop.permute.xlu0 %802
        %804 = vrot.lane.b32.xlu0 %v783, 1
        %v805 = vpop.permute.xlu0 %804
        %806 = vrot.lane.b32.xlu0 %v782, 1
        %v807 = vpop.permute.xlu0 %806
        %v820 = vmax.f32 %v716, %v785
        %v821 = vmax.f32 %v717, %v787
        %v822 = vmax.f32 %v718, %v789
        %v823 = vmax.f32 %v719, %v791
        %v824 = vmax.f32 %v720, %v793
        %v825 = vmax.f32 %v721, %v795
        %v826 = vmax.f32 %v722, %v797
        %v827 = vmax.f32 %v723, %v799
        %v828 = vmax.f32 %v724, %v801
        %v829 = vmax.f32 %v725, %v803
        %v830 = vmax.f32 %v726, %v805
        %v831 = vmax.f32 %v727, %v807
        %v832 = vsel %vm254, 1, 0
        %v833 = vsel %vm255, 1, 0
        %vm834 = vcmp.eq.s32.totalorder %v832, 1
        %vm835 = vcmp.eq.s32.totalorder %v833, 1
        %v844 = vsel %vm834, -inf, %v333
        %v845 = vsel %vm835, -inf, %v335
        %v846 = vsel %vm834, -inf, %v338
        %v847 = vsel %vm835, -inf, %v340
        %v848 = vsel %vm834, -inf, %v343
        %v849 = vsel %vm835, -inf, %v345
        %v850 = vsel %vm834, -inf, %v348
        %v851 = vsel %vm835, -inf, %v350
        %v860 = vrot.slane %v844, 7
        %v861 = vrot.slane %v845, 7
        %v862 = vsel %vm214, %v860, %v861
        %v863 = vrot.slane %v846, 7
        %v864 = vrot.slane %v847, 7
        %v865 = vsel %vm214, %v863, %v864
        %v866 = vrot.slane %v848, 7
        %v867 = vrot.slane %v849, 7
        %v868 = vsel %vm214, %v866, %v867
        %v869 = vrot.slane %v850, 7
        %v870 = vrot.slane %v851, 7
        %v871 = vsel %vm214, %v869, %v870
        %872 = vrot.lane.b32.xlu0 %v860, 1
        %v873 = vpop.permute.xlu0 %872
        %874 = vrot.lane.b32.xlu0 %v862, 1
        %v875 = vpop.permute.xlu0 %874
        %876 = vrot.lane.b32.xlu0 %v861, 1
        %v877 = vpop.permute.xlu0 %876
        %878 = vrot.lane.b32.xlu0 %v863, 1
        %v879 = vpop.permute.xlu0 %878
        %880 = vrot.lane.b32.xlu0 %v865, 1
        %v881 = vpop.permute.xlu0 %880
        %882 = vrot.lane.b32.xlu0 %v864, 1
        %v883 = vpop.permute.xlu0 %882
        %884 = vrot.lane.b32.xlu0 %v866, 1
        %v885 = vpop.permute.xlu0 %884
        %886 = vrot.lane.b32.xlu0 %v868, 1
        %v887 = vpop.permute.xlu0 %886
        %888 = vrot.lane.b32.xlu0 %v867, 1
        %v889 = vpop.permute.xlu0 %888
        %890 = vrot.lane.b32.xlu0 %v869, 1
        %v891 = vpop.permute.xlu0 %890
        %892 = vrot.lane.b32.xlu0 %v871, 1
        %v893 = vpop.permute.xlu0 %892
        %894 = vrot.lane.b32.xlu0 %v870, 1
        %v895 = vpop.permute.xlu0 %894
        %v908 = vmax.f32 %v820, %v873
        %v909 = vmax.f32 %v821, %v875
        %v910 = vmax.f32 %v822, %v877
        %v911 = vmax.f32 %v823, %v879
        %v912 = vmax.f32 %v824, %v881
        %v913 = vmax.f32 %v825, %v883
        %v914 = vmax.f32 %v826, %v885
        %v915 = vmax.f32 %v827, %v887
        %v916 = vmax.f32 %v828, %v889
        %v917 = vmax.f32 %v829, %v891
        %v918 = vmax.f32 %v830, %v893
        %v919 = vmax.f32 %v831, %v895
        %v920 = vsel %vm256, 1, 0
        %v921 = vsel %vm257, 1, 0
        %vm922 = vcmp.eq.s32.totalorder %v920, 1
        %vm923 = vcmp.eq.s32.totalorder %v921, 1
        %924 = vrot.lane.b32.xlu0 %v333, 126
        %v925 = vpop.permute.xlu0 %924
        %926 = vrot.lane.b32.xlu0 %v335, 126
        %v927 = vpop.permute.xlu0 %926
        %928 = vrot.lane.b32.xlu0 %v338, 126
        %v929 = vpop.permute.xlu0 %928
        %930 = vrot.lane.b32.xlu0 %v340, 126
        %v931 = vpop.permute.xlu0 %930
        %932 = vrot.lane.b32.xlu0 %v343, 126
        %v933 = vpop.permute.xlu0 %932
        %934 = vrot.lane.b32.xlu0 %v345, 126
        %v935 = vpop.permute.xlu0 %934
        %936 = vrot.lane.b32.xlu0 %v348, 126
        %v937 = vpop.permute.xlu0 %936
        %938 = vrot.lane.b32.xlu0 %v350, 126
        %v939 = vpop.permute.xlu0 %938
        %v948 = vsel %vm922, -inf, %v925
        %v949 = vsel %vm923, -inf, %v927
        %v950 = vsel %vm922, -inf, %v929
        %v951 = vsel %vm923, -inf, %v931
        %v952 = vsel %vm922, -inf, %v933
        %v953 = vsel %vm923, -inf, %v935
        %v954 = vsel %vm922, -inf, %v937
        %v955 = vsel %vm923, -inf, %v939
        %v964 = vrot.slane %v948, 7
        %v965 = vrot.slane %v949, 7
        %v966 = vsel %vm214, %v964, %v965
        %v967 = vrot.slane %v950, 7
        %v968 = vrot.slane %v951, 7
        %v969 = vsel %vm214, %v967, %v968
        %v970 = vrot.slane %v952, 7
        %v971 = vrot.slane %v953, 7
        %v972 = vsel %vm214, %v970, %v971
        %v973 = vrot.slane %v954, 7
        %v974 = vrot.slane %v955, 7
        %v975 = vsel %vm214, %v973, %v974
        %976 = vrot.lane.b32.xlu0 %v964, 1
        %v977 = vpop.permute.xlu0 %976
        %978 = vrot.lane.b32.xlu0 %v966, 1
        %v979 = vpop.permute.xlu0 %978
        %980 = vrot.lane.b32.xlu0 %v965, 1
        %v981 = vpop.permute.xlu0 %980
        %982 = vrot.lane.b32.xlu0 %v967, 1
        %v983 = vpop.permute.xlu0 %982
        %984 = vrot.lane.b32.xlu0 %v969, 1
        %v985 = vpop.permute.xlu0 %984
        %986 = vrot.lane.b32.xlu0 %v968, 1
        %v987 = vpop.permute.xlu0 %986
        %988 = vrot.lane.b32.xlu0 %v970, 1
        %v989 = vpop.permute.xlu0 %988
        %990 = vrot.lane.b32.xlu0 %v972, 1
        %v991 = vpop.permute.xlu0 %990
        %992 = vrot.lane.b32.xlu0 %v971, 1
        %v993 = vpop.permute.xlu0 %992
        %994 = vrot.lane.b32.xlu0 %v973, 1
        %v995 = vpop.permute.xlu0 %994
        %996 = vrot.lane.b32.xlu0 %v975, 1
        %v997 = vpop.permute.xlu0 %996
        %998 = vrot.lane.b32.xlu0 %v974, 1
        %v999 = vpop.permute.xlu0 %998
        %v1012 = vmax.f32 %v908, %v977
        %v1013 = vmax.f32 %v909, %v979
        %v1014 = vmax.f32 %v910, %v981
        %v1015 = vmax.f32 %v911, %v983
        %v1016 = vmax.f32 %v912, %v985
        %v1017 = vmax.f32 %v913, %v987
        %v1018 = vmax.f32 %v914, %v989
        %v1019 = vmax.f32 %v915, %v991
        %v1020 = vmax.f32 %v916, %v993
        %v1021 = vmax.f32 %v917, %v995
        %v1022 = vmax.f32 %v918, %v997
        %v1023 = vmax.f32 %v919, %v999
        %vm1024 = vcmp.eq.f32.partialorder %v198, %v1012
        %vm1025 = vcmp.eq.f32.partialorder %v199, %v1013
        %vm1026 = vcmp.eq.f32.partialorder %v200, %v1014
        %vm1027 = vcmp.eq.f32.partialorder %v201, %v1015
        %vm1028 = vcmp.eq.f32.partialorder %v202, %v1016
        %vm1029 = vcmp.eq.f32.partialorder %v203, %v1017
        %vm1030 = vcmp.eq.f32.partialorder %v204, %v1018
        %vm1031 = vcmp.eq.f32.partialorder %v205, %v1019
        %vm1032 = vcmp.eq.f32.partialorder %v206, %v1020
        %vm1033 = vcmp.eq.f32.partialorder %v207, %v1021
        %vm1034 = vcmp.eq.f32.partialorder %v208, %v1022
        %vm1035 = vcmp.eq.f32.partialorder %v209, %v1023
        %v1036 = vmul.f32 %v198, 2.0
        %v1037 = vmul.f32 %v199, 2.0
        %v1038 = vmul.f32 %v200, 2.0
        %v1039 = vmul.f32 %v201, 2.0
        %v1040 = vmul.f32 %v202, 2.0
        %v1041 = vmul.f32 %v203, 2.0
        %v1042 = vmul.f32 %v204, 2.0
        %v1043 = vmul.f32 %v205, 2.0
        %v1044 = vmul.f32 %v206, 2.0
        %v1045 = vmul.f32 %v207, 2.0
        %v1046 = vmul.f32 %v208, 2.0
        %v1047 = vmul.f32 %v209, 2.0
        %v1060 = vrot.slane %v1036, 1
        %v1061 = vrot.slane %v1037, 1
        %v1062 = vsel %vm527, %v1060, %v1061
        %v1063 = vrot.slane %v1038, 1
        %v1064 = vsel %vm527, %v1061, %v1063
        %v1065 = vrot.slane %v1039, 1
        %v1066 = vrot.slane %v1040, 1
        %v1067 = vsel %vm527, %v1065, %v1066
        %v1068 = vrot.slane %v1041, 1
        %v1069 = vsel %vm527, %v1066, %v1068
        %v1070 = vrot.slane %v1042, 1
        %v1071 = vrot.slane %v1043, 1
        %v1072 = vsel %vm527, %v1070, %v1071
        %v1073 = vrot.slane %v1044, 1
        %v1074 = vsel %vm527, %v1071, %v1073
        %v1075 = vrot.slane %v1045, 1
        %v1076 = vrot.slane %v1046, 1
        %v1077 = vsel %vm527, %v1075, %v1076
        %v1078 = vrot.slane %v1047, 1
        %v1079 = vsel %vm527, %v1076, %v1078
        %v1088 = vsub.f32 %v198, %v1062
        %v1089 = vsub.f32 %v199, %v1064
        %v1090 = vsub.f32 %v201, %v1067
        %v1091 = vsub.f32 %v202, %v1069
        %v1092 = vsub.f32 %v204, %v1072
        %v1093 = vsub.f32 %v205, %v1074
        %v1094 = vsub.f32 %v207, %v1077
        %v1095 = vsub.f32 %v208, %v1079
        %v1096 = vadd.f32 %v1088, %v333
        %v1097 = vadd.f32 %v1089, %v335
        %v1098 = vadd.f32 %v1090, %v338
        %v1099 = vadd.f32 %v1091, %v340
        %v1100 = vadd.f32 %v1092, %v343
        %v1101 = vadd.f32 %v1093, %v345
        %v1102 = vadd.f32 %v1094, %v348
        %v1103 = vadd.f32 %v1095, %v350
        %1104 = vrot.lane.b32.xlu0 %v1036, 127
        %v1105 = vpop.permute.xlu0 %1104
        %1106 = vrot.lane.b32.xlu0 %v1037, 127
        %v1107 = vpop.permute.xlu0 %1106
        %1108 = vrot.lane.b32.xlu0 %v1038, 127
        %v1109 = vpop.permute.xlu0 %1108
        %1110 = vrot.lane.b32.xlu0 %v1039, 127
        %v1111 = vpop.permute.xlu0 %1110
        %1112 = vrot.lane.b32.xlu0 %v1040, 127
        %v1113 = vpop.permute.xlu0 %1112
        %1114 = vrot.lane.b32.xlu0 %v1041, 127
        %v1115 = vpop.permute.xlu0 %1114
        %1116 = vrot.lane.b32.xlu0 %v1042, 127
        %v1117 = vpop.permute.xlu0 %1116
        %1118 = vrot.lane.b32.xlu0 %v1043, 127
        %v1119 = vpop.permute.xlu0 %1118
        %1120 = vrot.lane.b32.xlu0 %v1044, 127
        %v1121 = vpop.permute.xlu0 %1120
        %1122 = vrot.lane.b32.xlu0 %v1045, 127
        %v1123 = vpop.permute.xlu0 %1122
        %1124 = vrot.lane.b32.xlu0 %v1046, 127
        %v1125 = vpop.permute.xlu0 %1124
        %1126 = vrot.lane.b32.xlu0 %v1047, 127
        %v1127 = vpop.permute.xlu0 %1126
        %v1140 = vsub.f32 %v198, %v1105
        %v1141 = vsub.f32 %v199, %v1107
        %v1142 = vsub.f32 %v200, %v1109
        %v1143 = vsub.f32 %v201, %v1111
        %v1144 = vsub.f32 %v202, %v1113
        %v1145 = vsub.f32 %v203, %v1115
        %v1146 = vsub.f32 %v204, %v1117
        %v1147 = vsub.f32 %v205, %v1119
        %v1148 = vsub.f32 %v206, %v1121
        %v1149 = vsub.f32 %v207, %v1123
        %v1150 = vsub.f32 %v208, %v1125
        %v1151 = vsub.f32 %v209, %v1127
        %1152 = vrot.lane.b32.xlu0 %v200, 126
        %v1153 = vpop.permute.xlu0 %1152
        %1154 = vrot.lane.b32.xlu0 %v203, 126
        %v1155 = vpop.permute.xlu0 %1154
        %1156 = vrot.lane.b32.xlu0 %v206, 126
        %v1157 = vpop.permute.xlu0 %1156
        %1158 = vrot.lane.b32.xlu0 %v209, 126
        %v1159 = vpop.permute.xlu0 %1158
        %v1164 = vadd.f32 %v1140, %v733
        %v1165 = vadd.f32 %v1141, %v735
        %v1166 = vadd.f32 %v1142, %v1153
        %v1167 = vadd.f32 %v1143, %v737
        %v1168 = vadd.f32 %v1144, %v739
        %v1169 = vadd.f32 %v1145, %v1155
        %v1170 = vadd.f32 %v1146, %v741
        %v1171 = vadd.f32 %v1147, %v743
        %v1172 = vadd.f32 %v1148, %v1157
        %v1173 = vadd.f32 %v1149, %v745
        %v1174 = vadd.f32 %v1150, %v747
        %v1175 = vadd.f32 %v1151, %v1159
        %v1176 = vsub.f32 %v198, %v733
        %v1177 = vsub.f32 %v199, %v735
        %v1178 = vsub.f32 %v201, %v737
        %v1179 = vsub.f32 %v202, %v739
        %v1180 = vsub.f32 %v204, %v741
        %v1181 = vsub.f32 %v205, %v743
        %v1182 = vsub.f32 %v207, %v745
        %v1183 = vsub.f32 %v208, %v747
        %v1184 = vsub.f32 %v1176, %v333
        %v1185 = vsub.f32 %v1177, %v335
        %v1186 = vsub.f32 %v1178, %v338
        %v1187 = vsub.f32 %v1179, %v340
        %v1188 = vsub.f32 %v1180, %v343
        %v1189 = vsub.f32 %v1181, %v345
        %v1190 = vsub.f32 %v1182, %v348
        %v1191 = vsub.f32 %v1183, %v350
        %v1192 = vadd.f32 %v1184, %v925
        %v1193 = vadd.f32 %v1185, %v927
        %v1194 = vadd.f32 %v1186, %v929
        %v1195 = vadd.f32 %v1187, %v931
        %v1196 = vadd.f32 %v1188, %v933
        %v1197 = vadd.f32 %v1189, %v935
        %v1198 = vadd.f32 %v1190, %v937
        %v1199 = vadd.f32 %v1191, %v939
        %v1200 = vmul.f32 %v1192, 0.25
        %v1201 = vmul.f32 %v1193, 0.25
        %v1202 = vmul.f32 %v1194, 0.25
        %v1203 = vmul.f32 %v1195, 0.25
        %v1204 = vmul.f32 %v1196, 0.25
        %v1205 = vmul.f32 %v1197, 0.25
        %v1206 = vmul.f32 %v1198, 0.25
        %v1207 = vmul.f32 %v1199, 0.25
        %v1220 = vrot.slane %v1164, 1
        %v1221 = vrot.slane %v1165, 1
        %v1222 = vsel %vm527, %v1220, %v1221
        %v1223 = vrot.slane %v1166, 1
        %v1224 = vsel %vm527, %v1221, %v1223
        %v1225 = vrot.slane %v1167, 1
        %v1226 = vrot.slane %v1168, 1
        %v1227 = vsel %vm527, %v1225, %v1226
        %v1228 = vrot.slane %v1169, 1
        %v1229 = vsel %vm527, %v1226, %v1228
        %v1230 = vrot.slane %v1170, 1
        %v1231 = vrot.slane %v1171, 1
        %v1232 = vsel %vm527, %v1230, %v1231
        %v1233 = vrot.slane %v1172, 1
        %v1234 = vsel %vm527, %v1231, %v1233
        %v1235 = vrot.slane %v1173, 1
        %v1236 = vrot.slane %v1174, 1
        %v1237 = vsel %vm527, %v1235, %v1236
        %v1238 = vrot.slane %v1175, 1
        %v1239 = vsel %vm527, %v1236, %v1238
        %1240 = vrot.lane.b32.xlu0 %v1222, 1
        %v1241 = vpop.permute.xlu0 %1240
        %1242 = vrot.lane.b32.xlu0 %v1224, 1
        %v1243 = vpop.permute.xlu0 %1242
        %1244 = vrot.lane.b32.xlu0 %v1227, 1
        %v1245 = vpop.permute.xlu0 %1244
        %1246 = vrot.lane.b32.xlu0 %v1229, 1
        %v1247 = vpop.permute.xlu0 %1246
        %1248 = vrot.lane.b32.xlu0 %v1232, 1
        %v1249 = vpop.permute.xlu0 %1248
        %1250 = vrot.lane.b32.xlu0 %v1234, 1
        %v1251 = vpop.permute.xlu0 %1250
        %1252 = vrot.lane.b32.xlu0 %v1237, 1
        %v1253 = vpop.permute.xlu0 %1252
        %1254 = vrot.lane.b32.xlu0 %v1239, 1
        %v1255 = vpop.permute.xlu0 %1254
        %v1264 = vmul.f32 %v1096, %v1241
        %v1265 = vmul.f32 %v1097, %v1243
        %v1266 = vmul.f32 %v1098, %v1245
        %v1267 = vmul.f32 %v1099, %v1247
        %v1268 = vmul.f32 %v1100, %v1249
        %v1269 = vmul.f32 %v1101, %v1251
        %v1270 = vmul.f32 %v1102, %v1253
        %v1271 = vmul.f32 %v1103, %v1255
        %v1272 = vmul.f32 %v1200, %v1200
        %v1273 = vmul.f32 %v1201, %v1201
        %v1274 = vmul.f32 %v1202, %v1202
        %v1275 = vmul.f32 %v1203, %v1203
        %v1276 = vmul.f32 %v1204, %v1204
        %v1277 = vmul.f32 %v1205, %v1205
        %v1278 = vmul.f32 %v1206, %v1206
        %v1279 = vmul.f32 %v1207, %v1207
        %1288 = vrot.lane.b32.xlu0 %v1272, 1
        %v1289 = vpop.permute.xlu0 %1288
        %1290 = vrot.lane.b32.xlu0 %v1273, 1
        %v1291 = vpop.permute.xlu0 %1290
        %1292 = vrot.lane.b32.xlu0 %v1274, 1
        %v1293 = vpop.permute.xlu0 %1292
        %1294 = vrot.lane.b32.xlu0 %v1275, 1
        %v1295 = vpop.permute.xlu0 %1294
        %1296 = vrot.lane.b32.xlu0 %v1276, 1
        %v1297 = vpop.permute.xlu0 %1296
        %1298 = vrot.lane.b32.xlu0 %v1277, 1
        %v1299 = vpop.permute.xlu0 %1298
        %1300 = vrot.lane.b32.xlu0 %v1278, 1
        %v1301 = vpop.permute.xlu0 %1300
        %1302 = vrot.lane.b32.xlu0 %v1279, 1
        %v1303 = vpop.permute.xlu0 %1302
        %v1312 = vsub.f32 %v1264, %v1289
        %v1313 = vsub.f32 %v1265, %v1291
        %v1314 = vsub.f32 %v1266, %v1293
        %v1315 = vsub.f32 %v1267, %v1295
        %v1316 = vsub.f32 %v1268, %v1297
        %v1317 = vsub.f32 %v1269, %v1299
        %v1318 = vsub.f32 %v1270, %v1301
        %v1319 = vsub.f32 %v1271, %v1303
        %v1320 = vadd.f32 %v1096, %v1241
        %v1321 = vadd.f32 %v1097, %v1243
        %v1322 = vadd.f32 %v1098, %v1245
        %v1323 = vadd.f32 %v1099, %v1247
        %v1324 = vadd.f32 %v1100, %v1249
        %v1325 = vadd.f32 %v1101, %v1251
        %v1326 = vadd.f32 %v1102, %v1253
        %v1327 = vadd.f32 %v1103, %v1255
        %v1328 = vmul.f32 %v1320, %v1320
        %v1329 = vmul.f32 %v1321, %v1321
        %v1330 = vmul.f32 %v1322, %v1322
        %v1331 = vmul.f32 %v1323, %v1323
        %v1332 = vmul.f32 %v1324, %v1324
        %v1333 = vmul.f32 %v1325, %v1325
        %v1334 = vmul.f32 %v1326, %v1326
        %v1335 = vmul.f32 %v1327, %v1327
        %v1336 = vmul.f32 %v1312, 7.2
        %v1337 = vmul.f32 %v1313, 7.2
        %v1338 = vmul.f32 %v1314, 7.2
        %v1339 = vmul.f32 %v1315, 7.2
        %v1340 = vmul.f32 %v1316, 7.2
        %v1341 = vmul.f32 %v1317, 7.2
        %v1342 = vmul.f32 %v1318, 7.2
        %v1343 = vmul.f32 %v1319, 7.2
        %vm1344 = vcmp.le.f32.partialorder %v1328, %v1336
        %vm1345 = vcmp.le.f32.partialorder %v1329, %v1337
        %vm1346 = vcmp.le.f32.partialorder %v1330, %v1338
        %vm1347 = vcmp.le.f32.partialorder %v1331, %v1339
        %vm1348 = vcmp.le.f32.partialorder %v1332, %v1340
        %vm1349 = vcmp.le.f32.partialorder %v1333, %v1341
        %vm1350 = vcmp.le.f32.partialorder %v1334, %v1342
        %vm1351 = vcmp.le.f32.partialorder %v1335, %v1343
        %vm1352 = vcmp.gt.f32.partialorder %v1312, 0.0
        %vm1353 = vcmp.gt.f32.partialorder %v1313, 0.0
        %vm1354 = vcmp.gt.f32.partialorder %v1314, 0.0
        %vm1355 = vcmp.gt.f32.partialorder %v1315, 0.0
        %vm1356 = vcmp.gt.f32.partialorder %v1316, 0.0
        %vm1357 = vcmp.gt.f32.partialorder %v1317, 0.0
        %vm1358 = vcmp.gt.f32.partialorder %v1318, 0.0
        %vm1359 = vcmp.gt.f32.partialorder %v1319, 0.0
        %vm1360 = vmand %vm1344, %vm1352
        %vm1361 = vmand %vm1345, %vm1353
        %vm1362 = vmand %vm1346, %vm1354
        %vm1363 = vmand %vm1347, %vm1355
        %vm1364 = vmand %vm1348, %vm1356
        %vm1365 = vmand %vm1349, %vm1357
        %vm1366 = vmand %vm1350, %vm1358
        %vm1367 = vmand %vm1351, %vm1359
        %v1368 = vsel %vm1360, 1, 0
        %v1369 = vsel %vm1361, 1, 0
        %v1370 = vsel %vm1362, 1, 0
        %v1371 = vsel %vm1363, 1, 0
        %v1372 = vsel %vm1364, 1, 0
        %v1373 = vsel %vm1365, 1, 0
        %v1374 = vsel %vm1366, 1, 0
        %v1375 = vsel %vm1367, 1, 0
        %v1376 = vrot.slane %v1368, 7
        %v1377 = vrot.slane %v1369, 7
        %v1378 = vsel %vm214, %v1376, %v1377
        %v1379 = vrot.slane %v1370, 7
        %v1380 = vrot.slane %v1371, 7
        %v1381 = vsel %vm214, %v1379, %v1380
        %v1382 = vrot.slane %v1372, 7
        %v1383 = vrot.slane %v1373, 7
        %v1384 = vsel %vm214, %v1382, %v1383
        %v1385 = vrot.slane %v1374, 7
        %v1386 = vrot.slane %v1375, 7
        %v1387 = vsel %vm214, %v1385, %v1386
        %vm1388 = vcmp.ne.s32.totalorder %v1376, 0
        %vm1389 = vcmp.ne.s32.totalorder %v1378, 0
        %vm1390 = vcmp.ne.s32.totalorder %v1377, 0
        %vm1391 = vcmp.ne.s32.totalorder %v1379, 0
        %vm1392 = vcmp.ne.s32.totalorder %v1381, 0
        %vm1393 = vcmp.ne.s32.totalorder %v1380, 0
        %vm1394 = vcmp.ne.s32.totalorder %v1382, 0
        %vm1395 = vcmp.ne.s32.totalorder %v1384, 0
        %vm1396 = vcmp.ne.s32.totalorder %v1383, 0
        %vm1397 = vcmp.ne.s32.totalorder %v1385, 0
        %vm1398 = vcmp.ne.s32.totalorder %v1387, 0
        %vm1399 = vcmp.ne.s32.totalorder %v1386, 0
        %vm1400 = vmand %vm1024, %vm1388
        %vm1401 = vmand %vm1025, %vm1389
        %vm1402 = vmand %vm1026, %vm1390
        %vm1403 = vmand %vm1027, %vm1391
        %vm1404 = vmand %vm1028, %vm1392
        %vm1405 = vmand %vm1029, %vm1393
        %vm1406 = vmand %vm1030, %vm1394
        %vm1407 = vmand %vm1031, %vm1395
        %vm1408 = vmand %vm1032, %vm1396
        %vm1409 = vmand %vm1033, %vm1397
        %vm1410 = vmand %vm1034, %vm1398
        %vm1411 = vmand %vm1035, %vm1399
        %vm1412 = vmand %vm227, %vm1400
        %vm1413 = vmand %vm228, %vm1401
        %vm1414 = vmand %vm229, %vm1402
        %vm1415 = vmand %vm230, %vm1403
        %vm1416 = vmand %vm231, %vm1404
        %vm1417 = vmand %vm232, %vm1405
        %vm1418 = vmand %vm233, %vm1406
        %vm1419 = vmand %vm234, %vm1407
        %vm1420 = vmand %vm235, %vm1408
        %vm1421 = vmand %vm236, %vm1409
        %vm1422 = vmand %vm237, %vm1410
        %vm1423 = vmand %vm238, %vm1411
        %vm1424 = vmpackc.low %vm1412, %vm1412
        %vm1425 = vmpackc.even %vm1424, %vm1424
        %vm1426 = vmpackc.low %vm1413, %vm1413
        %vm1427 = vmpackc.even %vm1426, %vm1426
        %vm1428 = vmpackc.low %vm1414, %vm1414
        %vm1429 = vmpackc.even %vm1428, %vm1428
        %vm1430 = vmpackc.low %vm1415, %vm1415
        %vm1431 = vmpackc.even %vm1430, %vm1430
        %vm1432 = vmpackc.low %vm1416, %vm1416
        %vm1433 = vmpackc.even %vm1432, %vm1432
        %vm1434 = vmpackc.low %vm1417, %vm1417
        %vm1435 = vmpackc.even %vm1434, %vm1434
        %vm1436 = vmpackc.low %vm1418, %vm1418
        %vm1437 = vmpackc.even %vm1436, %vm1436
        %vm1438 = vmpackc.low %vm1419, %vm1419
        %vm1439 = vmpackc.even %vm1438, %vm1438
        %vm1440 = vmpackc.low %vm1420, %vm1420
        %vm1441 = vmpackc.even %vm1440, %vm1440
        %vm1442 = vmpackc.low %vm1421, %vm1421
        %vm1443 = vmpackc.even %vm1442, %vm1442
        %vm1444 = vmpackc.low %vm1422, %vm1422
        %vm1445 = vmpackc.even %vm1444, %vm1444
        %vm1446 = vmpackc.low %vm1423, %vm1423
        %vm1447 = vmpackc.even %vm1446, %vm1446
        %v1448 = vsel %vm1425, 16843009, 0
        %v1449 = vsel %vm1427, 16843009, 0
        %v1450 = vsel %vm1429, 16843009, 0
        %v1451 = vsel %vm1431, 16843009, 0
        %v1452 = vsel %vm1433, 16843009, 0
        %v1453 = vsel %vm1435, 16843009, 0
        %v1454 = vsel %vm1437, 16843009, 0
        %v1455 = vsel %vm1439, 16843009, 0
        %v1456 = vsel %vm1441, 16843009, 0
        %v1457 = vsel %vm1443, 16843009, 0
        %v1458 = vsel %vm1445, 16843009, 0
        %v1459 = vsel %vm1447, 16843009, 0
        %v1460 = vunpack.c.0.s8 %v1448
        %v1461 = vunpack.c.0.s8 %v1449
        %v1462 = vunpack.c.0.s8 %v1450
        %v1463 = vunpack.c.0.s8 %v1451
        %v1464 = vunpack.c.0.s8 %v1452
        %v1465 = vunpack.c.0.s8 %v1453
        %v1466 = vunpack.c.0.s8 %v1454
        %v1467 = vunpack.c.0.s8 %v1455
        %v1468 = vunpack.c.0.s8 %v1456
        %v1469 = vunpack.c.0.s8 %v1457
        %v1470 = vunpack.c.0.s8 %v1458
        %v1471 = vunpack.c.0.s8 %v1459
        %v1472 = vpack.c.b16 %v1461, %v1460
        %v1473 = vpack.c.b16 %v1462, %v1462
        %v1474 = vpack.c.b8 %v1473, %v1472
        %v1475 = vpack.c.b16 %v1464, %v1463
        %v1476 = vpack.c.b16 %v1465, %v1465
        %v1477 = vpack.c.b8 %v1476, %v1475
        %v1478 = vpack.c.b16 %v1467, %v1466
        %v1479 = vpack.c.b16 %v1468, %v1468
        %v1480 = vpack.c.b8 %v1479, %v1478
        %v1481 = vpack.c.b16 %v1470, %v1469
        %v1482 = vpack.c.b16 %v1471, %v1471
        %v1483 = vpack.c.b8 %v1482, %v1481
        %v1485 = vshrl.u32 %v1474, 8
        %v1487 = vshll.u32 %v1474, 24
        %v1489 = vrot.slane %v1487, 1
        %v1490 = vor.u32 %v1485, %v1489
        %v1492 = vshrl.u32 %v1477, 8
        %v1494 = vshll.u32 %v1477, 24
        %v1496 = vrot.slane %v1494, 1
        %v1497 = vor.u32 %v1492, %v1496
        %v1499 = vshrl.u32 %v1480, 8
        %v1501 = vshll.u32 %v1480, 24
        %v1503 = vrot.slane %v1501, 1
        %v1504 = vor.u32 %v1499, %v1503
        %v1506 = vshrl.u32 %v1483, 8
        %v1508 = vshll.u32 %v1483, 24
        %v1510 = vrot.slane %v1508, 1
        %v1511 = vor.u32 %v1506, %v1510
        %1512 = vrot.lane.b32.xlu0 %v1490, 127
        %v1513 = vpop.permute.xlu0 %1512
        %1514 = vrot.lane.b32.xlu0 %v1497, 127
        %v1515 = vpop.permute.xlu0 %1514
        %1516 = vrot.lane.b32.xlu0 %v1504, 127
        %v1517 = vpop.permute.xlu0 %1516
        %1518 = vrot.lane.b32.xlu0 %v1511, 127
        %v1519 = vpop.permute.xlu0 %1518
        %vm1520 = vnez %v1513
        %vm1521 = vnez %v1515
        %vm1522 = vnez %v1517
        %vm1523 = vnez %v1519
        %v1524 = vsel %vm1520, 16843009, 0
        %v1525 = vsel %vm1521, 16843009, 0
        %v1526 = vsel %vm1522, 16843009, 0
        %v1527 = vsel %vm1523, 16843009, 0
        %v1528 = vunpack.c.0.s8 %v1524
        %v1529 = vunpack.c.1.s8 %v1524
        %v1530 = vunpack.c.0.s8 %v1525
        %v1531 = vunpack.c.1.s8 %v1525
        %v1532 = vunpack.c.0.s8 %v1526
        %v1533 = vunpack.c.1.s8 %v1526
        %v1534 = vunpack.c.0.s8 %v1527
        %v1535 = vunpack.c.1.s8 %v1527
        %v1536 = vpack.c.b16 %v1528, %v1528
        %v1537 = vpack.c.b8 %v1536, %v1536
        %v1538 = vpack.c.b16 %v1529, %v1529
        %v1539 = vpack.c.b8 %v1538, %v1538
        %v1540 = vpack.c.b16 %v1530, %v1530
        %v1541 = vpack.c.b8 %v1540, %v1540
        %v1542 = vpack.c.b16 %v1531, %v1531
        %v1543 = vpack.c.b8 %v1542, %v1542
        %v1544 = vpack.c.b16 %v1532, %v1532
        %v1545 = vpack.c.b8 %v1544, %v1544
        %v1546 = vpack.c.b16 %v1533, %v1533
        %v1547 = vpack.c.b8 %v1546, %v1546
        %v1548 = vpack.c.b16 %v1534, %v1534
        %v1549 = vpack.c.b8 %v1548, %v1548
        %v1550 = vpack.c.b16 %v1535, %v1535
        %v1551 = vpack.c.b8 %v1550, %v1550
        %vm1552 = vcmask 123904
        %1553 = vst.msk [vmem:[%s178] sm:$0x3] %vm1552, %v1537
        %1554 = vst.msk [vmem:[%s178 + $0x2] sm:$0x3] %vm1552, %v1539
        %1555 = vst.msk [vmem:[%s178 + $0x4] sm:$0x3] %vm1552, %v1541
        %1556 = vst.msk [vmem:[%s178 + $0x6] sm:$0x3] %vm1552, %v1543
        %1557 = vst.msk [vmem:[%s178 + $0x8] sm:$0x3] %vm1552, %v1545
        %1558 = vst.msk [vmem:[%s178 + $0xa] sm:$0x3] %vm1552, %v1547
        %1559 = vst.msk [vmem:[%s178 + $0xc] sm:$0x3] %vm1552, %v1549
        %1560 = vst.msk [vmem:[%s178 + $0xe] sm:$0x3] %vm1552, %v1551
        %s1561 = sand.u32 %s92, 1
        %s1562 = scalar_lea.sflag [#allocation3], %s1561
        %s1563 = sand.u32 %s92, 1
        %s1564 = smul.addr %s1563, 16
        %s1565 = scalar_lea.vmem [#allocation2], %s1564
        // Predicated region
        $region29: #{tpu_custom_call.1} parent=27 // pred_check
          %p1566 = pneg %p102
        $region30: #{tpu_custom_call.1} parent=27 // pred_check_branch
          %1568 = sbr.rel (%p1566) target = $region32
        $region31: #{tpu_custom_call.1} parent=27 // pred_region
          %s1569 = smul.u32 4, %s21
          %s1571 = ssub.s32 256, 256
          %1572 = vsyncadd %s1562, %s1571
          %s1573 = smul.addr %s1569, 2
          %s1574 = smul.addr %s20, 8
          %s1575 = sadd.s32 %s1573, %s1574
          %s1576 = smul.addr %s1575, 32
          %s1577 = scalar_lea.hbm %s2, %s1576
          %s1578 = sshll.u32 %s1565, 4
          %s1579 = int_to_ptr.vmem [resolvable:$true] %s1578
          %1584 = dma.vmem_to_hbm [thread:$0]  %s1579, 256, %s1577, %s1562, 32, 32, 2
        $region32: #{tpu_custom_call.1} parent=27 // pred_fallthru
          _
      $region28: #{tpu_custom_call.1} parent=5 // pred_fallthru
        _
      %p1585 = scmp.le.s32.totalorder 2, %s11
      // Predicated region
      $region33: #{tpu_custom_call.1} parent=5 // pred_check
        %p1586 = pneg %p1585
      $region34: #{tpu_custom_call.1} parent=5 // pred_check_branch
        %1588 = sbr.rel (%p1586) target = $region36
      $region35: #{tpu_custom_call.1} parent=5 // pred_region
        %s1589 = ssub.s32 %s11, 2
        // Predicated region
        $region37: #{tpu_custom_call.1} parent=35 // pred_check
          %p1590 = pneg %p108
        $region38: #{tpu_custom_call.1} parent=35 // pred_check_branch
          %1592 = sbr.rel (%p1590) target = $region40
        $region39: #{tpu_custom_call.1} parent=35 // pred_region
          %s1593 = sand.u32 %s93, 1
          %s1594 = scalar_lea.sflag [#allocation3], %s1593
          %s1595 = sand.u32 %s93, 1
          %s1596 = smul.addr %s1595, 16
          %s1597 = scalar_lea.vmem [#allocation2], %s1596
          %1598 = dma.done %s1594, 256
        $region40: #{tpu_custom_call.1} parent=35 // pred_fallthru
          _
      $region36: #{tpu_custom_call.1} parent=5 // pred_fallthru
        _
    $region6: #{tpu_custom_call.1} parent=1 // loop_footer
      %s15 = sadd.s32 1, %s11
    $region7: #{tpu_custom_call.1} parent=1 // loop_footer_branch
      %10 = sbr.rel target = $region3
    $region8: #{tpu_custom_call.1} parent=1 // loop_exit
      _
    %1599 = vsyncpa [#allocation3], 1
    %s1600 = scalar_lea.sflag [#allocation3], 1
    %1601 = vsyncpa %s1600, 1

</llo_original>
